<compile_context>
chip_gen: v6e
topology: v6e:2x2x1
jax: 0.10.0
libtpu: 0.0.40
codegen_flags: <defaults>
</compile_context>

<pallas_src>
import functools

import jax
import jax.numpy as jnp
from jax.experimental import pallas as pl
from jax.experimental.pallas import tpu as pltpu


# ----------------------------- in-kernel helpers --------------------------- #

def _mix_upsample_plane(xs, w_ref, b_ref, skip_ref, uw, uht, c):
    """One output-channel plane: VPU channel mix on the pre-upsample plane,
    then 2x bilinear upsample via two matmuls, then bias + skip."""
    z = xs[0] * w_ref[c, 0]                       # (H, W) f32, scalar from SMEM
    for ci in range(1, len(xs)):
        z = z + xs[ci] * w_ref[c, ci]
    t = jnp.dot(z, uw, preferred_element_type=jnp.float32)    # (H,  2W)
    y = jnp.dot(uht, t, preferred_element_type=jnp.float32)   # (2H, 2W)
    return y + skip_ref[0, c, 0] + b_ref[c]


# --------------------------------- kernels --------------------------------- #

def _stats_kernel(w_ref, b_ref, x_ref, skip_ref, uw_ref, uht_ref,
                  sum_ref, ssq_ref, *, n_ci, n_co):
    """Per-(batch, channel) sum and sum-of-squares of y = up(conv(x)) + skip,
    accumulated over the depth grid axis (reduced over W2/depth/batch in glue)."""
    @pl.when(pl.program_id(1) == 0)
    def _init():
        sum_ref[...] = jnp.zeros_like(sum_ref)
        ssq_ref[...] = jnp.zeros_like(ssq_ref)

    xs = [x_ref[0, ci, 0] for ci in range(n_ci)]   # Ci x (H, W), loaded once
    uw = uw_ref[...]
    uht = uht_ref[...]

    part_sum, part_ssq = [], []
    for c in range(n_co):
        y = _mix_upsample_plane(xs, w_ref, b_ref, skip_ref, uw, uht, c)
        part_sum.append(jnp.sum(y, axis=0, keepdims=True))        # (1, 2W)
        part_ssq.append(jnp.sum(y * y, axis=0, keepdims=True))    # (1, 2W)
    sum_ref[0] += jnp.concatenate(part_sum, axis=0)                # (Co, 2W)
    ssq_ref[0] += jnp.concatenate(part_ssq, axis=0)


def _bn_elu_kernel(w_ref, b_ref, scale_ref, shift_ref,
                   x_ref, skip_ref, uw_ref, uht_ref, out_ref, *, n_ci, n_co):
    """Recompute y = up(conv(x)) + skip and apply BN affine + ELU(alpha=1)."""
    xs = [x_ref[0, ci, 0] for ci in range(n_ci)]
    uw = uw_ref[...]
    uht = uht_ref[...]

    for c in range(n_co):
        y = _mix_upsample_plane(xs, w_ref, b_ref, skip_ref, uw, uht, c)
        t = y * scale_ref[c] + shift_ref[c]
        # ELU(alpha=1).  exp(min(t,0))-1 instead of expm1 (Mosaic lowering of
        # expm1 is not guaranteed); absolute deviation from expm1 is < 1e-7.
        out_ref[0, c, 0] = jnp.where(t > 0, t, jnp.exp(jnp.minimum(t, 0.0)) - 1.0)


# ------------------------------- JAX glue ---------------------------------- #

def _upsample_matrix(n):
    """(n, 2n) interpolation matrix for 2x linear upsample, align_corners=False
    (PyTorch nn.Upsample).  Columns sum to 1; weights are exact 0.25/0.75/1."""
    o = jnp.arange(2 * n)
    src = jnp.clip((o.astype(jnp.float32) + 0.5) * 0.5 - 0.5, 0.0, float(n - 1))
    i0 = jnp.floor(src).astype(jnp.int32)
    i1 = jnp.minimum(i0 + 1, n - 1)
    lam = src - i0.astype(jnp.float32)
    u = jnp.zeros((n, 2 * n), jnp.float32)
    u = u.at[i0, o].add(1.0 - lam)
    u = u.at[i1, o].add(lam)
    return u


def upsample_mod_forward(x, skip, w, b, *, eps=1e-5):
    """x: (N, Ci, D, H, W), skip: (N, Co, D, 2H, 2W), w: (Co, Ci), b: (Co,).
    Returns (N, Co, D, 2H, 2W) float32, in NCDHW layout (no transposes)."""
    n, n_ci, d, h, wd = x.shape
    n_co = w.shape[0]
    h2, w2 = 2 * h, 2 * wd
    assert skip.shape == (n, n_co, d, h2, w2)

    x = x.astype(jnp.float32)
    skip = skip.astype(jnp.float32)
    w32 = w.astype(jnp.float32)
    b32 = b.astype(jnp.float32)

    uw = _upsample_matrix(wd)          # (W,  2W)   resident VMEM constant
    uht = _upsample_matrix(h).T        # (2H, H)

    grid = (n, d)

    smem_spec = pl.BlockSpec(memory_space=pltpu.MemorySpace.SMEM)
    x_spec = pl.BlockSpec((1, n_ci, 1, h, wd), lambda i, j: (i, 0, j, 0, 0))
    skip_spec = pl.BlockSpec((1, n_co, 1, h2, w2), lambda i, j: (i, 0, j, 0, 0))
    uw_spec = pl.BlockSpec((wd, w2), lambda i, j: (0, 0))
    uht_spec = pl.BlockSpec((h2, h), lambda i, j: (0, 0))
    stats_spec = pl.BlockSpec((1, n_co, w2), lambda i, j: (i, 0, 0))

    # Pass 1: fused conv + upsample + skip, accumulating per-(n, c) partial
    # sums / sums-of-squares (lane-resolved; final tiny reduction in glue).
    csum, cssq = pl.pallas_call(
        functools.partial(_stats_kernel, n_ci=n_ci, n_co=n_co),
        out_shape=(jax.ShapeDtypeStruct((n, n_co, w2), jnp.float32),
                   jax.ShapeDtypeStruct((n, n_co, w2), jnp.float32)),
        grid=grid,
        in_specs=[smem_spec, smem_spec, x_spec, skip_spec, uw_spec, uht_spec],
        out_specs=(stats_spec, stats_spec),
        compiler_params=pltpu.CompilerParams(
            dimension_semantics=("parallel", "arbitrary")),
    )(w32, b32, x, skip, uw, uht)

    # BatchNorm3d training-mode batch stats (biased variance), gamma=1, beta=0.
    # NOTE: E[y^2]-E[y]^2 in f32 with a clamp at 0; good enough for BN-scale
    # data but can lose precision if |mean| >> std.
    cnt = jnp.float32(n * d * h2 * w2)
    mean = jnp.sum(csum, axis=(0, 2)) / cnt                       # (Co,)
    var = jnp.maximum(jnp.sum(cssq, axis=(0, 2)) / cnt - mean * mean, 0.0)
    scale = 1.0 / jnp.sqrt(var + eps)
    shift = -mean * scale

    # Pass 2: recompute y and apply BN affine + ELU, writing NCDHW directly.
    out = pl.pallas_call(
        functools.partial(_bn_elu_kernel, n_ci=n_ci, n_co=n_co),
        out_shape=jax.ShapeDtypeStruct((n, n_co, d, h2, w2), jnp.float32),
        grid=grid,
        in_specs=[smem_spec, smem_spec, smem_spec, smem_spec,
                  x_spec, skip_spec, uw_spec, uht_spec],
        out_specs=skip_spec,
        compiler_params=pltpu.CompilerParams(
            dimension_semantics=("parallel", "parallel")),
    )(w32, b32, scale, shift, x, skip, uw, uht)
    return out


# ------------------------------ Reference ---------------------------------- #

def _upsample_linear_x2(x, axis):
    """Linear 2x upsample along `axis` (half-pixel centers, edge clamp)."""
    n = x.shape[axis]
    out = jnp.arange(2 * n, dtype=jnp.float32)
    src = jnp.clip((out + 0.5) * 0.5 - 0.5, 0.0, float(n - 1))
    i0 = jnp.floor(src).astype(jnp.int32)
    i1 = jnp.minimum(i0 + 1, n - 1)
    lam = src - i0.astype(jnp.float32)
    x0 = jnp.take(x, i0, axis=axis)
    x1 = jnp.take(x, i1, axis=axis)
    shape = [1] * x.ndim
    shape[axis] = 2 * n
    lam = lam.reshape(shape)
    return x0 * (1.0 - lam) + x1 * lam


def _reference(x, skip, w, b, eps=1e-5):
    xu = _upsample_linear_x2(_upsample_linear_x2(x, 3), 4)
    y = jnp.einsum('ncdhw,oc->nodhw', xu, w) + b[None, :, None, None, None] + skip
    mean = jnp.mean(y, axis=(0, 2, 3, 4), keepdims=True)
    var = jnp.mean((y - mean) ** 2, axis=(0, 2, 3, 4), keepdims=True)
    z = (y - mean) / jnp.sqrt(var + eps)
    return jnp.where(z > 0, z, jnp.expm1(z))


# --------------------------------- Main ------------------------------------ #

if __name__ == "__main__":
    key = jax.random.PRNGKey(0)
    kx, ks, kw = jax.random.split(key, 3)

    N, Ci, Co, D, H, W = 2, 4, 4, 4, 16, 16
    x = jax.random.normal(kx, (N, Ci, D, H, W), jnp.float32)
    skip = jax.random.normal(ks, (N, Co, D, 2 * H, 2 * W), jnp.float32)

    # Conv3d(Ci, Co, kernel_size=1): kaiming_normal weight (fan_in=Ci), bias=0.
    w = jax.random.normal(kw, (Co, Ci), jnp.float32) * jnp.sqrt(2.0 / Ci)
    b = jnp.zeros((Co,), jnp.float32)

    fwd = jax.jit(upsample_mod_forward)
    out = jax.block_until_ready(fwd(x, skip, w, b))
    assert out.shape == (N, Co, D, 2 * H, 2 * W)

    ref = _reference(x, skip, w, b)
    err = float(jnp.max(jnp.abs(out - ref)))
    assert err < 1e-3, f"max abs err = {err}"

    print("KERNEL_OK")
</pallas_src>

<mosaic_0001>
module attributes {stable_mosaic.version = 11 : i64} {
  func.func private @main(%arg0: i32) attributes {dimension_semantics = [#tpu.dimension_semantics<core_parallel>], iteration_bounds = array<i64: 2>, tpu.core_type = #tpu.core_type<sc_scalar_subcore>, window_params = []} {
    return
  }
}

module attributes {stable_mosaic.version = 11 : i64} {
  func.func private @main(%arg0: i32) attributes {dimension_semantics = [#tpu.dimension_semantics<core_parallel>], iteration_bounds = array<i64: 2>, tpu.core_type = #tpu.core_type<sc_scalar_subcore>, window_params = []} {
    return
  }
}

module attributes {stable_mosaic.version = 11 : i64} {
  func.func @_stats_kernel(%arg0: i32, %arg1: i32, %arg2: memref<4x4xf32, #tpu.memory_space<smem>>, %arg3: memref<4xf32, #tpu.memory_space<smem>>, %arg4: memref<1x4x1x16x16xf32, #tpu.memory_space<vmem>>, %arg5: memref<1x4x1x32x32xf32, #tpu.memory_space<vmem>>, %arg6: memref<16x32xf32, #tpu.memory_space<vmem>>, %arg7: memref<32x16xf32, #tpu.memory_space<vmem>>, %arg8: memref<1x4x32xf32, #tpu.memory_space<vmem>>, %arg9: memref<1x4x32xf32, #tpu.memory_space<vmem>>) attributes {dimension_semantics = [#tpu.dimension_semantics<parallel>, #tpu.dimension_semantics<arbitrary>], iteration_bounds = array<i64: 2, 4>, scalar_prefetch = 0 : i64, scratch_operands = 0 : i64, tpu.core_type = #tpu.core_type<tc>, window_params = [{transform_indices = @transform_0, window_bounds = array<i64: 4, 4>}, {transform_indices = @transform_1, window_bounds = array<i64: 4>}, {transform_indices = @transform_2, window_bounds = array<i64: 1, 4, 1, 16, 16>}, {transform_indices = @transform_3, window_bounds = array<i64: 1, 4, 1, 32, 32>}, {pipeline_mode = #tpu.pipeline_mode<synchronous>, transform_indices = @transform_4, window_bounds = array<i64: 16, 32>}, {pipeline_mode = #tpu.pipeline_mode<synchronous>, transform_indices = @transform_5, window_bounds = array<i64: 32, 16>}, {transform_indices = @transform_6, window_bounds = array<i64: 1, 4, 32>}, {transform_indices = @transform_7, window_bounds = array<i64: 1, 4, 32>}]} {
    %c0_i32 = arith.constant 0 : i32
    %0 = arith.cmpi eq, %arg1, %c0_i32 : i32
    %1 = arith.extui %0 : i1 to i32
    %c0_i32_0 = arith.constant 0 : i32
    %2 = arith.cmpi ne, %1, %c0_i32_0 : i32
    scf.if %2 {
      %cst_104 = arith.constant 0.000000e+00 : f32
      %139 = vector.broadcast %cst_104 : f32 to vector<1x4x32xf32>
      %c0_105 = arith.constant 0 : index
      %c0_106 = arith.constant 0 : index
      %c0_107 = arith.constant 0 : index
      %140 = vector.load %arg8[%c0_105, %c0_106, %c0_107] : memref<1x4x32xf32, #tpu.memory_space<vmem>>, vector<1x4x32xf32>
      tpu.vector_store %arg8[%c0_105, %c0_106, %c0_107], %139 {strides = array<i32>} : memref<1x4x32xf32, #tpu.memory_space<vmem>>, vector<1x4x32xf32>,
      %cst_108 = arith.constant 0.000000e+00 : f32
      %141 = vector.broadcast %cst_108 : f32 to vector<1x4x32xf32>
      %c0_109 = arith.constant 0 : index
      %c0_110 = arith.constant 0 : index
      %c0_111 = arith.constant 0 : index
      %142 = vector.load %arg9[%c0_109, %c0_110, %c0_111] : memref<1x4x32xf32, #tpu.memory_space<vmem>>, vector<1x4x32xf32>
      tpu.vector_store %arg9[%c0_109, %c0_110, %c0_111], %141 {strides = array<i32>} : memref<1x4x32xf32, #tpu.memory_space<vmem>>, vector<1x4x32xf32>,
    } else {
    }
    %c0 = arith.constant 0 : index
    %c0_1 = arith.constant 0 : index
    %c0_2 = arith.constant 0 : index
    %c0_3 = arith.constant 0 : index
    %c0_4 = arith.constant 0 : index
    %3 = vector.load %arg4[%c0, %c0_1, %c0_2, %c0_3, %c0_4] : memref<1x4x1x16x16xf32, #tpu.memory_space<vmem>>, vector<1x1x1x16x16xf32>
    %4 = vector.shape_cast %3 : vector<1x1x1x16x16xf32> to vector<16x16xf32>
    %c0_5 = arith.constant 0 : index
    %c1 = arith.constant 1 : index
    %c0_6 = arith.constant 0 : index
    %c0_7 = arith.constant 0 : index
    %c0_8 = arith.constant 0 : index
    %5 = vector.load %arg4[%c0_5, %c1, %c0_6, %c0_7, %c0_8] : memref<1x4x1x16x16xf32, #tpu.memory_space<vmem>>, vector<1x1x1x16x16xf32>
    %6 = vector.shape_cast %5 : vector<1x1x1x16x16xf32> to vector<16x16xf32>
    %c0_9 = arith.constant 0 : index
    %c2 = arith.constant 2 : index
    %c0_10 = arith.constant 0 : index
    %c0_11 = arith.constant 0 : index
    %c0_12 = arith.constant 0 : index
    %7 = vector.load %arg4[%c0_9, %c2, %c0_10, %c0_11, %c0_12] : memref<1x4x1x16x16xf32, #tpu.memory_space<vmem>>, vector<1x1x1x16x16xf32>
    %8 = vector.shape_cast %7 : vector<1x1x1x16x16xf32> to vector<16x16xf32>
    %c0_13 = arith.constant 0 : index
    %c3 = arith.constant 3 : index
    %c0_14 = arith.constant 0 : index
    %c0_15 = arith.constant 0 : index
    %c0_16 = arith.constant 0 : index
    %9 = vector.load %arg4[%c0_13, %c3, %c0_14, %c0_15, %c0_16] : memref<1x4x1x16x16xf32, #tpu.memory_space<vmem>>, vector<1x1x1x16x16xf32>
    %10 = vector.shape_cast %9 : vector<1x1x1x16x16xf32> to vector<16x16xf32>
    %c0_17 = arith.constant 0 : index
    %c0_18 = arith.constant 0 : index
    %11 = vector.load %arg6[%c0_17, %c0_18] : memref<16x32xf32, #tpu.memory_space<vmem>>, vector<16x32xf32>
    %c0_19 = arith.constant 0 : index
    %c0_20 = arith.constant 0 : index
    %12 = vector.load %arg7[%c0_19, %c0_20] : memref<32x16xf32, #tpu.memory_space<vmem>>, vector<32x16xf32>
    %c0_21 = arith.constant 0 : index
    %c0_22 = arith.constant 0 : index
    %13 = memref.load %arg2[%c0_21, %c0_22] : memref<4x4xf32, #tpu.memory_space<smem>>
    %14 = vector.broadcast %13 : f32 to vector<16x16xf32>
    %15 = arith.mulf %4, %14 : vector<16x16xf32>
    %c0_23 = arith.constant 0 : index
    %c1_24 = arith.constant 1 : index
    %16 = memref.load %arg2[%c0_23, %c1_24] : memref<4x4xf32, #tpu.memory_space<smem>>
    %17 = vector.broadcast %16 : f32 to vector<16x16xf32>
    %18 = arith.mulf %6, %17 : vector<16x16xf32>
    %19 = arith.addf %15, %18 : vector<16x16xf32>
    %c0_25 = arith.constant 0 : index
    %c2_26 = arith.constant 2 : index
    %20 = memref.load %arg2[%c0_25, %c2_26] : memref<4x4xf32, #tpu.memory_space<smem>>
    %21 = vector.broadcast %20 : f32 to vector<16x16xf32>
    %22 = arith.mulf %8, %21 : vector<16x16xf32>
    %23 = arith.addf %19, %22 : vector<16x16xf32>
    %c0_27 = arith.constant 0 : index
    %c3_28 = arith.constant 3 : index
    %24 = memref.load %arg2[%c0_27, %c3_28] : memref<4x4xf32, #tpu.memory_space<smem>>
    %25 = vector.broadcast %24 : f32 to vector<16x16xf32>
    %26 = arith.mulf %10, %25 : vector<16x16xf32>
    %27 = arith.addf %23, %26 : vector<16x16xf32>
    %cst = arith.constant dense<0.000000e+00> : vector<16x32xf32>
    %28 = tpu.matmul %27, %11, %cst {dimension_numbers = #tpu.dot_dimension_numbers<[1], [0], [0], [1], [0, 0, 1, 1], [], []>} : vector<16x16xf32>, vector<16x32xf32>, vector<16x32xf32> -> vector<16x32xf32>
    %cst_29 = arith.constant dense<0.000000e+00> : vector<32x32xf32>
    %29 = tpu.matmul %12, %28, %cst_29 {dimension_numbers = #tpu.dot_dimension_numbers<[1], [0], [0], [1], [0, 0, 1, 1], [], []>} : vector<32x16xf32>, vector<16x32xf32>, vector<32x32xf32> -> vector<32x32xf32>
    %c0_30 = arith.constant 0 : index
    %c0_31 = arith.constant 0 : index
    %c0_32 = arith.constant 0 : index
    %c0_33 = arith.constant 0 : index
    %c0_34 = arith.constant 0 : index
    %30 = vector.load %arg5[%c0_30, %c0_31, %c0_32, %c0_33, %c0_34] : memref<1x4x1x32x32xf32, #tpu.memory_space<vmem>>, vector<1x1x1x32x32xf32>
    %31 = vector.shape_cast %30 : vector<1x1x1x32x32xf32> to vector<32x32xf32>
    %32 = arith.addf %29, %31 : vector<32x32xf32>
    %c0_35 = arith.constant 0 : index
    %33 = memref.load %arg3[%c0_35] : memref<4xf32, #tpu.memory_space<smem>>
    %34 = vector.broadcast %33 : f32 to vector<32x32xf32>
    %35 = arith.addf %32, %34 : vector<32x32xf32>
    %cst_36 = arith.constant dense<0.000000e+00> : vector<32xf32>
    %36 = vector.multi_reduction <add>, %35, %cst_36 [0] : vector<32x32xf32> to vector<32xf32>
    %37 = vector.shape_cast %36 : vector<32xf32> to vector<1x32xf32>
    %38 = arith.mulf %35, %35 : vector<32x32xf32>
    %cst_37 = arith.constant dense<0.000000e+00> : vector<32xf32>
    %39 = vector.multi_reduction <add>, %38, %cst_37 [0] : vector<32x32xf32> to vector<32xf32>
    %40 = vector.shape_cast %39 : vector<32xf32> to vector<1x32xf32>
    %c1_38 = arith.constant 1 : index
    %c0_39 = arith.constant 0 : index
    %41 = memref.load %arg2[%c1_38, %c0_39] : memref<4x4xf32, #tpu.memory_space<smem>>
    %42 = vector.broadcast %41 : f32 to vector<16x16xf32>
    %43 = arith.mulf %4, %42 : vector<16x16xf32>
    %c1_40 = arith.constant 1 : index
    %c1_41 = arith.constant 1 : index
    %44 = memref.load %arg2[%c1_40, %c1_41] : memref<4x4xf32, #tpu.memory_space<smem>>
    %45 = vector.broadcast %44 : f32 to vector<16x16xf32>
    %46 = arith.mulf %6, %45 : vector<16x16xf32>
    %47 = arith.addf %43, %46 : vector<16x16xf32>
    %c1_42 = arith.constant 1 : index
    %c2_43 = arith.constant 2 : index
    %48 = memref.load %arg2[%c1_42, %c2_43] : memref<4x4xf32, #tpu.memory_space<smem>>
    %49 = vector.broadcast %48 : f32 to vector<16x16xf32>
    %50 = arith.mulf %8, %49 : vector<16x16xf32>
    %51 = arith.addf %47, %50 : vector<16x16xf32>
    %c1_44 = arith.constant 1 : index
    %c3_45 = arith.constant 3 : index
    %52 = memref.load %arg2[%c1_44, %c3_45] : memref<4x4xf32, #tpu.memory_space<smem>>
    %53 = vector.broadcast %52 : f32 to vector<16x16xf32>
    %54 = arith.mulf %10, %53 : vector<16x16xf32>
    %55 = arith.addf %51, %54 : vector<16x16xf32>
    %cst_46 = arith.constant dense<0.000000e+00> : vector<16x32xf32>
    %56 = tpu.matmul %55, %11, %cst_46 {dimension_numbers = #tpu.dot_dimension_numbers<[1], [0], [0], [1], [0, 0, 1, 1], [], []>} : vector<16x16xf32>, vector<16x32xf32>, vector<16x32xf32> -> vector<16x32xf32>
    %cst_47 = arith.constant dense<0.000000e+00> : vector<32x32xf32>
    %57 = tpu.matmul %12, %56, %cst_47 {dimension_numbers = #tpu.dot_dimension_numbers<[1], [0], [0], [1], [0, 0, 1, 1], [], []>} : vector<32x16xf32>, vector<16x32xf32>, vector<32x32xf32> -> vector<32x32xf32>
    %c0_48 = arith.constant 0 : index
    %c1_49 = arith.constant 1 : index
    %c0_50 = arith.constant 0 : index
    %c0_51 = arith.constant 0 : index
    %c0_52 = arith.constant 0 : index
    %58 = vector.load %arg5[%c0_48, %c1_49, %c0_50, %c0_51, %c0_52] : memref<1x4x1x32x32xf32, #tpu.memory_space<vmem>>, vector<1x1x1x32x32xf32>
    %59 = vector.shape_cast %58 : vector<1x1x1x32x32xf32> to vector<32x32xf32>
    %60 = arith.addf %57, %59 : vector<32x32xf32>
    %c1_53 = arith.constant 1 : index
    %61 = memref.load %arg3[%c1_53] : memref<4xf32, #tpu.memory_space<smem>>
    %62 = vector.broadcast %61 : f32 to vector<32x32xf32>
    %63 = arith.addf %60, %62 : vector<32x32xf32>
    %cst_54 = arith.constant dense<0.000000e+00> : vector<32xf32>
    %64 = vector.multi_reduction <add>, %63, %cst_54 [0] : vector<32x32xf32> to vector<32xf32>
    %65 = vector.shape_cast %64 : vector<32xf32> to vector<1x32xf32>
    %66 = arith.mulf %63, %63 : vector<32x32xf32>
    %cst_55 = arith.constant dense<0.000000e+00> : vector<32xf32>
    %67 = vector.multi_reduction <add>, %66, %cst_55 [0] : vector<32x32xf32> to vector<32xf32>
    %68 = vector.shape_cast %67 : vector<32xf32> to vector<1x32xf32>
    %c2_56 = arith.constant 2 : index
    %c0_57 = arith.constant 0 : index
    %69 = memref.load %arg2[%c2_56, %c0_57] : memref<4x4xf32, #tpu.memory_space<smem>>
    %70 = vector.broadcast %69 : f32 to vector<16x16xf32>
    %71 = arith.mulf %4, %70 : vector<16x16xf32>
    %c2_58 = arith.constant 2 : index
    %c1_59 = arith.constant 1 : index
    %72 = memref.load %arg2[%c2_58, %c1_59] : memref<4x4xf32, #tpu.memory_space<smem>>
    %73 = vector.broadcast %72 : f32 to vector<16x16xf32>
    %74 = arith.mulf %6, %73 : vector<16x16xf32>
    %75 = arith.addf %71, %74 : vector<16x16xf32>
    %c2_60 = arith.constant 2 : index
    %c2_61 = arith.constant 2 : index
    %76 = memref.load %arg2[%c2_60, %c2_61] : memref<4x4xf32, #tpu.memory_space<smem>>
    %77 = vector.broadcast %76 : f32 to vector<16x16xf32>
    %78 = arith.mulf %8, %77 : vector<16x16xf32>
    %79 = arith.addf %75, %78 : vector<16x16xf32>
    %c2_62 = arith.constant 2 : index
    %c3_63 = arith.constant 3 : index
    %80 = memref.load %arg2[%c2_62, %c3_63] : memref<4x4xf32, #tpu.memory_space<smem>>
    %81 = vector.broadcast %80 : f32 to vector<16x16xf32>
    %82 = arith.mulf %10, %81 : vector<16x16xf32>
    %83 = arith.addf %79, %82 : vector<16x16xf32>
    %cst_64 = arith.constant dense<0.000000e+00> : vector<16x32xf32>
    %84 = tpu.matmul %83, %11, %cst_64 {dimension_numbers = #tpu.dot_dimension_numbers<[1], [0], [0], [1], [0, 0, 1, 1], [], []>} : vector<16x16xf32>, vector<16x32xf32>, vector<16x32xf32> -> vector<16x32xf32>
    %cst_65 = arith.constant dense<0.000000e+00> : vector<32x32xf32>
    %85 = tpu.matmul %12, %84, %cst_65 {dimension_numbers = #tpu.dot_dimension_numbers<[1], [0], [0], [1], [0, 0, 1, 1], [], []>} : vector<32x16xf32>, vector<16x32xf32>, vector<32x32xf32> -> vector<32x32xf32>
    %c0_66 = arith.constant 0 : index
    %c2_67 = arith.constant 2 : index
    %c0_68 = arith.constant 0 : index
    %c0_69 = arith.constant 0 : index
    %c0_70 = arith.constant 0 : index
    %86 = vector.load %arg5[%c0_66, %c2_67, %c0_68, %c0_69, %c0_70] : memref<1x4x1x32x32xf32, #tpu.memory_space<vmem>>, vector<1x1x1x32x32xf32>
    %87 = vector.shape_cast %86 : vector<1x1x1x32x32xf32> to vector<32x32xf32>
    %88 = arith.addf %85, %87 : vector<32x32xf32>
    %c2_71 = arith.constant 2 : index
    %89 = memref.load %arg3[%c2_71] : memref<4xf32, #tpu.memory_space<smem>>
    %90 = vector.broadcast %89 : f32 to vector<32x32xf32>
    %91 = arith.addf %88, %90 : vector<32x32xf32>
    %cst_72 = arith.constant dense<0.000000e+00> : vector<32xf32>
    %92 = vector.multi_reduction <add>, %91, %cst_72 [0] : vector<32x32xf32> to vector<32xf32>
    %93 = vector.shape_cast %92 : vector<32xf32> to vector<1x32xf32>
    %94 = arith.mulf %91, %91 : vector<32x32xf32>
    %cst_73 = arith.constant dense<0.000000e+00> : vector<32xf32>
    %95 = vector.multi_reduction <add>, %94, %cst_73 [0] : vector<32x32xf32> to vector<32xf32>
    %96 = vector.shape_cast %95 : vector<32xf32> to vector<1x32xf32>
    %c3_74 = arith.constant 3 : index
    %c0_75 = arith.constant 0 : index
    %97 = memref.load %arg2[%c3_74, %c0_75] : memref<4x4xf32, #tpu.memory_space<smem>>
    %98 = vector.broadcast %97 : f32 to vector<16x16xf32>
    %99 = arith.mulf %4, %98 : vector<16x16xf32>
    %c3_76 = arith.constant 3 : index
    %c1_77 = arith.constant 1 : index
    %100 = memref.load %arg2[%c3_76, %c1_77] : memref<4x4xf32, #tpu.memory_space<smem>>
    %101 = vector.broadcast %100 : f32 to vector<16x16xf32>
    %102 = arith.mulf %6, %101 : vector<16x16xf32>
    %103 = arith.addf %99, %102 : vector<16x16xf32>
    %c3_78 = arith.constant 3 : index
    %c2_79 = arith.constant 2 : index
    %104 = memref.load %arg2[%c3_78, %c2_79] : memref<4x4xf32, #tpu.memory_space<smem>>
    %105 = vector.broadcast %104 : f32 to vector<16x16xf32>
    %106 = arith.mulf %8, %105 : vector<16x16xf32>
    %107 = arith.addf %103, %106 : vector<16x16xf32>
    %c3_80 = arith.constant 3 : index
    %c3_81 = arith.constant 3 : index
    %108 = memref.load %arg2[%c3_80, %c3_81] : memref<4x4xf32, #tpu.memory_space<smem>>
    %109 = vector.broadcast %108 : f32 to vector<16x16xf32>
    %110 = arith.mulf %10, %109 : vector<16x16xf32>
    %111 = arith.addf %107, %110 : vector<16x16xf32>
    %cst_82 = arith.constant dense<0.000000e+00> : vector<16x32xf32>
    %112 = tpu.matmul %111, %11, %cst_82 {dimension_numbers = #tpu.dot_dimension_numbers<[1], [0], [0], [1], [0, 0, 1, 1], [], []>} : vector<16x16xf32>, vector<16x32xf32>, vector<16x32xf32> -> vector<16x32xf32>
    %cst_83 = arith.constant dense<0.000000e+00> : vector<32x32xf32>
    %113 = tpu.matmul %12, %112, %cst_83 {dimension_numbers = #tpu.dot_dimension_numbers<[1], [0], [0], [1], [0, 0, 1, 1], [], []>} : vector<32x16xf32>, vector<16x32xf32>, vector<32x32xf32> -> vector<32x32xf32>
    %c0_84 = arith.constant 0 : index
    %c3_85 = arith.constant 3 : index
    %c0_86 = arith.constant 0 : index
    %c0_87 = arith.constant 0 : index
    %c0_88 = arith.constant 0 : index
    %114 = vector.load %arg5[%c0_84, %c3_85, %c0_86, %c0_87, %c0_88] : memref<1x4x1x32x32xf32, #tpu.memory_space<vmem>>, vector<1x1x1x32x32xf32>
    %115 = vector.shape_cast %114 : vector<1x1x1x32x32xf32> to vector<32x32xf32>
    %116 = arith.addf %113, %115 : vector<32x32xf32>
    %c3_89 = arith.constant 3 : index
    %117 = memref.load %arg3[%c3_89] : memref<4xf32, #tpu.memory_space<smem>>
    %118 = vector.broadcast %117 : f32 to vector<32x32xf32>
    %119 = arith.addf %116, %118 : vector<32x32xf32>
    %cst_90 = arith.constant dense<0.000000e+00> : vector<32xf32>
    %120 = vector.multi_reduction <add>, %119, %cst_90 [0] : vector<32x32xf32> to vector<32xf32>
    %121 = vector.shape_cast %120 : vector<32xf32> to vector<1x32xf32>
    %122 = arith.mulf %119, %119 : vector<32x32xf32>
    %cst_91 = arith.constant dense<0.000000e+00> : vector<32xf32>
    %123 = vector.multi_reduction <add>, %122, %cst_91 [0] : vector<32x32xf32> to vector<32xf32>
    %124 = vector.shape_cast %123 : vector<32xf32> to vector<1x32xf32>
    %c0_92 = arith.constant 0 : index
    %c0_93 = arith.constant 0 : index
    %c0_94 = arith.constant 0 : index
    %125 = vector.load %arg8[%c0_92, %c0_93, %c0_94] : memref<1x4x32xf32, #tpu.memory_space<vmem>>, vector<1x4x32xf32>
    %126 = vector.shape_cast %125 : vector<1x4x32xf32> to vector<4x32xf32>
    %127 = tpu.concatenate %37, %65, %93, %121 in 0 : vector<1x32xf32>, vector<1x32xf32>, vector<1x32xf32>, vector<1x32xf32> -> vector<4x32xf32>
    %128 = arith.addf %126, %127 : vector<4x32xf32>
    %c0_95 = arith.constant 0 : index
    %c0_96 = arith.constant 0 : index
    %c0_97 = arith.constant 0 : index
    %129 = vector.load %arg8[%c0_95, %c0_96, %c0_97] : memref<1x4x32xf32, #tpu.memory_space<vmem>>, vector<1x4x32xf32>
    %130 = vector.shape_cast %129 : vector<1x4x32xf32> to vector<4x32xf32>
    %131 = vector.shape_cast %128 : vector<4x32xf32> to vector<1x4x32xf32>
    tpu.vector_store %arg8[%c0_95, %c0_96, %c0_97], %131 {strides = array<i32>} : memref<1x4x32xf32, #tpu.memory_space<vmem>>, vector<1x4x32xf32>,
    %c0_98 = arith.constant 0 : index
    %c0_99 = arith.constant 0 : index
    %c0_100 = arith.constant 0 : index
    %132 = vector.load %arg9[%c0_98, %c0_99, %c0_100] : memref<1x4x32xf32, #tpu.memory_space<vmem>>, vector<1x4x32xf32>
    %133 = vector.shape_cast %132 : vector<1x4x32xf32> to vector<4x32xf32>
    %134 = tpu.concatenate %40, %68, %96, %124 in 0 : vector<1x32xf32>, vector<1x32xf32>, vector<1x32xf32>, vector<1x32xf32> -> vector<4x32xf32>
    %135 = arith.addf %133, %134 : vector<4x32xf32>
    %c0_101 = arith.constant 0 : index
    %c0_102 = arith.constant 0 : index
    %c0_103 = arith.constant 0 : index
    %136 = vector.load %arg9[%c0_101, %c0_102, %c0_103] : memref<1x4x32xf32, #tpu.memory_space<vmem>>, vector<1x4x32xf32>
    %137 = vector.shape_cast %136 : vector<1x4x32xf32> to vector<4x32xf32>
    %138 = vector.shape_cast %135 : vector<4x32xf32> to vector<1x4x32xf32>
    tpu.vector_store %arg9[%c0_101, %c0_102, %c0_103], %138 {strides = array<i32>} : memref<1x4x32xf32, #tpu.memory_space<vmem>>, vector<1x4x32xf32>,
    return
  }
  func.func @transform_0(%arg0: i32, %arg1: i32) -> (i32, i32) {
    %c0_i32 = arith.constant 0 : i32
    %c0_i32_0 = arith.constant 0 : i32
    %c0_i32_1 = arith.constant 0 : i32
    return %c0_i32, %c0_i32_0 : i32, i32
  }
  func.func @transform_1(%arg0: i32, %arg1: i32) -> i32 {
    %c0_i32 = arith.constant 0 : i32
    %c0_i32_0 = arith.constant 0 : i32
    return %c0_i32 : i32
  }
  func.func @transform_2(%arg0: i32, %arg1: i32) -> (i32, i32, i32, i32, i32) {
    %c0_i32 = arith.constant 0 : i32
    %c0_i32_0 = arith.constant 0 : i32
    %c0_i32_1 = arith.constant 0 : i32
    %c0_i32_2 = arith.constant 0 : i32
    return %arg0, %c0_i32, %arg1, %c0_i32_0, %c0_i32_1 : i32, i32, i32, i32, i32
  }
  func.func @transform_3(%arg0: i32, %arg1: i32) -> (i32, i32, i32, i32, i32) {
    %c0_i32 = arith.constant 0 : i32
    %c0_i32_0 = arith.constant 0 : i32
    %c0_i32_1 = arith.constant 0 : i32
    %c0_i32_2 = arith.constant 0 : i32
    return %arg0, %c0_i32, %arg1, %c0_i32_0, %c0_i32_1 : i32, i32, i32, i32, i32
  }
  func.func @transform_4(%arg0: i32, %arg1: i32) -> (i32, i32) {
    %c0_i32 = arith.constant 0 : i32
    %c0_i32_0 = arith.constant 0 : i32
    %c0_i32_1 = arith.constant 0 : i32
    return %c0_i32, %c0_i32_0 : i32, i32
  }
  func.func @transform_5(%arg0: i32, %arg1: i32) -> (i32, i32) {
    %c0_i32 = arith.constant 0 : i32
    %c0_i32_0 = arith.constant 0 : i32
    %c0_i32_1 = arith.constant 0 : i32
    return %c0_i32, %c0_i32_0 : i32, i32
  }
  func.func @transform_6(%arg0: i32, %arg1: i32) -> (i32, i32, i32) {
    %c0_i32 = arith.constant 0 : i32
    %c0_i32_0 = arith.constant 0 : i32
    %c0_i32_1 = arith.constant 0 : i32
    return %arg0, %c0_i32, %c0_i32_0 : i32, i32, i32
  }
  func.func @transform_7(%arg0: i32, %arg1: i32) -> (i32, i32, i32) {
    %c0_i32 = arith.constant 0 : i32
    %c0_i32_0 = arith.constant 0 : i32
    %c0_i32_1 = arith.constant 0 : i32
    return %arg0, %c0_i32, %c0_i32_0 : i32, i32, i32
  }
}

module attributes {stable_mosaic.version = 11 : i64} {
  func.func @_bn_elu_kernel(%arg0: i32, %arg1: i32, %arg2: memref<4x4xf32, #tpu.memory_space<smem>>, %arg3: memref<4xf32, #tpu.memory_space<smem>>, %arg4: memref<4xf32, #tpu.memory_space<smem>>, %arg5: memref<4xf32, #tpu.memory_space<smem>>, %arg6: memref<1x4x1x16x16xf32, #tpu.memory_space<vmem>>, %arg7: memref<1x4x1x32x32xf32, #tpu.memory_space<vmem>>, %arg8: memref<16x32xf32, #tpu.memory_space<vmem>>, %arg9: memref<32x16xf32, #tpu.memory_space<vmem>>, %arg10: memref<1x4x1x32x32xf32, #tpu.memory_space<vmem>>) attributes {dimension_semantics = [#tpu.dimension_semantics<parallel>, #tpu.dimension_semantics<parallel>], iteration_bounds = array<i64: 2, 4>, scalar_prefetch = 0 : i64, scratch_operands = 0 : i64, tpu.core_type = #tpu.core_type<tc>, window_params = [{transform_indices = @transform_0, window_bounds = array<i64: 4, 4>}, {transform_indices = @transform_1, window_bounds = array<i64: 4>}, {transform_indices = @transform_2, window_bounds = array<i64: 4>}, {transform_indices = @transform_3, window_bounds = array<i64: 4>}, {transform_indices = @transform_4, window_bounds = array<i64: 1, 4, 1, 16, 16>}, {transform_indices = @transform_5, window_bounds = array<i64: 1, 4, 1, 32, 32>}, {pipeline_mode = #tpu.pipeline_mode<synchronous>, transform_indices = @transform_6, window_bounds = array<i64: 16, 32>}, {pipeline_mode = #tpu.pipeline_mode<synchronous>, transform_indices = @transform_7, window_bounds = array<i64: 32, 16>}, {transform_indices = @transform_8, window_bounds = array<i64: 1, 4, 1, 32, 32>}]} {
    %c0 = arith.constant 0 : index
    %c0_0 = arith.constant 0 : index
    %c0_1 = arith.constant 0 : index
    %c0_2 = arith.constant 0 : index
    %c0_3 = arith.constant 0 : index
    %0 = vector.load %arg6[%c0, %c0_0, %c0_1, %c0_2, %c0_3] : memref<1x4x1x16x16xf32, #tpu.memory_space<vmem>>, vector<1x1x1x16x16xf32>
    %1 = vector.shape_cast %0 : vector<1x1x1x16x16xf32> to vector<16x16xf32>
    %c0_4 = arith.constant 0 : index
    %c1 = arith.constant 1 : index
    %c0_5 = arith.constant 0 : index
    %c0_6 = arith.constant 0 : index
    %c0_7 = arith.constant 0 : index
    %2 = vector.load %arg6[%c0_4, %c1, %c0_5, %c0_6, %c0_7] : memref<1x4x1x16x16xf32, #tpu.memory_space<vmem>>, vector<1x1x1x16x16xf32>
    %3 = vector.shape_cast %2 : vector<1x1x1x16x16xf32> to vector<16x16xf32>
    %c0_8 = arith.constant 0 : index
    %c2 = arith.constant 2 : index
    %c0_9 = arith.constant 0 : index
    %c0_10 = arith.constant 0 : index
    %c0_11 = arith.constant 0 : index
    %4 = vector.load %arg6[%c0_8, %c2, %c0_9, %c0_10, %c0_11] : memref<1x4x1x16x16xf32, #tpu.memory_space<vmem>>, vector<1x1x1x16x16xf32>
    %5 = vector.shape_cast %4 : vector<1x1x1x16x16xf32> to vector<16x16xf32>
    %c0_12 = arith.constant 0 : index
    %c3 = arith.constant 3 : index
    %c0_13 = arith.constant 0 : index
    %c0_14 = arith.constant 0 : index
    %c0_15 = arith.constant 0 : index
    %6 = vector.load %arg6[%c0_12, %c3, %c0_13, %c0_14, %c0_15] : memref<1x4x1x16x16xf32, #tpu.memory_space<vmem>>, vector<1x1x1x16x16xf32>
    %7 = vector.shape_cast %6 : vector<1x1x1x16x16xf32> to vector<16x16xf32>
    %c0_16 = arith.constant 0 : index
    %c0_17 = arith.constant 0 : index
    %8 = vector.load %arg8[%c0_16, %c0_17] : memref<16x32xf32, #tpu.memory_space<vmem>>, vector<16x32xf32>
    %c0_18 = arith.constant 0 : index
    %c0_19 = arith.constant 0 : index
    %9 = vector.load %arg9[%c0_18, %c0_19] : memref<32x16xf32, #tpu.memory_space<vmem>>, vector<32x16xf32>
    %c0_20 = arith.constant 0 : index
    %c0_21 = arith.constant 0 : index
    %10 = memref.load %arg2[%c0_20, %c0_21] : memref<4x4xf32, #tpu.memory_space<smem>>
    %11 = vector.broadcast %10 : f32 to vector<16x16xf32>
    %12 = arith.mulf %1, %11 : vector<16x16xf32>
    %c0_22 = arith.constant 0 : index
    %c1_23 = arith.constant 1 : index
    %13 = memref.load %arg2[%c0_22, %c1_23] : memref<4x4xf32, #tpu.memory_space<smem>>
    %14 = vector.broadcast %13 : f32 to vector<16x16xf32>
    %15 = arith.mulf %3, %14 : vector<16x16xf32>
    %16 = arith.addf %12, %15 : vector<16x16xf32>
    %c0_24 = arith.constant 0 : index
    %c2_25 = arith.constant 2 : index
    %17 = memref.load %arg2[%c0_24, %c2_25] : memref<4x4xf32, #tpu.memory_space<smem>>
    %18 = vector.broadcast %17 : f32 to vector<16x16xf32>
    %19 = arith.mulf %5, %18 : vector<16x16xf32>
    %20 = arith.addf %16, %19 : vector<16x16xf32>
    %c0_26 = arith.constant 0 : index
    %c3_27 = arith.constant 3 : index
    %21 = memref.load %arg2[%c0_26, %c3_27] : memref<4x4xf32, #tpu.memory_space<smem>>
    %22 = vector.broadcast %21 : f32 to vector<16x16xf32>
    %23 = arith.mulf %7, %22 : vector<16x16xf32>
    %24 = arith.addf %20, %23 : vector<16x16xf32>
    %cst = arith.constant dense<0.000000e+00> : vector<16x32xf32>
    %25 = tpu.matmul %24, %8, %cst {dimension_numbers = #tpu.dot_dimension_numbers<[1], [0], [0], [1], [0, 0, 1, 1], [], []>} : vector<16x16xf32>, vector<16x32xf32>, vector<16x32xf32> -> vector<16x32xf32>
    %cst_28 = arith.constant dense<0.000000e+00> : vector<32x32xf32>
    %26 = tpu.matmul %9, %25, %cst_28 {dimension_numbers = #tpu.dot_dimension_numbers<[1], [0], [0], [1], [0, 0, 1, 1], [], []>} : vector<32x16xf32>, vector<16x32xf32>, vector<32x32xf32> -> vector<32x32xf32>
    %c0_29 = arith.constant 0 : index
    %c0_30 = arith.constant 0 : index
    %c0_31 = arith.constant 0 : index
    %c0_32 = arith.constant 0 : index
    %c0_33 = arith.constant 0 : index
    %27 = vector.load %arg7[%c0_29, %c0_30, %c0_31, %c0_32, %c0_33] : memref<1x4x1x32x32xf32, #tpu.memory_space<vmem>>, vector<1x1x1x32x32xf32>
    %28 = vector.shape_cast %27 : vector<1x1x1x32x32xf32> to vector<32x32xf32>
    %29 = arith.addf %26, %28 : vector<32x32xf32>
    %c0_34 = arith.constant 0 : index
    %30 = memref.load %arg3[%c0_34] : memref<4xf32, #tpu.memory_space<smem>>
    %31 = vector.broadcast %30 : f32 to vector<32x32xf32>
    %32 = arith.addf %29, %31 : vector<32x32xf32>
    %c0_35 = arith.constant 0 : index
    %33 = memref.load %arg4[%c0_35] : memref<4xf32, #tpu.memory_space<smem>>
    %34 = vector.broadcast %33 : f32 to vector<32x32xf32>
    %35 = arith.mulf %32, %34 : vector<32x32xf32>
    %c0_36 = arith.constant 0 : index
    %36 = memref.load %arg5[%c0_36] : memref<4xf32, #tpu.memory_space<smem>>
    %37 = vector.broadcast %36 : f32 to vector<32x32xf32>
    %38 = arith.addf %35, %37 : vector<32x32xf32>
    %cst_37 = arith.constant 0.000000e+00 : f32
    %39 = vector.broadcast %cst_37 : f32 to vector<32x32xf32>
    %40 = arith.cmpf ogt, %38, %39 : vector<32x32xf32>
    %cst_38 = arith.constant 0.000000e+00 : f32
    %41 = vector.broadcast %cst_38 : f32 to vector<32x32xf32>
    %42 = arith.minimumf %38, %41 : vector<32x32xf32>
    %43 = math.exp %42 : vector<32x32xf32>
    %cst_39 = arith.constant 1.000000e+00 : f32
    %44 = vector.broadcast %cst_39 : f32 to vector<32x32xf32>
    %45 = arith.subf %43, %44 : vector<32x32xf32>
    %46 = arith.select %40, %38, %45 : vector<32x32xi1>, vector<32x32xf32>
    %c0_40 = arith.constant 0 : index
    %c0_41 = arith.constant 0 : index
    %c0_42 = arith.constant 0 : index
    %c0_43 = arith.constant 0 : index
    %c0_44 = arith.constant 0 : index
    %47 = vector.load %arg10[%c0_40, %c0_41, %c0_42, %c0_43, %c0_44] : memref<1x4x1x32x32xf32, #tpu.memory_space<vmem>>, vector<1x1x1x32x32xf32>
    %48 = vector.shape_cast %47 : vector<1x1x1x32x32xf32> to vector<32x32xf32>
    %49 = vector.shape_cast %46 : vector<32x32xf32> to vector<1x1x1x32x32xf32>
    tpu.vector_store %arg10[%c0_40, %c0_41, %c0_42, %c0_43, %c0_44], %49 {strides = array<i32>} : memref<1x4x1x32x32xf32, #tpu.memory_space<vmem>>, vector<1x1x1x32x32xf32>,
    %c1_45 = arith.constant 1 : index
    %c0_46 = arith.constant 0 : index
    %50 = memref.load %arg2[%c1_45, %c0_46] : memref<4x4xf32, #tpu.memory_space<smem>>
    %51 = vector.broadcast %50 : f32 to vector<16x16xf32>
    %52 = arith.mulf %1, %51 : vector<16x16xf32>
    %c1_47 = arith.constant 1 : index
    %c1_48 = arith.constant 1 : index
    %53 = memref.load %arg2[%c1_47, %c1_48] : memref<4x4xf32, #tpu.memory_space<smem>>
    %54 = vector.broadcast %53 : f32 to vector<16x16xf32>
    %55 = arith.mulf %3, %54 : vector<16x16xf32>
    %56 = arith.addf %52, %55 : vector<16x16xf32>
    %c1_49 = arith.constant 1 : index
    %c2_50 = arith.constant 2 : index
    %57 = memref.load %arg2[%c1_49, %c2_50] : memref<4x4xf32, #tpu.memory_space<smem>>
    %58 = vector.broadcast %57 : f32 to vector<16x16xf32>
    %59 = arith.mulf %5, %58 : vector<16x16xf32>
    %60 = arith.addf %56, %59 : vector<16x16xf32>
    %c1_51 = arith.constant 1 : index
    %c3_52 = arith.constant 3 : index
    %61 = memref.load %arg2[%c1_51, %c3_52] : memref<4x4xf32, #tpu.memory_space<smem>>
    %62 = vector.broadcast %61 : f32 to vector<16x16xf32>
    %63 = arith.mulf %7, %62 : vector<16x16xf32>
    %64 = arith.addf %60, %63 : vector<16x16xf32>
    %cst_53 = arith.constant dense<0.000000e+00> : vector<16x32xf32>
    %65 = tpu.matmul %64, %8, %cst_53 {dimension_numbers = #tpu.dot_dimension_numbers<[1], [0], [0], [1], [0, 0, 1, 1], [], []>} : vector<16x16xf32>, vector<16x32xf32>, vector<16x32xf32> -> vector<16x32xf32>
    %cst_54 = arith.constant dense<0.000000e+00> : vector<32x32xf32>
    %66 = tpu.matmul %9, %65, %cst_54 {dimension_numbers = #tpu.dot_dimension_numbers<[1], [0], [0], [1], [0, 0, 1, 1], [], []>} : vector<32x16xf32>, vector<16x32xf32>, vector<32x32xf32> -> vector<32x32xf32>
    %c0_55 = arith.constant 0 : index
    %c1_56 = arith.constant 1 : index
    %c0_57 = arith.constant 0 : index
    %c0_58 = arith.constant 0 : index
    %c0_59 = arith.constant 0 : index
    %67 = vector.load %arg7[%c0_55, %c1_56, %c0_57, %c0_58, %c0_59] : memref<1x4x1x32x32xf32, #tpu.memory_space<vmem>>, vector<1x1x1x32x32xf32>
    %68 = vector.shape_cast %67 : vector<1x1x1x32x32xf32> to vector<32x32xf32>
    %69 = arith.addf %66, %68 : vector<32x32xf32>
    %c1_60 = arith.constant 1 : index
    %70 = memref.load %arg3[%c1_60] : memref<4xf32, #tpu.memory_space<smem>>
    %71 = vector.broadcast %70 : f32 to vector<32x32xf32>
    %72 = arith.addf %69, %71 : vector<32x32xf32>
    %c1_61 = arith.constant 1 : index
    %73 = memref.load %arg4[%c1_61] : memref<4xf32, #tpu.memory_space<smem>>
    %74 = vector.broadcast %73 : f32 to vector<32x32xf32>
    %75 = arith.mulf %72, %74 : vector<32x32xf32>
    %c1_62 = arith.constant 1 : index
    %76 = memref.load %arg5[%c1_62] : memref<4xf32, #tpu.memory_space<smem>>
    %77 = vector.broadcast %76 : f32 to vector<32x32xf32>
    %78 = arith.addf %75, %77 : vector<32x32xf32>
    %cst_63 = arith.constant 0.000000e+00 : f32
    %79 = vector.broadcast %cst_63 : f32 to vector<32x32xf32>
    %80 = arith.cmpf ogt, %78, %79 : vector<32x32xf32>
    %cst_64 = arith.constant 0.000000e+00 : f32
    %81 = vector.broadcast %cst_64 : f32 to vector<32x32xf32>
    %82 = arith.minimumf %78, %81 : vector<32x32xf32>
    %83 = math.exp %82 : vector<32x32xf32>
    %cst_65 = arith.constant 1.000000e+00 : f32
    %84 = vector.broadcast %cst_65 : f32 to vector<32x32xf32>
    %85 = arith.subf %83, %84 : vector<32x32xf32>
    %86 = arith.select %80, %78, %85 : vector<32x32xi1>, vector<32x32xf32>
    %c0_66 = arith.constant 0 : index
    %c1_67 = arith.constant 1 : index
    %c0_68 = arith.constant 0 : index
    %c0_69 = arith.constant 0 : index
    %c0_70 = arith.constant 0 : index
    %87 = vector.load %arg10[%c0_66, %c1_67, %c0_68, %c0_69, %c0_70] : memref<1x4x1x32x32xf32, #tpu.memory_space<vmem>>, vector<1x1x1x32x32xf32>
    %88 = vector.shape_cast %87 : vector<1x1x1x32x32xf32> to vector<32x32xf32>
    %89 = vector.shape_cast %86 : vector<32x32xf32> to vector<1x1x1x32x32xf32>
    tpu.vector_store %arg10[%c0_66, %c1_67, %c0_68, %c0_69, %c0_70], %89 {strides = array<i32>} : memref<1x4x1x32x32xf32, #tpu.memory_space<vmem>>, vector<1x1x1x32x32xf32>,
    %c2_71 = arith.constant 2 : index
    %c0_72 = arith.constant 0 : index
    %90 = memref.load %arg2[%c2_71, %c0_72] : memref<4x4xf32, #tpu.memory_space<smem>>
    %91 = vector.broadcast %90 : f32 to vector<16x16xf32>
    %92 = arith.mulf %1, %91 : vector<16x16xf32>
    %c2_73 = arith.constant 2 : index
    %c1_74 = arith.constant 1 : index
    %93 = memref.load %arg2[%c2_73, %c1_74] : memref<4x4xf32, #tpu.memory_space<smem>>
    %94 = vector.broadcast %93 : f32 to vector<16x16xf32>
    %95 = arith.mulf %3, %94 : vector<16x16xf32>
    %96 = arith.addf %92, %95 : vector<16x16xf32>
    %c2_75 = arith.constant 2 : index
    %c2_76 = arith.constant 2 : index
    %97 = memref.load %arg2[%c2_75, %c2_76] : memref<4x4xf32, #tpu.memory_space<smem>>
    %98 = vector.broadcast %97 : f32 to vector<16x16xf32>
    %99 = arith.mulf %5, %98 : vector<16x16xf32>
    %100 = arith.addf %96, %99 : vector<16x16xf32>
    %c2_77 = arith.constant 2 : index
    %c3_78 = arith.constant 3 : index
    %101 = memref.load %arg2[%c2_77, %c3_78] : memref<4x4xf32, #tpu.memory_space<smem>>
    %102 = vector.broadcast %101 : f32 to vector<16x16xf32>
    %103 = arith.mulf %7, %102 : vector<16x16xf32>
    %104 = arith.addf %100, %103 : vector<16x16xf32>
    %cst_79 = arith.constant dense<0.000000e+00> : vector<16x32xf32>
    %105 = tpu.matmul %104, %8, %cst_79 {dimension_numbers = #tpu.dot_dimension_numbers<[1], [0], [0], [1], [0, 0, 1, 1], [], []>} : vector<16x16xf32>, vector<16x32xf32>, vector<16x32xf32> -> vector<16x32xf32>
    %cst_80 = arith.constant dense<0.000000e+00> : vector<32x32xf32>
    %106 = tpu.matmul %9, %105, %cst_80 {dimension_numbers = #tpu.dot_dimension_numbers<[1], [0], [0], [1], [0, 0, 1, 1], [], []>} : vector<32x16xf32>, vector<16x32xf32>, vector<32x32xf32> -> vector<32x32xf32>
    %c0_81 = arith.constant 0 : index
    %c2_82 = arith.constant 2 : index
    %c0_83 = arith.constant 0 : index
    %c0_84 = arith.constant 0 : index
    %c0_85 = arith.constant 0 : index
    %107 = vector.load %arg7[%c0_81, %c2_82, %c0_83, %c0_84, %c0_85] : memref<1x4x1x32x32xf32, #tpu.memory_space<vmem>>, vector<1x1x1x32x32xf32>
    %108 = vector.shape_cast %107 : vector<1x1x1x32x32xf32> to vector<32x32xf32>
    %109 = arith.addf %106, %108 : vector<32x32xf32>
    %c2_86 = arith.constant 2 : index
    %110 = memref.load %arg3[%c2_86] : memref<4xf32, #tpu.memory_space<smem>>
    %111 = vector.broadcast %110 : f32 to vector<32x32xf32>
    %112 = arith.addf %109, %111 : vector<32x32xf32>
    %c2_87 = arith.constant 2 : index
    %113 = memref.load %arg4[%c2_87] : memref<4xf32, #tpu.memory_space<smem>>
    %114 = vector.broadcast %113 : f32 to vector<32x32xf32>
    %115 = arith.mulf %112, %114 : vector<32x32xf32>
    %c2_88 = arith.constant 2 : index
    %116 = memref.load %arg5[%c2_88] : memref<4xf32, #tpu.memory_space<smem>>
    %117 = vector.broadcast %116 : f32 to vector<32x32xf32>
    %118 = arith.addf %115, %117 : vector<32x32xf32>
    %cst_89 = arith.constant 0.000000e+00 : f32
    %119 = vector.broadcast %cst_89 : f32 to vector<32x32xf32>
    %120 = arith.cmpf ogt, %118, %119 : vector<32x32xf32>
    %cst_90 = arith.constant 0.000000e+00 : f32
    %121 = vector.broadcast %cst_90 : f32 to vector<32x32xf32>
    %122 = arith.minimumf %118, %121 : vector<32x32xf32>
    %123 = math.exp %122 : vector<32x32xf32>
    %cst_91 = arith.constant 1.000000e+00 : f32
    %124 = vector.broadcast %cst_91 : f32 to vector<32x32xf32>
    %125 = arith.subf %123, %124 : vector<32x32xf32>
    %126 = arith.select %120, %118, %125 : vector<32x32xi1>, vector<32x32xf32>
    %c0_92 = arith.constant 0 : index
    %c2_93 = arith.constant 2 : index
    %c0_94 = arith.constant 0 : index
    %c0_95 = arith.constant 0 : index
    %c0_96 = arith.constant 0 : index
    %127 = vector.load %arg10[%c0_92, %c2_93, %c0_94, %c0_95, %c0_96] : memref<1x4x1x32x32xf32, #tpu.memory_space<vmem>>, vector<1x1x1x32x32xf32>
    %128 = vector.shape_cast %127 : vector<1x1x1x32x32xf32> to vector<32x32xf32>
    %129 = vector.shape_cast %126 : vector<32x32xf32> to vector<1x1x1x32x32xf32>
    tpu.vector_store %arg10[%c0_92, %c2_93, %c0_94, %c0_95, %c0_96], %129 {strides = array<i32>} : memref<1x4x1x32x32xf32, #tpu.memory_space<vmem>>, vector<1x1x1x32x32xf32>,
    %c3_97 = arith.constant 3 : index
    %c0_98 = arith.constant 0 : index
    %130 = memref.load %arg2[%c3_97, %c0_98] : memref<4x4xf32, #tpu.memory_space<smem>>
    %131 = vector.broadcast %130 : f32 to vector<16x16xf32>
    %132 = arith.mulf %1, %131 : vector<16x16xf32>
    %c3_99 = arith.constant 3 : index
    %c1_100 = arith.constant 1 : index
    %133 = memref.load %arg2[%c3_99, %c1_100] : memref<4x4xf32, #tpu.memory_space<smem>>
    %134 = vector.broadcast %133 : f32 to vector<16x16xf32>
    %135 = arith.mulf %3, %134 : vector<16x16xf32>
    %136 = arith.addf %132, %135 : vector<16x16xf32>
    %c3_101 = arith.constant 3 : index
    %c2_102 = arith.constant 2 : index
    %137 = memref.load %arg2[%c3_101, %c2_102] : memref<4x4xf32, #tpu.memory_space<smem>>
    %138 = vector.broadcast %137 : f32 to vector<16x16xf32>
    %139 = arith.mulf %5, %138 : vector<16x16xf32>
    %140 = arith.addf %136, %139 : vector<16x16xf32>
    %c3_103 = arith.constant 3 : index
    %c3_104 = arith.constant 3 : index
    %141 = memref.load %arg2[%c3_103, %c3_104] : memref<4x4xf32, #tpu.memory_space<smem>>
    %142 = vector.broadcast %141 : f32 to vector<16x16xf32>
    %143 = arith.mulf %7, %142 : vector<16x16xf32>
    %144 = arith.addf %140, %143 : vector<16x16xf32>
    %cst_105 = arith.constant dense<0.000000e+00> : vector<16x32xf32>
    %145 = tpu.matmul %144, %8, %cst_105 {dimension_numbers = #tpu.dot_dimension_numbers<[1], [0], [0], [1], [0, 0, 1, 1], [], []>} : vector<16x16xf32>, vector<16x32xf32>, vector<16x32xf32> -> vector<16x32xf32>
    %cst_106 = arith.constant dense<0.000000e+00> : vector<32x32xf32>
    %146 = tpu.matmul %9, %145, %cst_106 {dimension_numbers = #tpu.dot_dimension_numbers<[1], [0], [0], [1], [0, 0, 1, 1], [], []>} : vector<32x16xf32>, vector<16x32xf32>, vector<32x32xf32> -> vector<32x32xf32>
    %c0_107 = arith.constant 0 : index
    %c3_108 = arith.constant 3 : index
    %c0_109 = arith.constant 0 : index
    %c0_110 = arith.constant 0 : index
    %c0_111 = arith.constant 0 : index
    %147 = vector.load %arg7[%c0_107, %c3_108, %c0_109, %c0_110, %c0_111] : memref<1x4x1x32x32xf32, #tpu.memory_space<vmem>>, vector<1x1x1x32x32xf32>
    %148 = vector.shape_cast %147 : vector<1x1x1x32x32xf32> to vector<32x32xf32>
    %149 = arith.addf %146, %148 : vector<32x32xf32>
    %c3_112 = arith.constant 3 : index
    %150 = memref.load %arg3[%c3_112] : memref<4xf32, #tpu.memory_space<smem>>
    %151 = vector.broadcast %150 : f32 to vector<32x32xf32>
    %152 = arith.addf %149, %151 : vector<32x32xf32>
    %c3_113 = arith.constant 3 : index
    %153 = memref.load %arg4[%c3_113] : memref<4xf32, #tpu.memory_space<smem>>
    %154 = vector.broadcast %153 : f32 to vector<32x32xf32>
    %155 = arith.mulf %152, %154 : vector<32x32xf32>
    %c3_114 = arith.constant 3 : index
    %156 = memref.load %arg5[%c3_114] : memref<4xf32, #tpu.memory_space<smem>>
    %157 = vector.broadcast %156 : f32 to vector<32x32xf32>
    %158 = arith.addf %155, %157 : vector<32x32xf32>
    %cst_115 = arith.constant 0.000000e+00 : f32
    %159 = vector.broadcast %cst_115 : f32 to vector<32x32xf32>
    %160 = arith.cmpf ogt, %158, %159 : vector<32x32xf32>
    %cst_116 = arith.constant 0.000000e+00 : f32
    %161 = vector.broadcast %cst_116 : f32 to vector<32x32xf32>
    %162 = arith.minimumf %158, %161 : vector<32x32xf32>
    %163 = math.exp %162 : vector<32x32xf32>
    %cst_117 = arith.constant 1.000000e+00 : f32
    %164 = vector.broadcast %cst_117 : f32 to vector<32x32xf32>
    %165 = arith.subf %163, %164 : vector<32x32xf32>
    %166 = arith.select %160, %158, %165 : vector<32x32xi1>, vector<32x32xf32>
    %c0_118 = arith.constant 0 : index
    %c3_119 = arith.constant 3 : index
    %c0_120 = arith.constant 0 : index
    %c0_121 = arith.constant 0 : index
    %c0_122 = arith.constant 0 : index
    %167 = vector.load %arg10[%c0_118, %c3_119, %c0_120, %c0_121, %c0_122] : memref<1x4x1x32x32xf32, #tpu.memory_space<vmem>>, vector<1x1x1x32x32xf32>
    %168 = vector.shape_cast %167 : vector<1x1x1x32x32xf32> to vector<32x32xf32>
    %169 = vector.shape_cast %166 : vector<32x32xf32> to vector<1x1x1x32x32xf32>
    tpu.vector_store %arg10[%c0_118, %c3_119, %c0_120, %c0_121, %c0_122], %169 {strides = array<i32>} : memref<1x4x1x32x32xf32, #tpu.memory_space<vmem>>, vector<1x1x1x32x32xf32>,
    return
  }
  func.func @transform_0(%arg0: i32, %arg1: i32) -> (i32, i32) {
    %c0_i32 = arith.constant 0 : i32
    %c0_i32_0 = arith.constant 0 : i32
    %c0_i32_1 = arith.constant 0 : i32
    return %c0_i32, %c0_i32_0 : i32, i32
  }
  func.func @transform_1(%arg0: i32, %arg1: i32) -> i32 {
    %c0_i32 = arith.constant 0 : i32
    %c0_i32_0 = arith.constant 0 : i32
    return %c0_i32 : i32
  }
  func.func @transform_2(%arg0: i32, %arg1: i32) -> i32 {
    %c0_i32 = arith.constant 0 : i32
    %c0_i32_0 = arith.constant 0 : i32
    return %c0_i32 : i32
  }
  func.func @transform_3(%arg0: i32, %arg1: i32) -> i32 {
    %c0_i32 = arith.constant 0 : i32
    %c0_i32_0 = arith.constant 0 : i32
    return %c0_i32 : i32
  }
  func.func @transform_4(%arg0: i32, %arg1: i32) -> (i32, i32, i32, i32, i32) {
    %c0_i32 = arith.constant 0 : i32
    %c0_i32_0 = arith.constant 0 : i32
    %c0_i32_1 = arith.constant 0 : i32
    %c0_i32_2 = arith.constant 0 : i32
    return %arg0, %c0_i32, %arg1, %c0_i32_0, %c0_i32_1 : i32, i32, i32, i32, i32
  }
  func.func @transform_5(%arg0: i32, %arg1: i32) -> (i32, i32, i32, i32, i32) {
    %c0_i32 = arith.constant 0 : i32
    %c0_i32_0 = arith.constant 0 : i32
    %c0_i32_1 = arith.constant 0 : i32
    %c0_i32_2 = arith.constant 0 : i32
    return %arg0, %c0_i32, %arg1, %c0_i32_0, %c0_i32_1 : i32, i32, i32, i32, i32
  }
  func.func @transform_6(%arg0: i32, %arg1: i32) -> (i32, i32) {
    %c0_i32 = arith.constant 0 : i32
    %c0_i32_0 = arith.constant 0 : i32
    %c0_i32_1 = arith.constant 0 : i32
    return %c0_i32, %c0_i32_0 : i32, i32
  }
  func.func @transform_7(%arg0: i32, %arg1: i32) -> (i32, i32) {
    %c0_i32 = arith.constant 0 : i32
    %c0_i32_0 = arith.constant 0 : i32
    %c0_i32_1 = arith.constant 0 : i32
    return %c0_i32, %c0_i32_0 : i32, i32
  }
  func.func @transform_8(%arg0: i32, %arg1: i32) -> (i32, i32, i32, i32, i32) {
    %c0_i32 = arith.constant 0 : i32
    %c0_i32_0 = arith.constant 0 : i32
    %c0_i32_1 = arith.constant 0 : i32
    %c0_i32_2 = arith.constant 0 : i32
    return %arg0, %c0_i32, %arg1, %c0_i32_0, %c0_i32_1 : i32, i32, i32, i32, i32
  }
}

</mosaic_0001>

<llo_original>
// kernel: upsample_mod_forward.2
$region0: #{upsample_mod_forward.2}
  #allocation0 [shape = 'u32[]', space=smem, size = 0x4, offset = 0x4, fixed_abs, tag = 'smem constant byte address 0x4 - core index']
  #allocation1 [shape = 'u32[144,128]{1,0:T(1,128)}', space=vmem, size = 0x12000, scoped, tag = 'internal scratch']
  %s0 = inlined_call_operand.vmem [shape: f32[4,4], index: 0, kind: input, shape index: {}]
  %s1 = inlined_call_operand.vmem [shape: f32[4], index: 1, kind: input, shape index: {}]
  %s2 = inlined_call_operand.vmem [shape: f32[2,4,4,16,16], index: 2, kind: input, shape index: {}]
  %s3 = inlined_call_operand.vmem [shape: f32[2,4,4,32,32], index: 3, kind: input, shape index: {}]
  %s4 = inlined_call_operand.vmem [shape: f32[16,32], index: 4, kind: input, shape index: {}]
  %s5 = inlined_call_operand.vmem [shape: f32[32,16], index: 5, kind: input, shape index: {}]
  %s6 = inlined_call_operand.vmem [shape: f32[2,4,32], index: 6, kind: output, shape index: {0}]
  %s7 = inlined_call_operand.vmem [shape: f32[2,4,32], index: 7, kind: output, shape index: {1}]
  %8 = xla_tuple %s6, %s7
  %s9 = sld [smem:[#allocation0]]
  $region153: #{upsample_mod_forward.2} parent=0
    _
  %s11 = ssub.s32 1, %s9
  %s12 = scalar_select 0, %s11, %s9
  $region1: #{upsample_mod_forward.2} parent=0
    #allocation2 [shape = 'u8[2048]{0}', space=smem, size = 0x800, scoped, tag = 'input window, operand 0, single buffered']
    #allocation3 [shape = 's32[2]{0}', space=sflag, size = 0x8, scoped, tag = 'scoped memory for upsample_mod_forward.2']
    #allocation4 [shape = 'u8[512]{0}', space=smem, size = 0x200, scoped, tag = 'input window, operand 1, single buffered']
    #allocation5 [shape = 's32[1]{0}', space=sflag, size = 0x4, scoped, tag = 'scoped memory for upsample_mod_forward.2']
    #allocation6 [shape = 'u8[65536]{0}', space=vmem, size = 0x10000, scoped, tag = 'input window, operand 2']
    #allocation7 [shape = 'u8[131072]{0}', space=vmem, size = 0x20000, scoped, tag = 'input window, operand 3']
    %13 = vsyncpa [#allocation3], 0
    %14 = vsyncpa [#allocation5], 0
    loop: start=0, step=1, limit=10
    $region2: #{upsample_mod_forward.2} parent=1 // loop_pre_header
      _
    $region3: #{upsample_mod_forward.2} parent=1 // loop_header
      %s16 = sphi 0, %s20
      %p17 = scmp.ge.s32.totalorder %s16, 10
      %s23 = sphi 0, %s35
      %s24 = sphi 0, %s31
      %s25 = sphi 0, %s23
      %s26 = sphi 0, %s24
      %s27 = sphi 0, %s25
      %s28 = sphi 0, %s26
      %s36 = sphi 0, %s36
      %s38 = sphi 0, %s36
      %s39 = sphi 0, %s38
      %s53 = sphi 0, %s39
      %s57 = sphi 0, %s57
      %s59 = sphi 0, %s57
      %s60 = sphi 0, %s59
      %s74 = sphi 0, %s60
      %s82 = sphi 0, %s84
      %s85 = sphi 0, %s82
      %s86 = sphi 0, %s85
      %s102 = sphi 0, %s86
      %s110 = sphi 0, %s112
      %s113 = sphi 0, %s110
      %s114 = sphi 0, %s113
      %s130 = sphi 0, %s114
      %s134 = sphi 0, %s134
      %s136 = sphi 0, %s134
      %s137 = sphi 0, %s136
      %s151 = sphi 0, %s137
      %s155 = sphi 0, %s155
      %s157 = sphi 0, %s155
      %s158 = sphi 0, %s157
      %s172 = sphi 0, %s158
      %s178 = sphi 0, %s180
      %s181 = sphi 0, %s178
      %s182 = sphi 0, %s181
      %s198 = sphi 0, %s182
      %s204 = sphi 0, %s206
      %s207 = sphi 0, %s204
      %s208 = sphi 0, %s207
      %s224 = sphi 0, %s208
    $region4: #{upsample_mod_forward.2} parent=1 // loop_header_branch
      %19 = sbr.rel (%p17) target = $region8
    $region5: #{upsample_mod_forward.2} parent=1 // loop_body
      %s21 = ssub.s32 %s16, 1
      %s22 = ssub.s32 %s16, 2
      %s29 = sadd.s32 1, %s24
      %p30 = scmp.ge.s32.totalorder %s29, 4
      %s31 = scalar_select %p30, 0, %s29
      %s32 = sadd.s32 1, %s23
      %s33 = scalar_select %p30, %s32, %s23
      %p34 = scmp.ge.s32.totalorder %s33, 2
      %s35 = scalar_select %p34, 0, %s33
      %s37 = sadd.s32 %s36, 1
      %p40 = scmp.eq.s32.totalorder %s16, 7
      %p41 = scmp.ne.s32.totalorder %s36, %s38
      %p42 = scmp.eq.s32.totalorder %s16, 0
      %p43 = por %p41, %p42
      %p44 = scmp.ne.s32.totalorder %s36, %s38
      %p45 = scmp.eq.s32.totalorder %s21, 7
      %p46 = por %p44, %p45
      %p47 = scmp.ne.s32.totalorder %s38, %s39
      %p48 = scmp.eq.s32.totalorder %s21, 0
      %p49 = por %p47, %p48
      %p50 = scmp.ne.s32.totalorder %s38, %s39
      %p51 = scmp.eq.s32.totalorder %s22, 7
      %p52 = por %p50, %p51
      %p54 = scmp.ne.s32.totalorder %s39, %s53
      %p55 = scmp.eq.s32.totalorder %s22, 0
      %p56 = por %p54, %p55
      %s58 = sadd.s32 %s57, 1
      %p61 = scmp.eq.s32.totalorder %s16, 7
      %p62 = scmp.ne.s32.totalorder %s57, %s59
      %p63 = scmp.eq.s32.totalorder %s16, 0
      %p64 = por %p62, %p63
      %p65 = scmp.ne.s32.totalorder %s57, %s59
      %p66 = scmp.eq.s32.totalorder %s21, 7
      %p67 = por %p65, %p66
      %p68 = scmp.ne.s32.totalorder %s59, %s60
      %p69 = scmp.eq.s32.totalorder %s21, 0
      %p70 = por %p68, %p69
      %p71 = scmp.ne.s32.totalorder %s59, %s60
      %p72 = scmp.eq.s32.totalorder %s22, 7
      %p73 = por %p71, %p72
      %p75 = scmp.ne.s32.totalorder %s60, %s74
      %p76 = scmp.eq.s32.totalorder %s22, 0
      %p77 = por %p75, %p76
      %s78 = ssub.s32 %s23, %s35
      %s79 = ssub.s32 %s24, %s31
      %s80 = sor.u32 %s78, %s79
      %p81 = scmp.eq.s32.totalorder %s80, 0
      %s83 = sadd.s32 %s82, 1
      %s84 = scalar_select %p81, %s82, %s83
      %p87 = pneg %p81
      %p88 = scmp.eq.s32.totalorder %s16, 7
      %p89 = por %p87, %p88
      %p90 = scmp.ne.s32.totalorder %s82, %s85
      %p91 = scmp.eq.s32.totalorder %s16, 0
      %p92 = por %p90, %p91
      %p93 = scmp.ne.s32.totalorder %s82, %s85
      %p94 = scmp.eq.s32.totalorder %s21, 7
      %p95 = por %p93, %p94
      %p96 = scmp.ne.s32.totalorder %s85, %s86
      %p97 = scmp.eq.s32.totalorder %s21, 0
      %p98 = por %p96, %p97
      %p99 = scmp.ne.s32.totalorder %s85, %s86
      %p100 = scmp.eq.s32.totalorder %s22, 7
      %p101 = por %p99, %p100
      %p103 = scmp.ne.s32.totalorder %s86, %s102
      %p104 = scmp.eq.s32.totalorder %s22, 0
      %p105 = por %p103, %p104
      %s106 = ssub.s32 %s23, %s35
      %s107 = ssub.s32 %s24, %s31
      %s108 = sor.u32 %s106, %s107
      %p109 = scmp.eq.s32.totalorder %s108, 0
      %s111 = sadd.s32 %s110, 1
      %s112 = scalar_select %p109, %s110, %s111
      %p115 = pneg %p109
      %p116 = scmp.eq.s32.totalorder %s16, 7
      %p117 = por %p115, %p116
      %p118 = scmp.ne.s32.totalorder %s110, %s113
      %p119 = scmp.eq.s32.totalorder %s16, 0
      %p120 = por %p118, %p119
      %p121 = scmp.ne.s32.totalorder %s110, %s113
      %p122 = scmp.eq.s32.totalorder %s21, 7
      %p123 = por %p121, %p122
      %p124 = scmp.ne.s32.totalorder %s113, %s114
      %p125 = scmp.eq.s32.totalorder %s21, 0
      %p126 = por %p124, %p125
      %p127 = scmp.ne.s32.totalorder %s113, %s114
      %p128 = scmp.eq.s32.totalorder %s22, 7
      %p129 = por %p127, %p128
      %p131 = scmp.ne.s32.totalorder %s114, %s130
      %p132 = scmp.eq.s32.totalorder %s22, 0
      %p133 = por %p131, %p132
      %s135 = sadd.s32 %s134, 1
      %p138 = scmp.eq.s32.totalorder %s16, 7
      %p139 = scmp.ne.s32.totalorder %s134, %s136
      %p140 = scmp.eq.s32.totalorder %s16, 0
      %p141 = por %p139, %p140
      %p142 = scmp.ne.s32.totalorder %s134, %s136
      %p143 = scmp.eq.s32.totalorder %s21, 7
      %p144 = por %p142, %p143
      %p145 = scmp.ne.s32.totalorder %s136, %s137
      %p146 = scmp.eq.s32.totalorder %s21, 0
      %p147 = por %p145, %p146
      %p148 = scmp.ne.s32.totalorder %s136, %s137
      %p149 = scmp.eq.s32.totalorder %s22, 7
      %p150 = por %p148, %p149
      %p152 = scmp.ne.s32.totalorder %s137, %s151
      %p153 = scmp.eq.s32.totalorder %s22, 0
      %p154 = por %p152, %p153
      %s156 = sadd.s32 %s155, 1
      %p159 = scmp.eq.s32.totalorder %s16, 7
      %p160 = scmp.ne.s32.totalorder %s155, %s157
      %p161 = scmp.eq.s32.totalorder %s16, 0
      %p162 = por %p160, %p161
      %p163 = scmp.ne.s32.totalorder %s155, %s157
      %p164 = scmp.eq.s32.totalorder %s21, 7
      %p165 = por %p163, %p164
      %p166 = scmp.ne.s32.totalorder %s157, %s158
      %p167 = scmp.eq.s32.totalorder %s21, 0
      %p168 = por %p166, %p167
      %p169 = scmp.ne.s32.totalorder %s157, %s158
      %p170 = scmp.eq.s32.totalorder %s22, 7
      %p171 = por %p169, %p170
      %p173 = scmp.ne.s32.totalorder %s158, %s172
      %p174 = scmp.eq.s32.totalorder %s22, 0
      %p175 = por %p173, %p174
      %s176 = ssub.s32 %s23, %s35
      %p177 = scmp.eq.s32.totalorder %s176, 0
      %s179 = sadd.s32 %s178, 1
      %s180 = scalar_select %p177, %s178, %s179
      %p183 = pneg %p177
      %p184 = scmp.eq.s32.totalorder %s16, 7
      %p185 = por %p183, %p184
      %p186 = scmp.ne.s32.totalorder %s178, %s181
      %p187 = scmp.eq.s32.totalorder %s16, 0
      %p188 = por %p186, %p187
      %p189 = scmp.ne.s32.totalorder %s178, %s181
      %p190 = scmp.eq.s32.totalorder %s21, 7
      %p191 = por %p189, %p190
      %p192 = scmp.ne.s32.totalorder %s181, %s182
      %p193 = scmp.eq.s32.totalorder %s21, 0
      %p194 = por %p192, %p193
      %p195 = scmp.ne.s32.totalorder %s181, %s182
      %p196 = scmp.eq.s32.totalorder %s22, 7
      %p197 = por %p195, %p196
      %p199 = scmp.ne.s32.totalorder %s182, %s198
      %p200 = scmp.eq.s32.totalorder %s22, 0
      %p201 = por %p199, %p200
      %s202 = ssub.s32 %s23, %s35
      %p203 = scmp.eq.s32.totalorder %s202, 0
      %s205 = sadd.s32 %s204, 1
      %s206 = scalar_select %p203, %s204, %s205
      %p209 = pneg %p203
      %p210 = scmp.eq.s32.totalorder %s16, 7
      %p211 = por %p209, %p210
      %p212 = scmp.ne.s32.totalorder %s204, %s207
      %p213 = scmp.eq.s32.totalorder %s16, 0
      %p214 = por %p212, %p213
      %p215 = scmp.ne.s32.totalorder %s204, %s207
      %p216 = scmp.eq.s32.totalorder %s21, 7
      %p217 = por %p215, %p216
      %p218 = scmp.ne.s32.totalorder %s207, %s208
      %p219 = scmp.eq.s32.totalorder %s21, 0
      %p220 = por %p218, %p219
      %p221 = scmp.ne.s32.totalorder %s207, %s208
      %p222 = scmp.eq.s32.totalorder %s22, 7
      %p223 = por %p221, %p222
      %p225 = scmp.ne.s32.totalorder %s208, %s224
      %p226 = scmp.eq.s32.totalorder %s22, 0
      %p227 = por %p225, %p226
      %p228 = scmp.le.s32.totalorder 1, %s16
      %p229 = scmp.lt.s32.totalorder %s16, 9
      %p230 = pnand %p228, %p229
      %p231 = pneg %p230
      // Predicated region
      $region9: #{upsample_mod_forward.2} parent=5 // pred_check
        _
      $region10: #{upsample_mod_forward.2} parent=5 // pred_check_branch
        %233 = sbr.rel (%p230) target = $region12
      $region11: #{upsample_mod_forward.2} parent=5 // pred_region
        %s234 = ssub.s32 %s16, 1
        // Predicated region
        $region13: #{upsample_mod_forward.2} parent=11 // pred_check
          %p235 = pneg %p49
        $region14: #{upsample_mod_forward.2} parent=11 // pred_check_branch
          %237 = sbr.rel (%p235) target = $region16
        $region15: #{upsample_mod_forward.2} parent=11 // pred_region
          %s239 = ssub.s32 64, 64
          %240 = vsyncadd [#allocation3], %s239
          %s242 = sshll.u32 %s0, 4
          %s243 = int_to_ptr.vmem [resolvable:$true] %s242
          %245 = dma.vmem_to_smem %s243, 64, [#allocation2], [#allocation3]
        $region16: #{upsample_mod_forward.2} parent=11 // pred_fallthru
          _
        // Predicated region
        $region17: #{upsample_mod_forward.2} parent=11 // pred_check
          %p246 = pneg %p70
        $region18: #{upsample_mod_forward.2} parent=11 // pred_check_branch
          %248 = sbr.rel (%p246) target = $region20
        $region19: #{upsample_mod_forward.2} parent=11 // pred_region
          %s250 = ssub.s32 16, 16
          %251 = vsyncadd [#allocation5], %s250
          %s253 = sshll.u32 %s1, 4
          %s254 = int_to_ptr.vmem [resolvable:$true] %s253
          %256 = dma.vmem_to_smem %s254, 16, [#allocation4], [#allocation5]
        $region20: #{upsample_mod_forward.2} parent=11 // pred_fallthru
          _
        // Predicated region
        $region21: #{upsample_mod_forward.2} parent=11 // pred_check
          %p257 = pneg %p147
        $region22: #{upsample_mod_forward.2} parent=11 // pred_check_branch
          %259 = sbr.rel (%p257) target = $region24
        $region23: #{upsample_mod_forward.2} parent=11 // pred_region
          _
        $region24: #{upsample_mod_forward.2} parent=11 // pred_fallthru
          _
        // Predicated region
        $region25: #{upsample_mod_forward.2} parent=11 // pred_check
          %p260 = pneg %p168
        $region26: #{upsample_mod_forward.2} parent=11 // pred_check_branch
          %262 = sbr.rel (%p260) target = $region28
        $region27: #{upsample_mod_forward.2} parent=11 // pred_region
          _
        $region28: #{upsample_mod_forward.2} parent=11 // pred_fallthru
          _
      $region12: #{upsample_mod_forward.2} parent=5 // pred_fallthru
        _
      %p263 = scmp.lt.s32.totalorder %s16, 8
      // Predicated region
      $region29: #{upsample_mod_forward.2} parent=5 // pred_check
        %p264 = pneg %p263
      $region30: #{upsample_mod_forward.2} parent=5 // pred_check_branch
        %266 = sbr.rel (%p264) target = $region32
      $region31: #{upsample_mod_forward.2} parent=5 // pred_region
        // Predicated region
        $region33: #{upsample_mod_forward.2} parent=31 // pred_check
          %p267 = pneg %p92
        $region34: #{upsample_mod_forward.2} parent=31 // pred_check_branch
          %269 = sbr.rel (%p267) target = $region36
        $region35: #{upsample_mod_forward.2} parent=31 // pred_region
          %s270 = sand.u32 %s82, 1
          %s271 = sand.u32 %s82, 1
          %s272 = smul.addr %s271, 64
          %s273 = scalar_lea.vmem [#allocation6], %s272
          %s274 = smul.addr %s24, 2
          %s275 = smul.addr %s23, 32
          %s276 = sadd.s32 %s274, %s275
          %s277 = smul.addr %s276, 8
          %s278 = scalar_lea.vmem %s2, %s277
          // Predicated region
          $region37: #{upsample_mod_forward.2} parent=35 // pred_check
            _
          $region38: #{upsample_mod_forward.2} parent=35 // pred_check_branch
            %280 = sbr.rel (0) target = $region40
          $region39: #{upsample_mod_forward.2} parent=35 // pred_region
            // Predicated region
            $region41: #{upsample_mod_forward.2} parent=39 // pred_check
              _
            $region42: #{upsample_mod_forward.2} parent=39 // pred_check_branch
              %282 = sbr.rel (0) target = $region44
            $region43: #{upsample_mod_forward.2} parent=39 // pred_region
              // Predicated region
              $region56: #{upsample_mod_forward.2} parent=43 // pred_check
                _
              $region57: #{upsample_mod_forward.2} parent=43 // pred_check_branch
                %312 = sbr.rel (0) target = $region59
              $region58: #{upsample_mod_forward.2} parent=43 // pred_region
                loop: start=0, step=1, limit=1
                $region60: #{upsample_mod_forward.2} parent=58 // loop_pre_header
                  _
                $region61: #{upsample_mod_forward.2} parent=58 // loop_header
                  %s314 = sphi 0, %s318
                  %p315 = scmp.ge.s32.totalorder %s314, 1
                  %s319 = sphi %s278, %s278
                  %s320 = sphi %s273, %s273
                $region62: #{upsample_mod_forward.2} parent=58 // loop_header_branch
                  %317 = sbr.rel (%p315) target = $region66
                $region63: #{upsample_mod_forward.2} parent=58 // loop_body
                  %v321 = vld [vmem:[%s319] sm:$0xff]
                  %322 = vst [vmem:[%s320] sm:$0xff] %v321
                  %v323 = vld [vmem:[%s319 + $0x8] sm:$0xff]
                  %324 = vst [vmem:[%s320 + $0x8] sm:$0xff] %v323
                  %v325 = vld [vmem:[%s319 + $0x40] sm:$0xff]
                  %326 = vst [vmem:[%s320 + $0x10] sm:$0xff] %v325
                  %v327 = vld [vmem:[%s319 + $0x48] sm:$0xff]
                  %328 = vst [vmem:[%s320 + $0x18] sm:$0xff] %v327
                  %v329 = vld [vmem:[%s319 + $0x80] sm:$0xff]
                  %330 = vst [vmem:[%s320 + $0x20] sm:$0xff] %v329
                  %v331 = vld [vmem:[%s319 + $0x88] sm:$0xff]
                  %332 = vst [vmem:[%s320 + $0x28] sm:$0xff] %v331
                  %v333 = vld [vmem:[%s319 + $0xc0] sm:$0xff]
                  %334 = vst [vmem:[%s320 + $0x30] sm:$0xff] %v333
                  %v335 = vld [vmem:[%s319 + $0xc8] sm:$0xff]
                  %336 = vst [vmem:[%s320 + $0x38] sm:$0xff] %v335
                $region64: #{upsample_mod_forward.2} parent=58 // loop_footer
                  %s318 = sadd.s32 1, %s314
                $region65: #{upsample_mod_forward.2} parent=58 // loop_footer_branch
                  %313 = sbr.rel target = $region61
                $region66: #{upsample_mod_forward.2} parent=58 // loop_exit
                  _
              $region59: #{upsample_mod_forward.2} parent=43 // pred_fallthru
                _
              // Predicated region
              $region67: #{upsample_mod_forward.2} parent=43 // pred_check
                _
              $region68: #{upsample_mod_forward.2} parent=43 // pred_check_branch
                %338 = sbr.rel target = $region70
              $region69: #{upsample_mod_forward.2} parent=43 // pred_region
                _
              $region70: #{upsample_mod_forward.2} parent=43 // pred_fallthru
                _
            $region44: #{upsample_mod_forward.2} parent=39 // pred_fallthru
              _
            // Predicated region
            $region45: #{upsample_mod_forward.2} parent=39 // pred_check
              _
            $region46: #{upsample_mod_forward.2} parent=39 // pred_check_branch
              %284 = sbr.rel target = $region48
            $region47: #{upsample_mod_forward.2} parent=39 // pred_region
              %s286 = ssub.s32 256, 1
              loop: start=0, step=1, limit=1
              $region49: #{upsample_mod_forward.2} parent=47 // loop_pre_header
                _
              $region50: #{upsample_mod_forward.2} parent=47 // loop_header
                %s288 = sphi 0, %s292
                %p289 = scmp.ge.s32.totalorder %s288, 1
                %s293 = sphi %s278, %s278
                %s294 = sphi %s273, %s273
              $region51: #{upsample_mod_forward.2} parent=47 // loop_header_branch
                %291 = sbr.rel (%p289) target = $region55
              $region52: #{upsample_mod_forward.2} parent=47 // loop_body
                %v295 = vld [vmem:[%s293] sm:%s286]
                %296 = vst [vmem:[%s294] sm:%s286] %v295
                %v297 = vld [vmem:[%s293 + $0x8] sm:%s286]
                %298 = vst [vmem:[%s294 + $0x8] sm:%s286] %v297
                %v299 = vld [vmem:[%s293 + $0x40] sm:%s286]
                %300 = vst [vmem:[%s294 + $0x10] sm:%s286] %v299
                %v301 = vld [vmem:[%s293 + $0x48] sm:%s286]
                %302 = vst [vmem:[%s294 + $0x18] sm:%s286] %v301
                %v303 = vld [vmem:[%s293 + $0x80] sm:%s286]
                %304 = vst [vmem:[%s294 + $0x20] sm:%s286] %v303
                %v305 = vld [vmem:[%s293 + $0x88] sm:%s286]
                %306 = vst [vmem:[%s294 + $0x28] sm:%s286] %v305
                %v307 = vld [vmem:[%s293 + $0xc0] sm:%s286]
                %308 = vst [vmem:[%s294 + $0x30] sm:%s286] %v307
                %v309 = vld [vmem:[%s293 + $0xc8] sm:%s286]
                %310 = vst [vmem:[%s294 + $0x38] sm:%s286] %v309
              $region53: #{upsample_mod_forward.2} parent=47 // loop_footer
                %s292 = sadd.s32 1, %s288
              $region54: #{upsample_mod_forward.2} parent=47 // loop_footer_branch
                %287 = sbr.rel target = $region50
              $region55: #{upsample_mod_forward.2} parent=47 // loop_exit
                _
            $region48: #{upsample_mod_forward.2} parent=39 // pred_fallthru
              _
          $region40: #{upsample_mod_forward.2} parent=35 // pred_fallthru
            _
          %339 = vnop
        $region36: #{upsample_mod_forward.2} parent=31 // pred_fallthru
          _
        // Predicated region
        $region71: #{upsample_mod_forward.2} parent=31 // pred_check
          %p340 = pneg %p120
        $region72: #{upsample_mod_forward.2} parent=31 // pred_check_branch
          %342 = sbr.rel (%p340) target = $region74
        $region73: #{upsample_mod_forward.2} parent=31 // pred_region
          %s343 = sand.u32 %s110, 1
          %s344 = sand.u32 %s110, 1
          %s345 = smul.addr %s344, 128
          %s346 = scalar_lea.vmem [#allocation7], %s345
          %s347 = smul.addr %s24, 4
          %s348 = smul.addr %s23, 64
          %s349 = sadd.s32 %s347, %s348
          %s350 = smul.addr %s349, 8
          %s351 = scalar_lea.vmem %s3, %s350
          // Predicated region
          $region75: #{upsample_mod_forward.2} parent=73 // pred_check
            _
          $region76: #{upsample_mod_forward.2} parent=73 // pred_check_branch
            %353 = sbr.rel (0) target = $region78
          $region77: #{upsample_mod_forward.2} parent=73 // pred_region
            // Predicated region
            $region79: #{upsample_mod_forward.2} parent=77 // pred_check
              _
            $region80: #{upsample_mod_forward.2} parent=77 // pred_check_branch
              %355 = sbr.rel (0) target = $region82
            $region81: #{upsample_mod_forward.2} parent=77 // pred_region
              // Predicated region
              $region94: #{upsample_mod_forward.2} parent=81 // pred_check
                _
              $region95: #{upsample_mod_forward.2} parent=81 // pred_check_branch
                %401 = sbr.rel (0) target = $region97
              $region96: #{upsample_mod_forward.2} parent=81 // pred_region
                loop: start=0, step=1, limit=1
                $region98: #{upsample_mod_forward.2} parent=96 // loop_pre_header
                  _
                $region99: #{upsample_mod_forward.2} parent=96 // loop_header
                  %s403 = sphi 0, %s407
                  %p404 = scmp.ge.s32.totalorder %s403, 1
                  %s408 = sphi %s351, %s351
                  %s409 = sphi %s346, %s346
                $region100: #{upsample_mod_forward.2} parent=96 // loop_header_branch
                  %406 = sbr.rel (%p404) target = $region104
                $region101: #{upsample_mod_forward.2} parent=96 // loop_body
                  %v410 = vld [vmem:[%s408] sm:$0xff]
                  %411 = vst [vmem:[%s409] sm:$0xff] %v410
                  %v412 = vld [vmem:[%s408 + $0x8] sm:$0xff]
                  %413 = vst [vmem:[%s409 + $0x8] sm:$0xff] %v412
                  %v414 = vld [vmem:[%s408 + $0x10] sm:$0xff]
                  %415 = vst [vmem:[%s409 + $0x10] sm:$0xff] %v414
                  %v416 = vld [vmem:[%s408 + $0x18] sm:$0xff]
                  %417 = vst [vmem:[%s409 + $0x18] sm:$0xff] %v416
                  %v418 = vld [vmem:[%s408 + $0x80] sm:$0xff]
                  %419 = vst [vmem:[%s409 + $0x20] sm:$0xff] %v418
                  %v420 = vld [vmem:[%s408 + $0x88] sm:$0xff]
                  %421 = vst [vmem:[%s409 + $0x28] sm:$0xff] %v420
                  %v422 = vld [vmem:[%s408 + $0x90] sm:$0xff]
                  %423 = vst [vmem:[%s409 + $0x30] sm:$0xff] %v422
                  %v424 = vld [vmem:[%s408 + $0x98] sm:$0xff]
                  %425 = vst [vmem:[%s409 + $0x38] sm:$0xff] %v424
                  %v426 = vld [vmem:[%s408 + $0x100] sm:$0xff]
                  %427 = vst [vmem:[%s409 + $0x40] sm:$0xff] %v426
                  %v428 = vld [vmem:[%s408 + $0x108] sm:$0xff]
                  %429 = vst [vmem:[%s409 + $0x48] sm:$0xff] %v428
                  %v430 = vld [vmem:[%s408 + $0x110] sm:$0xff]
                  %431 = vst [vmem:[%s409 + $0x50] sm:$0xff] %v430
                  %v432 = vld [vmem:[%s408 + $0x118] sm:$0xff]
                  %433 = vst [vmem:[%s409 + $0x58] sm:$0xff] %v432
                  %v434 = vld [vmem:[%s408 + $0x180] sm:$0xff]
                  %435 = vst [vmem:[%s409 + $0x60] sm:$0xff] %v434
                  %v436 = vld [vmem:[%s408 + $0x188] sm:$0xff]
                  %437 = vst [vmem:[%s409 + $0x68] sm:$0xff] %v436
                  %v438 = vld [vmem:[%s408 + $0x190] sm:$0xff]
                  %439 = vst [vmem:[%s409 + $0x70] sm:$0xff] %v438
                  %v440 = vld [vmem:[%s408 + $0x198] sm:$0xff]
                  %441 = vst [vmem:[%s409 + $0x78] sm:$0xff] %v440
                $region102: #{upsample_mod_forward.2} parent=96 // loop_footer
                  %s407 = sadd.s32 1, %s403
                $region103: #{upsample_mod_forward.2} parent=96 // loop_footer_branch
                  %402 = sbr.rel target = $region99
                $region104: #{upsample_mod_forward.2} parent=96 // loop_exit
                  _
              $region97: #{upsample_mod_forward.2} parent=81 // pred_fallthru
                _
              // Predicated region
              $region105: #{upsample_mod_forward.2} parent=81 // pred_check
                _
              $region106: #{upsample_mod_forward.2} parent=81 // pred_check_branch
                %443 = sbr.rel target = $region108
              $region107: #{upsample_mod_forward.2} parent=81 // pred_region
                _
              $region108: #{upsample_mod_forward.2} parent=81 // pred_fallthru
                _
            $region82: #{upsample_mod_forward.2} parent=77 // pred_fallthru
              _
            // Predicated region
            $region83: #{upsample_mod_forward.2} parent=77 // pred_check
              _
            $region84: #{upsample_mod_forward.2} parent=77 // pred_check_branch
              %357 = sbr.rel target = $region86
            $region85: #{upsample_mod_forward.2} parent=77 // pred_region
              %s359 = ssub.s32 256, 1
              loop: start=0, step=1, limit=1
              $region87: #{upsample_mod_forward.2} parent=85 // loop_pre_header
                _
              $region88: #{upsample_mod_forward.2} parent=85 // loop_header
                %s361 = sphi 0, %s365
                %p362 = scmp.ge.s32.totalorder %s361, 1
                %s366 = sphi %s351, %s351
                %s367 = sphi %s346, %s346
              $region89: #{upsample_mod_forward.2} parent=85 // loop_header_branch
                %364 = sbr.rel (%p362) target = $region93
              $region90: #{upsample_mod_forward.2} parent=85 // loop_body
                %v368 = vld [vmem:[%s366] sm:%s359]
                %369 = vst [vmem:[%s367] sm:%s359] %v368
                %v370 = vld [vmem:[%s366 + $0x8] sm:%s359]
                %371 = vst [vmem:[%s367 + $0x8] sm:%s359] %v370
                %v372 = vld [vmem:[%s366 + $0x10] sm:%s359]
                %373 = vst [vmem:[%s367 + $0x10] sm:%s359] %v372
                %v374 = vld [vmem:[%s366 + $0x18] sm:%s359]
                %375 = vst [vmem:[%s367 + $0x18] sm:%s359] %v374
                %v376 = vld [vmem:[%s366 + $0x80] sm:%s359]
                %377 = vst [vmem:[%s367 + $0x20] sm:%s359] %v376
                %v378 = vld [vmem:[%s366 + $0x88] sm:%s359]
                %379 = vst [vmem:[%s367 + $0x28] sm:%s359] %v378
                %v380 = vld [vmem:[%s366 + $0x90] sm:%s359]
                %381 = vst [vmem:[%s367 + $0x30] sm:%s359] %v380
                %v382 = vld [vmem:[%s366 + $0x98] sm:%s359]
                %383 = vst [vmem:[%s367 + $0x38] sm:%s359] %v382
                %v384 = vld [vmem:[%s366 + $0x100] sm:%s359]
                %385 = vst [vmem:[%s367 + $0x40] sm:%s359] %v384
                %v386 = vld [vmem:[%s366 + $0x108] sm:%s359]
                %387 = vst [vmem:[%s367 + $0x48] sm:%s359] %v386
                %v388 = vld [vmem:[%s366 + $0x110] sm:%s359]
                %389 = vst [vmem:[%s367 + $0x50] sm:%s359] %v388
                %v390 = vld [vmem:[%s366 + $0x118] sm:%s359]
                %391 = vst [vmem:[%s367 + $0x58] sm:%s359] %v390
                %v392 = vld [vmem:[%s366 + $0x180] sm:%s359]
                %393 = vst [vmem:[%s367 + $0x60] sm:%s359] %v392
                %v394 = vld [vmem:[%s366 + $0x188] sm:%s359]
                %395 = vst [vmem:[%s367 + $0x68] sm:%s359] %v394
                %v396 = vld [vmem:[%s366 + $0x190] sm:%s359]
                %397 = vst [vmem:[%s367 + $0x70] sm:%s359] %v396
                %v398 = vld [vmem:[%s366 + $0x198] sm:%s359]
                %399 = vst [vmem:[%s367 + $0x78] sm:%s359] %v398
              $region91: #{upsample_mod_forward.2} parent=85 // loop_footer
                %s365 = sadd.s32 1, %s361
              $region92: #{upsample_mod_forward.2} parent=85 // loop_footer_branch
                %360 = sbr.rel target = $region88
              $region93: #{upsample_mod_forward.2} parent=85 // loop_exit
                _
            $region86: #{upsample_mod_forward.2} parent=77 // pred_fallthru
              _
          $region78: #{upsample_mod_forward.2} parent=73 // pred_fallthru
            _
          %444 = vnop
        $region74: #{upsample_mod_forward.2} parent=31 // pred_fallthru
          _
      $region32: #{upsample_mod_forward.2} parent=5 // pred_fallthru
        _
      %p445 = scmp.le.s32.totalorder 1, %s16
      %p446 = scmp.lt.s32.totalorder %s16, 9
      %p447 = pnand %p445, %p446
      %p448 = pneg %p447
      // Predicated region
      $region109: #{upsample_mod_forward.2} parent=5 // pred_check
        _
      $region110: #{upsample_mod_forward.2} parent=5 // pred_check_branch
        %450 = sbr.rel (%p447) target = $region112
      $region111: #{upsample_mod_forward.2} parent=5 // pred_region
        %s451 = ssub.s32 %s16, 1
        // Predicated region
        $region113: #{upsample_mod_forward.2} parent=111 // pred_check
          %p452 = pneg %p49
        $region114: #{upsample_mod_forward.2} parent=111 // pred_check_branch
          %454 = sbr.rel (%p452) target = $region116
        $region115: #{upsample_mod_forward.2} parent=111 // pred_region
          %455 = dma.done [#allocation3], 64
        $region116: #{upsample_mod_forward.2} parent=111 // pred_fallthru
          _
        // Predicated region
        $region117: #{upsample_mod_forward.2} parent=111 // pred_check
          %p456 = pneg %p70
        $region118: #{upsample_mod_forward.2} parent=111 // pred_check_branch
          %458 = sbr.rel (%p456) target = $region120
        $region119: #{upsample_mod_forward.2} parent=111 // pred_region
          %459 = dma.done [#allocation5], 16
        $region120: #{upsample_mod_forward.2} parent=111 // pred_fallthru
          _
        %s460 = sand.u32 %s85, 1
        %s461 = sand.u32 %s85, 1
        %s462 = smul.addr %s461, 64
        %s463 = scalar_lea.vmem [#allocation6], %s462
        // Predicated region
        $region121: #{upsample_mod_forward.2} parent=111 // pred_check
          %p464 = pneg %p98
        $region122: #{upsample_mod_forward.2} parent=111 // pred_check_branch
          %466 = sbr.rel (%p464) target = $region124
        $region123: #{upsample_mod_forward.2} parent=111 // pred_region
          _
        $region124: #{upsample_mod_forward.2} parent=111 // pred_fallthru
          _
        %s467 = sand.u32 %s113, 1
        %s468 = sand.u32 %s113, 1
        %s469 = smul.addr %s468, 128
        %s470 = scalar_lea.vmem [#allocation7], %s469
        // Predicated region
        $region125: #{upsample_mod_forward.2} parent=111 // pred_check
          %p471 = pneg %p126
        $region126: #{upsample_mod_forward.2} parent=111 // pred_check_branch
          %473 = sbr.rel (%p471) target = $region128
        $region127: #{upsample_mod_forward.2} parent=111 // pred_region
          _
        $region128: #{upsample_mod_forward.2} parent=111 // pred_fallthru
          _
        %474 = sfence
        %p475 = pneg %p49
        %p476 = pneg %p46
        %p477 = pneg %p70
        %p478 = pneg %p67
        %s479 = sand.u32 %s85, 1
        %s480 = sand.u32 %s85, 1
        %s481 = smul.addr %s480, 64
        %s482 = scalar_lea.vmem [#allocation6], %s481
        %p483 = pneg %p98
        %p484 = pneg %p95
        %s485 = sand.u32 %s113, 1
        %s486 = sand.u32 %s113, 1
        %s487 = smul.addr %s486, 128
        %s488 = scalar_lea.vmem [#allocation7], %s487
        %p489 = pneg %p126
        %p490 = pneg %p123
        %p491 = pneg %p147
        %p492 = pneg %p144
        %p493 = pneg %p168
        %p494 = pneg %p165
        %p495 = pneg %p194
        %p496 = pneg %p191
        %p497 = scmp.lt.s32.totalorder %s25, 1
        %s498 = scalar_select %p497, %s25, 1
        %s499 = smul.addr %s498, 4
        %s500 = scalar_lea.vmem %s6, %s499
        %p501 = pneg %p220
        %p502 = pneg %p217
        %p503 = scmp.lt.s32.totalorder %s25, 1
        %s504 = scalar_select %p503, %s25, 1
        %s505 = smul.addr %s504, 4
        %s506 = scalar_lea.vmem %s7, %s505
        %p507 = scmp.lt.s32.totalorder %s25, 1
        %s508 = scalar_select %p507, %s25, 1
        %s509 = smul.addr %s508, 4
        %s510 = scalar_lea.vmem %s6, %s509
        %p511 = scmp.lt.s32.totalorder %s25, 1
        %s512 = scalar_select %p511, %s25, 1
        %s513 = smul.addr %s512, 4
        %s514 = scalar_lea.vmem %s7, %s513
        %p515 = scmp.eq.s32.totalorder %s26, 0
        // Predicated region
        $region129: #{upsample_mod_forward.2} parent=111 // pred_check
          %p516 = pneg %p515
        $region130: #{upsample_mod_forward.2} parent=111 // pred_check_branch
          %518 = sbr.rel (%p516) target = $region132
        $region131: #{upsample_mod_forward.2} parent=111 // pred_region
          %vm519 = vcmask 257024
          %520 = vst.msk [vmem:[%s510] sm:$0xf] %vm519, 0.0
          %521 = vst.msk [vmem:[%s514] sm:$0xf] %vm519, 0.0
        $region132: #{upsample_mod_forward.2} parent=111 // pred_fallthru
          _
        %v522 = vld [vmem:[%s463] sm:$0xff]
        %v523 = vld [vmem:[%s463 + $0x8] sm:$0xff]
        %s524 = scalar_lea.vmem %s463, 16 [#allocation6]
        %v525 = vld [vmem:[%s524] sm:$0xff]
        %v526 = vld [vmem:[%s524 + $0x8] sm:$0xff]
        %s527 = scalar_lea.vmem %s463, 32 [#allocation6]
        %v528 = vld [vmem:[%s527] sm:$0xff]
        %v529 = vld [vmem:[%s527 + $0x8] sm:$0xff]
        %s530 = scalar_lea.vmem %s463, 48 [#allocation6]
        %v531 = vld [vmem:[%s530] sm:$0xff]
        %v532 = vld [vmem:[%s530 + $0x8] sm:$0xff]
        %v533 = vld [vmem:[%s4] sm:$0xff]
        %v534 = vld [vmem:[%s4 + $0x8] sm:$0xff]
        %v535 = vld [vmem:[%s5] sm:$0xff]
        %v536 = vld [vmem:[%s5 + $0x8] sm:$0xff]
        %v537 = vld [vmem:[%s5 + $0x10] sm:$0xff]
        %v538 = vld [vmem:[%s5 + $0x18] sm:$0xff]
        %s539 = sld [smem:[#allocation2]]
        %v540 = vstv %s539
        %v541 = vmul.f32 %v522, %v540
        %v542 = vmul.f32 %v523, %v540
        %s543 = sld [smem:[#allocation2 + $0x1]]
        %v544 = vstv %s543
        %v545 = vmul.f32 %v525, %v544
        %v546 = vmul.f32 %v526, %v544
        %v547 = vadd.f32 %v541, %v545
        %v548 = vadd.f32 %v542, %v546
        %s549 = sld [smem:[#allocation2 + $0x2]]
        %v550 = vstv %s549
        %v551 = vmul.f32 %v528, %v550
        %v552 = vmul.f32 %v529, %v550
        %v553 = vadd.f32 %v547, %v551
        %v554 = vadd.f32 %v548, %v552
        %s555 = sld [smem:[#allocation2 + $0x3]]
        %v556 = vstv %s555
        %v557 = vmul.f32 %v531, %v556
        %v558 = vmul.f32 %v532, %v556
        %v559 = vadd.f32 %v553, %v557
        %v560 = vadd.f32 %v554, %v558
        %vm561 = vcmask 130048
        %v563 = vsel %vm561, %v559, 0
        %v566 = vsel %vm561, %v560, 0
        %568 = vmatprep.subr.mxu0 0.0
        %569 = vmatpush1.msra.mxu0 0.0
        %570 = vmatprep.subr.mxu0 0.0
        %571 = vmatpush1.msra.mxu0 0.0
        %572 = vmatprep.subr.mxu0 0.0
        %573 = vmatpush1.msra.mxu0 0.0
        %574 = vmatprep.subr.mxu0 0.0
        %575 = vmatpush1.msra.mxu0 0.0
        %576 = vmatprep.subr.mxu0 0.0
        %577 = vmatpush1.msra.mxu0 0.0
        %578 = vmatprep.subr.mxu0 0.0
        %579 = vmatpush1.msra.mxu0 0.0
        %580 = vmatprep.subr.mxu0 0.0
        %581 = vmatpush1.msra.mxu0 0.0
        %582 = vmatprep.subr.mxu0 0.0
        %583 = vmatpush1.msra.mxu0 0.0
        %584 = vmatprep.subr.mxu0 0.0
        %585 = vmatpush1.msra.mxu0 0.0
        %586 = vmatprep.subr.mxu0 0.0
        %587 = vmatpush1.msra.mxu0 0.0
        %588 = vmatprep.subr.mxu0 0.0
        %589 = vmatpush1.msra.mxu0 0.0
        %590 = vmatprep.subr.mxu0 0.0
        %591 = vmatpush1.msra.mxu0 0.0
        %592 = vmatprep.subr.mxu0 0.0
        %593 = vmatpush1.msra.mxu0 0.0
        %594 = vmatprep.subr.mxu0 0.0
        %595 = vmatpush1.msra.mxu0 0.0
        %596 = vmatprep.subr.mxu0 0.0
        %597 = vmatpush1.msra.mxu0 %v534
        %598 = vmatprep.subr.mxu0 0.0
        %599 = vmatpush1.msra.mxu0 %v533
        %600 = vmatprep.subr.mxu0 0.0
        %601 = vmatpush2.msra.mxu0 0.0
        %602 = vmatprep.subr.mxu0 0.0
        %603 = vmatpush2.msra.mxu0 0.0
        %604 = vmatprep.subr.mxu0 0.0
        %605 = vmatpush2.msra.mxu0 0.0
        %606 = vmatprep.subr.mxu0 0.0
        %607 = vmatpush2.msra.mxu0 0.0
        %608 = vmatprep.subr.mxu0 0.0
        %609 = vmatpush2.msra.mxu0 0.0
        %610 = vmatprep.subr.mxu0 0.0
        %611 = vmatpush2.msra.mxu0 0.0
        %612 = vmatprep.subr.mxu0 0.0
        %613 = vmatpush2.msra.mxu0 0.0
        %614 = vmatprep.subr.mxu0 0.0
        %615 = vmatpush2.msra.mxu0 0.0
        %616 = vmatprep.subr.mxu0 0.0
        %617 = vmatpush2.msra.mxu0 0.0
        %618 = vmatprep.subr.mxu0 0.0
        %619 = vmatpush2.msra.mxu0 0.0
        %620 = vmatprep.subr.mxu0 0.0
        %621 = vmatpush2.msra.mxu0 0.0
        %622 = vmatprep.subr.mxu0 0.0
        %623 = vmatpush2.msra.mxu0 0.0
        %624 = vmatprep.subr.mxu0 0.0
        %625 = vmatpush2.msra.mxu0 0.0
        %626 = vmatprep.subr.mxu0 0.0
        %627 = vmatpush2.msra.mxu0 0.0
        %628 = vmatprep.subr.mxu0 0.0
        %629 = vmatpush2.msra.mxu0 0.0
        %630 = vmatprep.subr.mxu0 0.0
        %631 = vmatpush2.msra.mxu0 0.0
        %632 = vmatprep.mubr.f32.mxu0 0.0
        %633 = vmatmul.mubr.f32.gmra.mxu0 %v563
        %v634 = vpop.f32.mrf.mxu0
        %v635 = vadd.f32 0.0, %v634
        %v636 = vpop.f32.mrf.mxu0
        %637 = vmatprep.mubr.f32.mxu0 0.0
        %638 = vmatmul.mubr.f32.gmra.mxu0 %v566
        %v639 = vpop.f32.mrf.mxu0
        %v640 = vadd.f32 0.0, %v639
        %v641 = vpop.f32.mrf.mxu0
        %642 = vdwg.mxu0
        %v643 = vld [vmem:[%s470] sm:$0xff]
        %v644 = vld [vmem:[%s470 + $0x8] sm:$0xff]
        %v645 = vld [vmem:[%s470 + $0x10] sm:$0xff]
        %v646 = vld [vmem:[%s470 + $0x18] sm:$0xff]
        %v648 = vsel %vm561, %v535, 0
        %v651 = vsel %vm561, %v536, 0
        %v654 = vsel %vm561, %v537, 0
        %v657 = vsel %vm561, %v538, 0
        %659 = vmatprep.subr.mxu0 0.0
        %660 = vmatpush1.msra.mxu0 0.0
        %661 = vmatprep.subr.mxu0 0.0
        %662 = vmatpush1.msra.mxu0 0.0
        %663 = vmatprep.subr.mxu0 0.0
        %664 = vmatpush1.msra.mxu0 0.0
        %665 = vmatprep.subr.mxu0 0.0
        %666 = vmatpush1.msra.mxu0 0.0
        %667 = vmatprep.subr.mxu0 0.0
        %668 = vmatpush1.msra.mxu0 0.0
        %669 = vmatprep.subr.mxu0 0.0
        %670 = vmatpush1.msra.mxu0 0.0
        %671 = vmatprep.subr.mxu0 0.0
        %672 = vmatpush1.msra.mxu0 0.0
        %673 = vmatprep.subr.mxu0 0.0
        %674 = vmatpush1.msra.mxu0 0.0
        %675 = vmatprep.subr.mxu0 0.0
        %676 = vmatpush1.msra.mxu0 0.0
        %677 = vmatprep.subr.mxu0 0.0
        %678 = vmatpush1.msra.mxu0 0.0
        %679 = vmatprep.subr.mxu0 0.0
        %680 = vmatpush1.msra.mxu0 0.0
        %681 = vmatprep.subr.mxu0 0.0
        %682 = vmatpush1.msra.mxu0 0.0
        %683 = vmatprep.subr.mxu0 0.0
        %684 = vmatpush1.msra.mxu0 0.0
        %685 = vmatprep.subr.mxu0 0.0
        %686 = vmatpush1.msra.mxu0 0.0
        %687 = vmatprep.subr.mxu0 0.0
        %688 = vmatpush1.msra.mxu0 %v640
        %689 = vmatprep.subr.mxu0 0.0
        %690 = vmatpush1.msra.mxu0 %v635
        %691 = vmatprep.subr.mxu0 0.0
        %692 = vmatpush2.msra.mxu0 0.0
        %693 = vmatprep.subr.mxu0 0.0
        %694 = vmatpush2.msra.mxu0 0.0
        %695 = vmatprep.subr.mxu0 0.0
        %696 = vmatpush2.msra.mxu0 0.0
        %697 = vmatprep.subr.mxu0 0.0
        %698 = vmatpush2.msra.mxu0 0.0
        %699 = vmatprep.subr.mxu0 0.0
        %700 = vmatpush2.msra.mxu0 0.0
        %701 = vmatprep.subr.mxu0 0.0
        %702 = vmatpush2.msra.mxu0 0.0
        %703 = vmatprep.subr.mxu0 0.0
        %704 = vmatpush2.msra.mxu0 0.0
        %705 = vmatprep.subr.mxu0 0.0
        %706 = vmatpush2.msra.mxu0 0.0
        %707 = vmatprep.subr.mxu0 0.0
        %708 = vmatpush2.msra.mxu0 0.0
        %709 = vmatprep.subr.mxu0 0.0
        %710 = vmatpush2.msra.mxu0 0.0
        %711 = vmatprep.subr.mxu0 0.0
        %712 = vmatpush2.msra.mxu0 0.0
        %713 = vmatprep.subr.mxu0 0.0
        %714 = vmatpush2.msra.mxu0 0.0
        %715 = vmatprep.subr.mxu0 0.0
        %716 = vmatpush2.msra.mxu0 0.0
        %717 = vmatprep.subr.mxu0 0.0
        %718 = vmatpush2.msra.mxu0 0.0
        %719 = vmatprep.subr.mxu0 0.0
        %720 = vmatpush2.msra.mxu0 0.0
        %721 = vmatprep.subr.mxu0 0.0
        %722 = vmatpush2.msra.mxu0 0.0
        %723 = vmatprep.mubr.f32.mxu0 0.0
        %724 = vmatmul.mubr.f32.gmra.mxu0 %v648
        %v725 = vpop.f32.mrf.mxu0
        %v726 = vadd.f32 %v643, %v725
        %v727 = vpop.f32.mrf.mxu0
        %728 = vmatprep.mubr.f32.mxu0 0.0
        %729 = vmatmul.mubr.f32.gmra.mxu0 %v651
        %v730 = vpop.f32.mrf.mxu0
        %v731 = vadd.f32 %v644, %v730
        %v732 = vpop.f32.mrf.mxu0
        %733 = vmatprep.mubr.f32.mxu0 0.0
        %734 = vmatmul.mubr.f32.gmra.mxu0 %v654
        %v735 = vpop.f32.mrf.mxu0
        %v736 = vadd.f32 %v645, %v735
        %v737 = vpop.f32.mrf.mxu0
        %738 = vmatprep.mubr.f32.mxu0 0.0
        %739 = vmatmul.mubr.f32.gmra.mxu0 %v657
        %v740 = vpop.f32.mrf.mxu0
        %v741 = vadd.f32 %v646, %v740
        %v742 = vpop.f32.mrf.mxu0
        %743 = vdwg.mxu0
        %s744 = sld [smem:[#allocation4]]
        %v745 = vstv %s744
        %v746 = vadd.f32 %v726, %v745
        %v747 = vadd.f32 %v731, %v745
        %v748 = vadd.f32 %v736, %v745
        %v749 = vadd.f32 %v741, %v745
        %vm750 = vcmask 261120
        %v751 = vsel %vm750, %v746, 0.0
        %v752 = vsel %vm750, %v747, 0.0
        %v753 = vadd.f32 %v751, %v752
        %v754 = vsel %vm750, %v748, 0.0
        %v755 = vadd.f32 %v753, %v754
        %v756 = vsel %vm750, %v749, 0.0
        %v757 = vadd.f32 %v755, %v756
        %v758 = vrot.slane %v757, 4
        %v759 = vadd.f32 %v757, %v758
        %v760 = vrot.slane %v759, 2
        %v761 = vadd.f32 %v759, %v760
        %v762 = vrot.slane %v761, 1
        %v763 = vadd.f32 %v761, %v762
        %v764 = vmul.f32 %v746, %v746
        %v765 = vmul.f32 %v747, %v747
        %v766 = vmul.f32 %v748, %v748
        %v767 = vmul.f32 %v749, %v749
        %v768 = vsel %vm750, %v764, 0.0
        %v769 = vsel %vm750, %v765, 0.0
        %v770 = vadd.f32 %v768, %v769
        %v771 = vsel %vm750, %v766, 0.0
        %v772 = vadd.f32 %v770, %v771
        %v773 = vsel %vm750, %v767, 0.0
        %v774 = vadd.f32 %v772, %v773
        %v775 = vrot.slane %v774, 4
        %v776 = vadd.f32 %v774, %v775
        %v777 = vrot.slane %v776, 2
        %v778 = vadd.f32 %v776, %v777
        %v779 = vrot.slane %v778, 1
        %v780 = vadd.f32 %v778, %v779
        %s781 = sld [smem:[#allocation2 + $0x80]]
        %v782 = vstv %s781
        %v783 = vmul.f32 %v522, %v782
        %v784 = vmul.f32 %v523, %v782
        %s785 = sld [smem:[#allocation2 + $0x81]]
        %v786 = vstv %s785
        %v787 = vmul.f32 %v525, %v786
        %v788 = vmul.f32 %v526, %v786
        %v789 = vadd.f32 %v783, %v787
        %v790 = vadd.f32 %v784, %v788
        %s791 = sld [smem:[#allocation2 + $0x82]]
        %v792 = vstv %s791
        %v793 = vmul.f32 %v528, %v792
        %v794 = vmul.f32 %v529, %v792
        %v795 = vadd.f32 %v789, %v793
        %v796 = vadd.f32 %v790, %v794
        %s797 = sld [smem:[#allocation2 + $0x83]]
        %v798 = vstv %s797
        %v799 = vmul.f32 %v531, %v798
        %v800 = vmul.f32 %v532, %v798
        %v801 = vadd.f32 %v795, %v799
        %v802 = vadd.f32 %v796, %v800
        %v804 = vsel %vm561, %v801, 0
        %v807 = vsel %vm561, %v802, 0
        %809 = vmatprep.subr.mxu0 0.0
        %810 = vmatpush1.msra.mxu0 0.0
        %811 = vmatprep.subr.mxu0 0.0
        %812 = vmatpush1.msra.mxu0 0.0
        %813 = vmatprep.subr.mxu0 0.0
        %814 = vmatpush1.msra.mxu0 0.0
        %815 = vmatprep.subr.mxu0 0.0
        %816 = vmatpush1.msra.mxu0 0.0
        %817 = vmatprep.subr.mxu0 0.0
        %818 = vmatpush1.msra.mxu0 0.0
        %819 = vmatprep.subr.mxu0 0.0
        %820 = vmatpush1.msra.mxu0 0.0
        %821 = vmatprep.subr.mxu0 0.0
        %822 = vmatpush1.msra.mxu0 0.0
        %823 = vmatprep.subr.mxu0 0.0
        %824 = vmatpush1.msra.mxu0 0.0
        %825 = vmatprep.subr.mxu0 0.0
        %826 = vmatpush1.msra.mxu0 0.0
        %827 = vmatprep.subr.mxu0 0.0
        %828 = vmatpush1.msra.mxu0 0.0
        %829 = vmatprep.subr.mxu0 0.0
        %830 = vmatpush1.msra.mxu0 0.0
        %831 = vmatprep.subr.mxu0 0.0
        %832 = vmatpush1.msra.mxu0 0.0
        %833 = vmatprep.subr.mxu0 0.0
        %834 = vmatpush1.msra.mxu0 0.0
        %835 = vmatprep.subr.mxu0 0.0
        %836 = vmatpush1.msra.mxu0 0.0
        %837 = vmatprep.subr.mxu0 0.0
        %838 = vmatpush1.msra.mxu0 %v534
        %839 = vmatprep.subr.mxu0 0.0
        %840 = vmatpush1.msra.mxu0 %v533
        %841 = vmatprep.subr.mxu0 0.0
        %842 = vmatpush2.msra.mxu0 0.0
        %843 = vmatprep.subr.mxu0 0.0
        %844 = vmatpush2.msra.mxu0 0.0
        %845 = vmatprep.subr.mxu0 0.0
        %846 = vmatpush2.msra.mxu0 0.0
        %847 = vmatprep.subr.mxu0 0.0
        %848 = vmatpush2.msra.mxu0 0.0
        %849 = vmatprep.subr.mxu0 0.0
        %850 = vmatpush2.msra.mxu0 0.0
        %851 = vmatprep.subr.mxu0 0.0
        %852 = vmatpush2.msra.mxu0 0.0
        %853 = vmatprep.subr.mxu0 0.0
        %854 = vmatpush2.msra.mxu0 0.0
        %855 = vmatprep.subr.mxu0 0.0
        %856 = vmatpush2.msra.mxu0 0.0
        %857 = vmatprep.subr.mxu0 0.0
        %858 = vmatpush2.msra.mxu0 0.0
        %859 = vmatprep.subr.mxu0 0.0
        %860 = vmatpush2.msra.mxu0 0.0
        %861 = vmatprep.subr.mxu0 0.0
        %862 = vmatpush2.msra.mxu0 0.0
        %863 = vmatprep.subr.mxu0 0.0
        %864 = vmatpush2.msra.mxu0 0.0
        %865 = vmatprep.subr.mxu0 0.0
        %866 = vmatpush2.msra.mxu0 0.0
        %867 = vmatprep.subr.mxu0 0.0
        %868 = vmatpush2.msra.mxu0 0.0
        %869 = vmatprep.subr.mxu0 0.0
        %870 = vmatpush2.msra.mxu0 0.0
        %871 = vmatprep.subr.mxu0 0.0
        %872 = vmatpush2.msra.mxu0 0.0
        %873 = vmatprep.mubr.f32.mxu0 0.0
        %874 = vmatmul.mubr.f32.gmra.mxu0 %v804
        %v875 = vpop.f32.mrf.mxu0
        %v876 = vadd.f32 0.0, %v875
        %v877 = vpop.f32.mrf.mxu0
        %878 = vmatprep.mubr.f32.mxu0 0.0
        %879 = vmatmul.mubr.f32.gmra.mxu0 %v807
        %v880 = vpop.f32.mrf.mxu0
        %v881 = vadd.f32 0.0, %v880
        %v882 = vpop.f32.mrf.mxu0
        %883 = vdwg.mxu0
        %s884 = scalar_lea.vmem %s470, 32 [#allocation7]
        %v885 = vld [vmem:[%s884] sm:$0xff]
        %v886 = vld [vmem:[%s884 + $0x8] sm:$0xff]
        %v887 = vld [vmem:[%s884 + $0x10] sm:$0xff]
        %v888 = vld [vmem:[%s884 + $0x18] sm:$0xff]
        %889 = vmatprep.subr.mxu0 0.0
        %890 = vmatpush1.msra.mxu0 0.0
        %891 = vmatprep.subr.mxu0 0.0
        %892 = vmatpush1.msra.mxu0 0.0
        %893 = vmatprep.subr.mxu0 0.0
        %894 = vmatpush1.msra.mxu0 0.0
        %895 = vmatprep.subr.mxu0 0.0
        %896 = vmatpush1.msra.mxu0 0.0
        %897 = vmatprep.subr.mxu0 0.0
        %898 = vmatpush1.msra.mxu0 0.0
        %899 = vmatprep.subr.mxu0 0.0
        %900 = vmatpush1.msra.mxu0 0.0
        %901 = vmatprep.subr.mxu0 0.0
        %902 = vmatpush1.msra.mxu0 0.0
        %903 = vmatprep.subr.mxu0 0.0
        %904 = vmatpush1.msra.mxu0 0.0
        %905 = vmatprep.subr.mxu0 0.0
        %906 = vmatpush1.msra.mxu0 0.0
        %907 = vmatprep.subr.mxu0 0.0
        %908 = vmatpush1.msra.mxu0 0.0
        %909 = vmatprep.subr.mxu0 0.0
        %910 = vmatpush1.msra.mxu0 0.0
        %911 = vmatprep.subr.mxu0 0.0
        %912 = vmatpush1.msra.mxu0 0.0
        %913 = vmatprep.subr.mxu0 0.0
        %914 = vmatpush1.msra.mxu0 0.0
        %915 = vmatprep.subr.mxu0 0.0
        %916 = vmatpush1.msra.mxu0 0.0
        %917 = vmatprep.subr.mxu0 0.0
        %918 = vmatpush1.msra.mxu0 %v881
        %919 = vmatprep.subr.mxu0 0.0
        %920 = vmatpush1.msra.mxu0 %v876
        %921 = vmatprep.subr.mxu0 0.0
        %922 = vmatpush2.msra.mxu0 0.0
        %923 = vmatprep.subr.mxu0 0.0
        %924 = vmatpush2.msra.mxu0 0.0
        %925 = vmatprep.subr.mxu0 0.0
        %926 = vmatpush2.msra.mxu0 0.0
        %927 = vmatprep.subr.mxu0 0.0
        %928 = vmatpush2.msra.mxu0 0.0
        %929 = vmatprep.subr.mxu0 0.0
        %930 = vmatpush2.msra.mxu0 0.0
        %931 = vmatprep.subr.mxu0 0.0
        %932 = vmatpush2.msra.mxu0 0.0
        %933 = vmatprep.subr.mxu0 0.0
        %934 = vmatpush2.msra.mxu0 0.0
        %935 = vmatprep.subr.mxu0 0.0
        %936 = vmatpush2.msra.mxu0 0.0
        %937 = vmatprep.subr.mxu0 0.0
        %938 = vmatpush2.msra.mxu0 0.0
        %939 = vmatprep.subr.mxu0 0.0
        %940 = vmatpush2.msra.mxu0 0.0
        %941 = vmatprep.subr.mxu0 0.0
        %942 = vmatpush2.msra.mxu0 0.0
        %943 = vmatprep.subr.mxu0 0.0
        %944 = vmatpush2.msra.mxu0 0.0
        %945 = vmatprep.subr.mxu0 0.0
        %946 = vmatpush2.msra.mxu0 0.0
        %947 = vmatprep.subr.mxu0 0.0
        %948 = vmatpush2.msra.mxu0 0.0
        %949 = vmatprep.subr.mxu0 0.0
        %950 = vmatpush2.msra.mxu0 0.0
        %951 = vmatprep.subr.mxu0 0.0
        %952 = vmatpush2.msra.mxu0 0.0
        %953 = vmatprep.mubr.f32.mxu0 0.0
        %954 = vmatmul.mubr.f32.gmra.mxu0 %v648
        %v955 = vpop.f32.mrf.mxu0
        %v956 = vadd.f32 %v885, %v955
        %v957 = vpop.f32.mrf.mxu0
        %958 = vmatprep.mubr.f32.mxu0 0.0
        %959 = vmatmul.mubr.f32.gmra.mxu0 %v651
        %v960 = vpop.f32.mrf.mxu0
        %v961 = vadd.f32 %v886, %v960
        %v962 = vpop.f32.mrf.mxu0
        %963 = vmatprep.mubr.f32.mxu0 0.0
        %964 = vmatmul.mubr.f32.gmra.mxu0 %v654
        %v965 = vpop.f32.mrf.mxu0
        %v966 = vadd.f32 %v887, %v965
        %v967 = vpop.f32.mrf.mxu0
        %968 = vmatprep.mubr.f32.mxu0 0.0
        %969 = vmatmul.mubr.f32.gmra.mxu0 %v657
        %v970 = vpop.f32.mrf.mxu0
        %v971 = vadd.f32 %v888, %v970
        %v972 = vpop.f32.mrf.mxu0
        %973 = vdwg.mxu0
        %s974 = sld [smem:[#allocation4 + $0x1]]
        %v975 = vstv %s974
        %v976 = vadd.f32 %v956, %v975
        %v977 = vadd.f32 %v961, %v975
        %v978 = vadd.f32 %v966, %v975
        %v979 = vadd.f32 %v971, %v975
        %v980 = vsel %vm750, %v976, 0.0
        %v981 = vsel %vm750, %v977, 0.0
        %v982 = vadd.f32 %v980, %v981
        %v983 = vsel %vm750, %v978, 0.0
        %v984 = vadd.f32 %v982, %v983
        %v985 = vsel %vm750, %v979, 0.0
        %v986 = vadd.f32 %v984, %v985
        %v987 = vrot.slane %v986, 4
        %v988 = vadd.f32 %v986, %v987
        %v989 = vrot.slane %v988, 2
        %v990 = vadd.f32 %v988, %v989
        %v991 = vrot.slane %v990, 1
        %v992 = vadd.f32 %v990, %v991
        %v993 = vmul.f32 %v976, %v976
        %v994 = vmul.f32 %v977, %v977
        %v995 = vmul.f32 %v978, %v978
        %v996 = vmul.f32 %v979, %v979
        %v997 = vsel %vm750, %v993, 0.0
        %v998 = vsel %vm750, %v994, 0.0
        %v999 = vadd.f32 %v997, %v998
        %v1000 = vsel %vm750, %v995, 0.0
        %v1001 = vadd.f32 %v999, %v1000
        %v1002 = vsel %vm750, %v996, 0.0
        %v1003 = vadd.f32 %v1001, %v1002
        %v1004 = vrot.slane %v1003, 4
        %v1005 = vadd.f32 %v1003, %v1004
        %v1006 = vrot.slane %v1005, 2
        %v1007 = vadd.f32 %v1005, %v1006
        %v1008 = vrot.slane %v1007, 1
        %v1009 = vadd.f32 %v1007, %v1008
        %s1010 = sld [smem:[#allocation2 + $0x100]]
        %v1011 = vstv %s1010
        %v1012 = vmul.f32 %v522, %v1011
        %v1013 = vmul.f32 %v523, %v1011
        %s1014 = sld [smem:[#allocation2 + $0x101]]
        %v1015 = vstv %s1014
        %v1016 = vmul.f32 %v525, %v1015
        %v1017 = vmul.f32 %v526, %v1015
        %v1018 = vadd.f32 %v1012, %v1016
        %v1019 = vadd.f32 %v1013, %v1017
        %s1020 = sld [smem:[#allocation2 + $0x102]]
        %v1021 = vstv %s1020
        %v1022 = vmul.f32 %v528, %v1021
        %v1023 = vmul.f32 %v529, %v1021
        %v1024 = vadd.f32 %v1018, %v1022
        %v1025 = vadd.f32 %v1019, %v1023
        %s1026 = sld [smem:[#allocation2 + $0x103]]
        %v1027 = vstv %s1026
        %v1028 = vmul.f32 %v531, %v1027
        %v1029 = vmul.f32 %v532, %v1027
        %v1030 = vadd.f32 %v1024, %v1028
        %v1031 = vadd.f32 %v1025, %v1029
        %v1033 = vsel %vm561, %v1030, 0
        %v1036 = vsel %vm561, %v1031, 0
        %1038 = vmatprep.subr.mxu0 0.0
        %1039 = vmatpush1.msra.mxu0 0.0
        %1040 = vmatprep.subr.mxu0 0.0
        %1041 = vmatpush1.msra.mxu0 0.0
        %1042 = vmatprep.subr.mxu0 0.0
        %1043 = vmatpush1.msra.mxu0 0.0
        %1044 = vmatprep.subr.mxu0 0.0
        %1045 = vmatpush1.msra.mxu0 0.0
        %1046 = vmatprep.subr.mxu0 0.0
        %1047 = vmatpush1.msra.mxu0 0.0
        %1048 = vmatprep.subr.mxu0 0.0
        %1049 = vmatpush1.msra.mxu0 0.0
        %1050 = vmatprep.subr.mxu0 0.0
        %1051 = vmatpush1.msra.mxu0 0.0
        %1052 = vmatprep.subr.mxu0 0.0
        %1053 = vmatpush1.msra.mxu0 0.0
        %1054 = vmatprep.subr.mxu0 0.0
        %1055 = vmatpush1.msra.mxu0 0.0
        %1056 = vmatprep.subr.mxu0 0.0
        %1057 = vmatpush1.msra.mxu0 0.0
        %1058 = vmatprep.subr.mxu0 0.0
        %1059 = vmatpush1.msra.mxu0 0.0
        %1060 = vmatprep.subr.mxu0 0.0
        %1061 = vmatpush1.msra.mxu0 0.0
        %1062 = vmatprep.subr.mxu0 0.0
        %1063 = vmatpush1.msra.mxu0 0.0
        %1064 = vmatprep.subr.mxu0 0.0
        %1065 = vmatpush1.msra.mxu0 0.0
        %1066 = vmatprep.subr.mxu0 0.0
        %1067 = vmatpush1.msra.mxu0 %v534
        %1068 = vmatprep.subr.mxu0 0.0
        %1069 = vmatpush1.msra.mxu0 %v533
        %1070 = vmatprep.subr.mxu0 0.0
        %1071 = vmatpush2.msra.mxu0 0.0
        %1072 = vmatprep.subr.mxu0 0.0
        %1073 = vmatpush2.msra.mxu0 0.0
        %1074 = vmatprep.subr.mxu0 0.0
        %1075 = vmatpush2.msra.mxu0 0.0
        %1076 = vmatprep.subr.mxu0 0.0
        %1077 = vmatpush2.msra.mxu0 0.0
        %1078 = vmatprep.subr.mxu0 0.0
        %1079 = vmatpush2.msra.mxu0 0.0
        %1080 = vmatprep.subr.mxu0 0.0
        %1081 = vmatpush2.msra.mxu0 0.0
        %1082 = vmatprep.subr.mxu0 0.0
        %1083 = vmatpush2.msra.mxu0 0.0
        %1084 = vmatprep.subr.mxu0 0.0
        %1085 = vmatpush2.msra.mxu0 0.0
        %1086 = vmatprep.subr.mxu0 0.0
        %1087 = vmatpush2.msra.mxu0 0.0
        %1088 = vmatprep.subr.mxu0 0.0
        %1089 = vmatpush2.msra.mxu0 0.0
        %1090 = vmatprep.subr.mxu0 0.0
        %1091 = vmatpush2.msra.mxu0 0.0
        %1092 = vmatprep.subr.mxu0 0.0
        %1093 = vmatpush2.msra.mxu0 0.0
        %1094 = vmatprep.subr.mxu0 0.0
        %1095 = vmatpush2.msra.mxu0 0.0
        %1096 = vmatprep.subr.mxu0 0.0
        %1097 = vmatpush2.msra.mxu0 0.0
        %1098 = vmatprep.subr.mxu0 0.0
        %1099 = vmatpush2.msra.mxu0 0.0
        %1100 = vmatprep.subr.mxu0 0.0
        %1101 = vmatpush2.msra.mxu0 0.0
        %1102 = vmatprep.mubr.f32.mxu0 0.0
        %1103 = vmatmul.mubr.f32.gmra.mxu0 %v1033
        %v1104 = vpop.f32.mrf.mxu0
        %v1105 = vadd.f32 0.0, %v1104
        %v1106 = vpop.f32.mrf.mxu0
        %1107 = vmatprep.mubr.f32.mxu0 0.0
        %1108 = vmatmul.mubr.f32.gmra.mxu0 %v1036
        %v1109 = vpop.f32.mrf.mxu0
        %v1110 = vadd.f32 0.0, %v1109
        %v1111 = vpop.f32.mrf.mxu0
        %1112 = vdwg.mxu0
        %s1113 = scalar_lea.vmem %s470, 64 [#allocation7]
        %v1114 = vld [vmem:[%s1113] sm:$0xff]
        %v1115 = vld [vmem:[%s1113 + $0x8] sm:$0xff]
        %v1116 = vld [vmem:[%s1113 + $0x10] sm:$0xff]
        %v1117 = vld [vmem:[%s1113 + $0x18] sm:$0xff]
        %1118 = vmatprep.subr.mxu0 0.0
        %1119 = vmatpush1.msra.mxu0 0.0
        %1120 = vmatprep.subr.mxu0 0.0
        %1121 = vmatpush1.msra.mxu0 0.0
        %1122 = vmatprep.subr.mxu0 0.0
        %1123 = vmatpush1.msra.mxu0 0.0
        %1124 = vmatprep.subr.mxu0 0.0
        %1125 = vmatpush1.msra.mxu0 0.0
        %1126 = vmatprep.subr.mxu0 0.0
        %1127 = vmatpush1.msra.mxu0 0.0
        %1128 = vmatprep.subr.mxu0 0.0
        %1129 = vmatpush1.msra.mxu0 0.0
        %1130 = vmatprep.subr.mxu0 0.0
        %1131 = vmatpush1.msra.mxu0 0.0
        %1132 = vmatprep.subr.mxu0 0.0
        %1133 = vmatpush1.msra.mxu0 0.0
        %1134 = vmatprep.subr.mxu0 0.0
        %1135 = vmatpush1.msra.mxu0 0.0
        %1136 = vmatprep.subr.mxu0 0.0
        %1137 = vmatpush1.msra.mxu0 0.0
        %1138 = vmatprep.subr.mxu0 0.0
        %1139 = vmatpush1.msra.mxu0 0.0
        %1140 = vmatprep.subr.mxu0 0.0
        %1141 = vmatpush1.msra.mxu0 0.0
        %1142 = vmatprep.subr.mxu0 0.0
        %1143 = vmatpush1.msra.mxu0 0.0
        %1144 = vmatprep.subr.mxu0 0.0
        %1145 = vmatpush1.msra.mxu0 0.0
        %1146 = vmatprep.subr.mxu0 0.0
        %1147 = vmatpush1.msra.mxu0 %v1110
        %1148 = vmatprep.subr.mxu0 0.0
        %1149 = vmatpush1.msra.mxu0 %v1105
        %1150 = vmatprep.subr.mxu0 0.0
        %1151 = vmatpush2.msra.mxu0 0.0
        %1152 = vmatprep.subr.mxu0 0.0
        %1153 = vmatpush2.msra.mxu0 0.0
        %1154 = vmatprep.subr.mxu0 0.0
        %1155 = vmatpush2.msra.mxu0 0.0
        %1156 = vmatprep.subr.mxu0 0.0
        %1157 = vmatpush2.msra.mxu0 0.0
        %1158 = vmatprep.subr.mxu0 0.0
        %1159 = vmatpush2.msra.mxu0 0.0
        %1160 = vmatprep.subr.mxu0 0.0
        %1161 = vmatpush2.msra.mxu0 0.0
        %1162 = vmatprep.subr.mxu0 0.0
        %1163 = vmatpush2.msra.mxu0 0.0
        %1164 = vmatprep.subr.mxu0 0.0
        %1165 = vmatpush2.msra.mxu0 0.0
        %1166 = vmatprep.subr.mxu0 0.0
        %1167 = vmatpush2.msra.mxu0 0.0
        %1168 = vmatprep.subr.mxu0 0.0
        %1169 = vmatpush2.msra.mxu0 0.0
        %1170 = vmatprep.subr.mxu0 0.0
        %1171 = vmatpush2.msra.mxu0 0.0
        %1172 = vmatprep.subr.mxu0 0.0
        %1173 = vmatpush2.msra.mxu0 0.0
        %1174 = vmatprep.subr.mxu0 0.0
        %1175 = vmatpush2.msra.mxu0 0.0
        %1176 = vmatprep.subr.mxu0 0.0
        %1177 = vmatpush2.msra.mxu0 0.0
        %1178 = vmatprep.subr.mxu0 0.0
        %1179 = vmatpush2.msra.mxu0 0.0
        %1180 = vmatprep.subr.mxu0 0.0
        %1181 = vmatpush2.msra.mxu0 0.0
        %1182 = vmatprep.mubr.f32.mxu0 0.0
        %1183 = vmatmul.mubr.f32.gmra.mxu0 %v648
        %v1184 = vpop.f32.mrf.mxu0
        %v1185 = vadd.f32 %v1114, %v1184
        %v1186 = vpop.f32.mrf.mxu0
        %1187 = vmatprep.mubr.f32.mxu0 0.0
        %1188 = vmatmul.mubr.f32.gmra.mxu0 %v651
        %v1189 = vpop.f32.mrf.mxu0
        %v1190 = vadd.f32 %v1115, %v1189
        %v1191 = vpop.f32.mrf.mxu0
        %1192 = vmatprep.mubr.f32.mxu0 0.0
        %1193 = vmatmul.mubr.f32.gmra.mxu0 %v654
        %v1194 = vpop.f32.mrf.mxu0
        %v1195 = vadd.f32 %v1116, %v1194
        %v1196 = vpop.f32.mrf.mxu0
        %1197 = vmatprep.mubr.f32.mxu0 0.0
        %1198 = vmatmul.mubr.f32.gmra.mxu0 %v657
        %v1199 = vpop.f32.mrf.mxu0
        %v1200 = vadd.f32 %v1117, %v1199
        %v1201 = vpop.f32.mrf.mxu0
        %1202 = vdwg.mxu0
        %s1203 = sld [smem:[#allocation4 + $0x2]]
        %v1204 = vstv %s1203
        %v1205 = vadd.f32 %v1185, %v1204
        %v1206 = vadd.f32 %v1190, %v1204
        %v1207 = vadd.f32 %v1195, %v1204
        %v1208 = vadd.f32 %v1200, %v1204
        %v1209 = vsel %vm750, %v1205, 0.0
        %v1210 = vsel %vm750, %v1206, 0.0
        %v1211 = vadd.f32 %v1209, %v1210
        %v1212 = vsel %vm750, %v1207, 0.0
        %v1213 = vadd.f32 %v1211, %v1212
        %v1214 = vsel %vm750, %v1208, 0.0
        %v1215 = vadd.f32 %v1213, %v1214
        %v1216 = vrot.slane %v1215, 4
        %v1217 = vadd.f32 %v1215, %v1216
        %v1218 = vrot.slane %v1217, 2
        %v1219 = vadd.f32 %v1217, %v1218
        %v1220 = vrot.slane %v1219, 1
        %v1221 = vadd.f32 %v1219, %v1220
        %v1222 = vmul.f32 %v1205, %v1205
        %v1223 = vmul.f32 %v1206, %v1206
        %v1224 = vmul.f32 %v1207, %v1207
        %v1225 = vmul.f32 %v1208, %v1208
        %v1226 = vsel %vm750, %v1222, 0.0
        %v1227 = vsel %vm750, %v1223, 0.0
        %v1228 = vadd.f32 %v1226, %v1227
        %v1229 = vsel %vm750, %v1224, 0.0
        %v1230 = vadd.f32 %v1228, %v1229
        %v1231 = vsel %vm750, %v1225, 0.0
        %v1232 = vadd.f32 %v1230, %v1231
        %v1233 = vrot.slane %v1232, 4
        %v1234 = vadd.f32 %v1232, %v1233
        %v1235 = vrot.slane %v1234, 2
        %v1236 = vadd.f32 %v1234, %v1235
        %v1237 = vrot.slane %v1236, 1
        %v1238 = vadd.f32 %v1236, %v1237
        %s1239 = sld [smem:[#allocation2 + $0x180]]
        %v1240 = vstv %s1239
        %v1241 = vmul.f32 %v522, %v1240
        %v1242 = vmul.f32 %v523, %v1240
        %s1243 = sld [smem:[#allocation2 + $0x181]]
        %v1244 = vstv %s1243
        %v1245 = vmul.f32 %v525, %v1244
        %v1246 = vmul.f32 %v526, %v1244
        %v1247 = vadd.f32 %v1241, %v1245
        %v1248 = vadd.f32 %v1242, %v1246
        %s1249 = sld [smem:[#allocation2 + $0x182]]
        %v1250 = vstv %s1249
        %v1251 = vmul.f32 %v528, %v1250
        %v1252 = vmul.f32 %v529, %v1250
        %v1253 = vadd.f32 %v1247, %v1251
        %v1254 = vadd.f32 %v1248, %v1252
        %s1255 = sld [smem:[#allocation2 + $0x183]]
        %v1256 = vstv %s1255
        %v1257 = vmul.f32 %v531, %v1256
        %v1258 = vmul.f32 %v532, %v1256
        %v1259 = vadd.f32 %v1253, %v1257
        %v1260 = vadd.f32 %v1254, %v1258
        %v1262 = vsel %vm561, %v1259, 0
        %v1265 = vsel %vm561, %v1260, 0
        %1267 = vmatprep.subr.mxu0 0.0
        %1268 = vmatpush1.msra.mxu0 0.0
        %1269 = vmatprep.subr.mxu0 0.0
        %1270 = vmatpush1.msra.mxu0 0.0
        %1271 = vmatprep.subr.mxu0 0.0
        %1272 = vmatpush1.msra.mxu0 0.0
        %1273 = vmatprep.subr.mxu0 0.0
        %1274 = vmatpush1.msra.mxu0 0.0
        %1275 = vmatprep.subr.mxu0 0.0
        %1276 = vmatpush1.msra.mxu0 0.0
        %1277 = vmatprep.subr.mxu0 0.0
        %1278 = vmatpush1.msra.mxu0 0.0
        %1279 = vmatprep.subr.mxu0 0.0
        %1280 = vmatpush1.msra.mxu0 0.0
        %1281 = vmatprep.subr.mxu0 0.0
        %1282 = vmatpush1.msra.mxu0 0.0
        %1283 = vmatprep.subr.mxu0 0.0
        %1284 = vmatpush1.msra.mxu0 0.0
        %1285 = vmatprep.subr.mxu0 0.0
        %1286 = vmatpush1.msra.mxu0 0.0
        %1287 = vmatprep.subr.mxu0 0.0
        %1288 = vmatpush1.msra.mxu0 0.0
        %1289 = vmatprep.subr.mxu0 0.0
        %1290 = vmatpush1.msra.mxu0 0.0
        %1291 = vmatprep.subr.mxu0 0.0
        %1292 = vmatpush1.msra.mxu0 0.0
        %1293 = vmatprep.subr.mxu0 0.0
        %1294 = vmatpush1.msra.mxu0 0.0
        %1295 = vmatprep.subr.mxu0 0.0
        %1296 = vmatpush1.msra.mxu0 %v534
        %1297 = vmatprep.subr.mxu0 0.0
        %1298 = vmatpush1.msra.mxu0 %v533
        %1299 = vmatprep.subr.mxu0 0.0
        %1300 = vmatpush2.msra.mxu0 0.0
        %1301 = vmatprep.subr.mxu0 0.0
        %1302 = vmatpush2.msra.mxu0 0.0
        %1303 = vmatprep.subr.mxu0 0.0
        %1304 = vmatpush2.msra.mxu0 0.0
        %1305 = vmatprep.subr.mxu0 0.0
        %1306 = vmatpush2.msra.mxu0 0.0
        %1307 = vmatprep.subr.mxu0 0.0
        %1308 = vmatpush2.msra.mxu0 0.0
        %1309 = vmatprep.subr.mxu0 0.0
        %1310 = vmatpush2.msra.mxu0 0.0
        %1311 = vmatprep.subr.mxu0 0.0
        %1312 = vmatpush2.msra.mxu0 0.0
        %1313 = vmatprep.subr.mxu0 0.0
        %1314 = vmatpush2.msra.mxu0 0.0
        %1315 = vmatprep.subr.mxu0 0.0
        %1316 = vmatpush2.msra.mxu0 0.0
        %1317 = vmatprep.subr.mxu0 0.0
        %1318 = vmatpush2.msra.mxu0 0.0
        %1319 = vmatprep.subr.mxu0 0.0
        %1320 = vmatpush2.msra.mxu0 0.0
        %1321 = vmatprep.subr.mxu0 0.0
        %1322 = vmatpush2.msra.mxu0 0.0
        %1323 = vmatprep.subr.mxu0 0.0
        %1324 = vmatpush2.msra.mxu0 0.0
        %1325 = vmatprep.subr.mxu0 0.0
        %1326 = vmatpush2.msra.mxu0 0.0
        %1327 = vmatprep.subr.mxu0 0.0
        %1328 = vmatpush2.msra.mxu0 0.0
        %1329 = vmatprep.subr.mxu0 0.0
        %1330 = vmatpush2.msra.mxu0 0.0
        %1331 = vmatprep.mubr.f32.mxu0 0.0
        %1332 = vmatmul.mubr.f32.gmra.mxu0 %v1262
        %v1333 = vpop.f32.mrf.mxu0
        %v1334 = vadd.f32 0.0, %v1333
        %v1335 = vpop.f32.mrf.mxu0
        %1336 = vmatprep.mubr.f32.mxu0 0.0
        %1337 = vmatmul.mubr.f32.gmra.mxu0 %v1265
        %v1338 = vpop.f32.mrf.mxu0
        %v1339 = vadd.f32 0.0, %v1338
        %v1340 = vpop.f32.mrf.mxu0
        %1341 = vdwg.mxu0
        %s1342 = scalar_lea.vmem %s470, 96 [#allocation7]
        %v1343 = vld [vmem:[%s1342] sm:$0xff]
        %v1344 = vld [vmem:[%s1342 + $0x8] sm:$0xff]
        %v1345 = vld [vmem:[%s1342 + $0x10] sm:$0xff]
        %v1346 = vld [vmem:[%s1342 + $0x18] sm:$0xff]
        %1347 = vmatprep.subr.mxu0 0.0
        %1348 = vmatpush1.msra.mxu0 0.0
        %1349 = vmatprep.subr.mxu0 0.0
        %1350 = vmatpush1.msra.mxu0 0.0
        %1351 = vmatprep.subr.mxu0 0.0
        %1352 = vmatpush1.msra.mxu0 0.0
        %1353 = vmatprep.subr.mxu0 0.0
        %1354 = vmatpush1.msra.mxu0 0.0
        %1355 = vmatprep.subr.mxu0 0.0
        %1356 = vmatpush1.msra.mxu0 0.0
        %1357 = vmatprep.subr.mxu0 0.0
        %1358 = vmatpush1.msra.mxu0 0.0
        %1359 = vmatprep.subr.mxu0 0.0
        %1360 = vmatpush1.msra.mxu0 0.0
        %1361 = vmatprep.subr.mxu0 0.0
        %1362 = vmatpush1.msra.mxu0 0.0
        %1363 = vmatprep.subr.mxu0 0.0
        %1364 = vmatpush1.msra.mxu0 0.0
        %1365 = vmatprep.subr.mxu0 0.0
        %1366 = vmatpush1.msra.mxu0 0.0
        %1367 = vmatprep.subr.mxu0 0.0
        %1368 = vmatpush1.msra.mxu0 0.0
        %1369 = vmatprep.subr.mxu0 0.0
        %1370 = vmatpush1.msra.mxu0 0.0
        %1371 = vmatprep.subr.mxu0 0.0
        %1372 = vmatpush1.msra.mxu0 0.0
        %1373 = vmatprep.subr.mxu0 0.0
        %1374 = vmatpush1.msra.mxu0 0.0
        %1375 = vmatprep.subr.mxu0 0.0
        %1376 = vmatpush1.msra.mxu0 %v1339
        %1377 = vmatprep.subr.mxu0 0.0
        %1378 = vmatpush1.msra.mxu0 %v1334
        %1379 = vmatprep.subr.mxu0 0.0
        %1380 = vmatpush2.msra.mxu0 0.0
        %1381 = vmatprep.subr.mxu0 0.0
        %1382 = vmatpush2.msra.mxu0 0.0
        %1383 = vmatprep.subr.mxu0 0.0
        %1384 = vmatpush2.msra.mxu0 0.0
        %1385 = vmatprep.subr.mxu0 0.0
        %1386 = vmatpush2.msra.mxu0 0.0
        %1387 = vmatprep.subr.mxu0 0.0
        %1388 = vmatpush2.msra.mxu0 0.0
        %1389 = vmatprep.subr.mxu0 0.0
        %1390 = vmatpush2.msra.mxu0 0.0
        %1391 = vmatprep.subr.mxu0 0.0
        %1392 = vmatpush2.msra.mxu0 0.0
        %1393 = vmatprep.subr.mxu0 0.0
        %1394 = vmatpush2.msra.mxu0 0.0
        %1395 = vmatprep.subr.mxu0 0.0
        %1396 = vmatpush2.msra.mxu0 0.0
        %1397 = vmatprep.subr.mxu0 0.0
        %1398 = vmatpush2.msra.mxu0 0.0
        %1399 = vmatprep.subr.mxu0 0.0
        %1400 = vmatpush2.msra.mxu0 0.0
        %1401 = vmatprep.subr.mxu0 0.0
        %1402 = vmatpush2.msra.mxu0 0.0
        %1403 = vmatprep.subr.mxu0 0.0
        %1404 = vmatpush2.msra.mxu0 0.0
        %1405 = vmatprep.subr.mxu0 0.0
        %1406 = vmatpush2.msra.mxu0 0.0
        %1407 = vmatprep.subr.mxu0 0.0
        %1408 = vmatpush2.msra.mxu0 0.0
        %1409 = vmatprep.subr.mxu0 0.0
        %1410 = vmatpush2.msra.mxu0 0.0
        %1411 = vmatprep.mubr.f32.mxu0 0.0
        %1412 = vmatmul.mubr.f32.gmra.mxu0 %v648
        %v1413 = vpop.f32.mrf.mxu0
        %v1414 = vadd.f32 %v1343, %v1413
        %v1415 = vpop.f32.mrf.mxu0
        %1416 = vmatprep.mubr.f32.mxu0 0.0
        %1417 = vmatmul.mubr.f32.gmra.mxu0 %v651
        %v1418 = vpop.f32.mrf.mxu0
        %v1419 = vadd.f32 %v1344, %v1418
        %v1420 = vpop.f32.mrf.mxu0
        %1421 = vmatprep.mubr.f32.mxu0 0.0
        %1422 = vmatmul.mubr.f32.gmra.mxu0 %v654
        %v1423 = vpop.f32.mrf.mxu0
        %v1424 = vadd.f32 %v1345, %v1423
        %v1425 = vpop.f32.mrf.mxu0
        %1426 = vmatprep.mubr.f32.mxu0 0.0
        %1427 = vmatmul.mubr.f32.gmra.mxu0 %v657
        %v1428 = vpop.f32.mrf.mxu0
        %v1429 = vadd.f32 %v1346, %v1428
        %v1430 = vpop.f32.mrf.mxu0
        %1431 = vdwg.mxu0
        %s1432 = sld [smem:[#allocation4 + $0x3]]
        %v1433 = vstv %s1432
        %v1434 = vadd.f32 %v1414, %v1433
        %v1435 = vadd.f32 %v1419, %v1433
        %v1436 = vadd.f32 %v1424, %v1433
        %v1437 = vadd.f32 %v1429, %v1433
        %v1438 = vsel %vm750, %v1434, 0.0
        %v1439 = vsel %vm750, %v1435, 0.0
        %v1440 = vadd.f32 %v1438, %v1439
        %v1441 = vsel %vm750, %v1436, 0.0
        %v1442 = vadd.f32 %v1440, %v1441
        %v1443 = vsel %vm750, %v1437, 0.0
        %v1444 = vadd.f32 %v1442, %v1443
        %v1445 = vrot.slane %v1444, 4
        %v1446 = vadd.f32 %v1444, %v1445
        %v1447 = vrot.slane %v1446, 2
        %v1448 = vadd.f32 %v1446, %v1447
        %v1449 = vrot.slane %v1448, 1
        %v1450 = vadd.f32 %v1448, %v1449
        %v1451 = vmul.f32 %v1434, %v1434
        %v1452 = vmul.f32 %v1435, %v1435
        %v1453 = vmul.f32 %v1436, %v1436
        %v1454 = vmul.f32 %v1437, %v1437
        %v1455 = vsel %vm750, %v1451, 0.0
        %v1456 = vsel %vm750, %v1452, 0.0
        %v1457 = vadd.f32 %v1455, %v1456
        %v1458 = vsel %vm750, %v1453, 0.0
        %v1459 = vadd.f32 %v1457, %v1458
        %v1460 = vsel %vm750, %v1454, 0.0
        %v1461 = vadd.f32 %v1459, %v1460
        %v1462 = vrot.slane %v1461, 4
        %v1463 = vadd.f32 %v1461, %v1462
        %v1464 = vrot.slane %v1463, 2
        %v1465 = vadd.f32 %v1463, %v1464
        %v1466 = vrot.slane %v1465, 1
        %v1467 = vadd.f32 %v1465, %v1466
        %v1468 = vld [vmem:[%s510] sm:$0xf]
        %vm1469 = vcmask 1040384
        %v1470 = vsel %vm1469, %v763, %v992
        %vm1471 = vcmask 1041408
        %v1472 = vsel %vm1471, %v1470, %v1221
        %vm1473 = vcmask 1042432
        %v1474 = vsel %vm1473, %v1472, %v1450
        %v1475 = vadd.f32 %v1468, %v1474
        %vm1476 = vcmask 257024
        %1477 = vst.msk [vmem:[%s510] sm:$0xf] %vm1476, %v1475
        %v1478 = vld [vmem:[%s514] sm:$0xf]
        %v1479 = vsel %vm1469, %v780, %v1009
        %v1480 = vsel %vm1471, %v1479, %v1238
        %v1481 = vsel %vm1473, %v1480, %v1467
        %v1482 = vadd.f32 %v1478, %v1481
        %1483 = vst.msk [vmem:[%s514] sm:$0xf] %vm1476, %v1482
        %p1484 = scmp.lt.s32.totalorder %s25, 1
        %s1485 = scalar_select %p1484, %s25, 1
        %s1486 = smul.addr %s1485, 4
        %s1487 = scalar_lea.vmem %s6, %s1486
        %p1488 = scmp.lt.s32.totalorder %s25, 1
        %s1489 = scalar_select %p1488, %s25, 1
        %s1490 = smul.addr %s1489, 4
        %s1491 = scalar_lea.vmem %s7, %s1490
        // Predicated region
        $region133: #{upsample_mod_forward.2} parent=111 // pred_check
          %p1492 = pneg %p191
        $region134: #{upsample_mod_forward.2} parent=111 // pred_check_branch
          %1494 = sbr.rel (%p1492) target = $region136
        $region135: #{upsample_mod_forward.2} parent=111 // pred_region
          _
        $region136: #{upsample_mod_forward.2} parent=111 // pred_fallthru
          _
        // Predicated region
        $region137: #{upsample_mod_forward.2} parent=111 // pred_check
          %p1495 = pneg %p217
        $region138: #{upsample_mod_forward.2} parent=111 // pred_check_branch
          %1497 = sbr.rel (%p1495) target = $region140
        $region139: #{upsample_mod_forward.2} parent=111 // pred_region
          _
        $region140: #{upsample_mod_forward.2} parent=111 // pred_fallthru
          _
      $region112: #{upsample_mod_forward.2} parent=5 // pred_fallthru
        _
      %p1498 = scmp.le.s32.totalorder 2, %s16
      // Predicated region
      $region141: #{upsample_mod_forward.2} parent=5 // pred_check
        %p1499 = pneg %p1498
      $region142: #{upsample_mod_forward.2} parent=5 // pred_check_branch
        %1501 = sbr.rel (%p1499) target = $region144
      $region143: #{upsample_mod_forward.2} parent=5 // pred_region
        %s1502 = ssub.s32 %s16, 2
        // Predicated region
        $region145: #{upsample_mod_forward.2} parent=143 // pred_check
          %p1503 = pneg %p197
        $region146: #{upsample_mod_forward.2} parent=143 // pred_check_branch
          %1505 = sbr.rel (%p1503) target = $region148
        $region147: #{upsample_mod_forward.2} parent=143 // pred_region
          %p1506 = scmp.lt.s32.totalorder %s27, 1
          %s1507 = scalar_select %p1506, %s27, 1
          %s1508 = smul.addr %s1507, 4
          %s1509 = scalar_lea.vmem %s6, %s1508
        $region148: #{upsample_mod_forward.2} parent=143 // pred_fallthru
          _
        // Predicated region
        $region149: #{upsample_mod_forward.2} parent=143 // pred_check
          %p1510 = pneg %p223
        $region150: #{upsample_mod_forward.2} parent=143 // pred_check_branch
          %1512 = sbr.rel (%p1510) target = $region152
        $region151: #{upsample_mod_forward.2} parent=143 // pred_region
          %p1513 = scmp.lt.s32.totalorder %s27, 1
          %s1514 = scalar_select %p1513, %s27, 1
          %s1515 = smul.addr %s1514, 4
          %s1516 = scalar_lea.vmem %s7, %s1515
        $region152: #{upsample_mod_forward.2} parent=143 // pred_fallthru
          _
      $region144: #{upsample_mod_forward.2} parent=5 // pred_fallthru
        _
    $region6: #{upsample_mod_forward.2} parent=1 // loop_footer
      %s20 = sadd.s32 1, %s16
    $region7: #{upsample_mod_forward.2} parent=1 // loop_footer_branch
      %15 = sbr.rel target = $region3
    $region8: #{upsample_mod_forward.2} parent=1 // loop_exit
      _
    %1517 = vsyncpa [#allocation3], 1
    %s1518 = scalar_lea.sflag [#allocation3], 1
    %1519 = vsyncpa %s1518, 1
    %1520 = vsyncpa [#allocation5], 1

// kernel: upsample_mod_forward.3
$region0: #{upsample_mod_forward.3}
  #allocation0 [shape = 'u32[]', space=smem, size = 0x4, offset = 0x4, fixed_abs, tag = 'smem constant byte address 0x4 - core index']
  #allocation1 [shape = 'u32[144,128]{1,0:T(1,128)}', space=vmem, size = 0x12000, scoped, tag = 'internal scratch']
  #allocation13 [shape = 's32[]', space=sflag, size = 0x4, offset = 0, fixed_abs, tag = 'sflag constant byte address 0x0 - dummy sync flag']
  %s0 = inlined_call_operand.vmem [shape: f32[4,4], index: 0, kind: input, shape index: {}]
  %s1 = inlined_call_operand.vmem [shape: f32[4], index: 1, kind: input, shape index: {}]
  %s2 = inlined_call_operand.vmem [shape: f32[4], index: 2, kind: input, shape index: {}]
  %s3 = inlined_call_operand.vmem [shape: f32[4], index: 3, kind: input, shape index: {}]
  %s4 = inlined_call_operand.vmem [shape: f32[2,4,4,16,16], index: 4, kind: input, shape index: {}]
  %s5 = inlined_call_operand.vmem [shape: f32[2,4,4,32,32], index: 5, kind: input, shape index: {}]
  %s6 = inlined_call_operand.vmem [shape: f32[16,32], index: 6, kind: input, shape index: {}]
  %s7 = inlined_call_operand.vmem [shape: f32[32,16], index: 7, kind: input, shape index: {}]
  %s8 = inlined_call_operand.hbm [shape: f32[2,4,4,32,32], index: 8, kind: output, shape index: {}]
  %s9 = sld [smem:[#allocation0]]
  $region157: #{upsample_mod_forward.3} parent=0
    _
  %s11 = ssub.s32 1, %s9
  %s12 = scalar_select 0, %s11, %s9
  $region1: #{upsample_mod_forward.3} parent=0
    #allocation2 [shape = 'u8[2048]{0}', space=smem, size = 0x800, scoped, tag = 'input window, operand 0, single buffered']
    #allocation3 [shape = 's32[2]{0}', space=sflag, size = 0x8, scoped, tag = 'scoped memory for upsample_mod_forward.3']
    #allocation4 [shape = 's32[2]{0}', space=sflag, size = 0x8, scoped, tag = 'scoped memory for upsample_mod_forward.3']
    #allocation5 [shape = 'u8[512]{0}', space=smem, size = 0x200, scoped, tag = 'input window, operand 1, single buffered']
    #allocation6 [shape = 's32[1]{0}', space=sflag, size = 0x4, scoped, tag = 'scoped memory for upsample_mod_forward.3']
    #allocation7 [shape = 'u8[512]{0}', space=smem, size = 0x200, scoped, tag = 'input window, operand 2, single buffered']
    #allocation8 [shape = 'u8[512]{0}', space=smem, size = 0x200, scoped, tag = 'input window, operand 3, single buffered']
    #allocation9 [shape = 's32[1]{0}', space=sflag, size = 0x4, scoped, tag = 'scoped memory for upsample_mod_forward.3']
    #allocation10 [shape = 'u8[65536]{0}', space=vmem, size = 0x10000, scoped, tag = 'input window, operand 4']
    #allocation11 [shape = 'u8[131072]{0}', space=vmem, size = 0x20000, scoped, tag = 'input window, operand 5']
    #allocation12 [shape = 'u8[131072]{0}', space=vmem, size = 0x20000, scoped, tag = 'output window, operand 0']
    %13 = vsyncpa [#allocation4], 0
    %14 = vsyncpa [#allocation6], 0
    %15 = vsyncpa [#allocation9], 0
    %16 = vsyncpa [#allocation3], 0
    %s17 = scalar_lea.sflag [#allocation3], 1
    %18 = vsyncpa %s17, 0
    loop: start=0, step=1, limit=10
    $region2: #{upsample_mod_forward.3} parent=1 // loop_pre_header
      _
    $region3: #{upsample_mod_forward.3} parent=1 // loop_header
      %s20 = sphi 0, %s24
      %p21 = scmp.ge.s32.totalorder %s20, 10
      %s27 = sphi 0, %s39
      %s28 = sphi 0, %s35
      %s29 = sphi 0, %s27
      %s30 = sphi 0, %s28
      %s31 = sphi 0, %s29
      %s32 = sphi 0, %s30
      %s40 = sphi 0, %s40
      %s42 = sphi 0, %s40
      %s43 = sphi 0, %s42
      %s57 = sphi 0, %s43
      %s61 = sphi 0, %s61
      %s63 = sphi 0, %s61
      %s64 = sphi 0, %s63
      %s78 = sphi 0, %s64
      %s82 = sphi 0, %s82
      %s84 = sphi 0, %s82
      %s85 = sphi 0, %s84
      %s99 = sphi 0, %s85
      %s103 = sphi 0, %s103
      %s105 = sphi 0, %s103
      %s106 = sphi 0, %s105
      %s120 = sphi 0, %s106
      %s128 = sphi 0, %s130
      %s131 = sphi 0, %s128
      %s132 = sphi 0, %s131
      %s148 = sphi 0, %s132
      %s156 = sphi 0, %s158
      %s159 = sphi 0, %s156
      %s160 = sphi 0, %s159
      %s176 = sphi 0, %s160
      %s180 = sphi 0, %s180
      %s182 = sphi 0, %s180
      %s183 = sphi 0, %s182
      %s197 = sphi 0, %s183
      %s201 = sphi 0, %s201
      %s203 = sphi 0, %s201
      %s204 = sphi 0, %s203
      %s218 = sphi 0, %s204
      %s226 = sphi 0, %s228
      %s229 = sphi 0, %s226
      %s230 = sphi 0, %s229
      %s246 = sphi 0, %s230
    $region4: #{upsample_mod_forward.3} parent=1 // loop_header_branch
      %23 = sbr.rel (%p21) target = $region8
    $region5: #{upsample_mod_forward.3} parent=1 // loop_body
      %s25 = ssub.s32 %s20, 1
      %s26 = ssub.s32 %s20, 2
      %s33 = sadd.s32 1, %s28
      %p34 = scmp.ge.s32.totalorder %s33, 4
      %s35 = scalar_select %p34, 0, %s33
      %s36 = sadd.s32 1, %s27
      %s37 = scalar_select %p34, %s36, %s27
      %p38 = scmp.ge.s32.totalorder %s37, 2
      %s39 = scalar_select %p38, 0, %s37
      %s41 = sadd.s32 %s40, 1
      %p44 = scmp.eq.s32.totalorder %s20, 7
      %p45 = scmp.ne.s32.totalorder %s40, %s42
      %p46 = scmp.eq.s32.totalorder %s20, 0
      %p47 = por %p45, %p46
      %p48 = scmp.ne.s32.totalorder %s40, %s42
      %p49 = scmp.eq.s32.totalorder %s25, 7
      %p50 = por %p48, %p49
      %p51 = scmp.ne.s32.totalorder %s42, %s43
      %p52 = scmp.eq.s32.totalorder %s25, 0
      %p53 = por %p51, %p52
      %p54 = scmp.ne.s32.totalorder %s42, %s43
      %p55 = scmp.eq.s32.totalorder %s26, 7
      %p56 = por %p54, %p55
      %p58 = scmp.ne.s32.totalorder %s43, %s57
      %p59 = scmp.eq.s32.totalorder %s26, 0
      %p60 = por %p58, %p59
      %s62 = sadd.s32 %s61, 1
      %p65 = scmp.eq.s32.totalorder %s20, 7
      %p66 = scmp.ne.s32.totalorder %s61, %s63
      %p67 = scmp.eq.s32.totalorder %s20, 0
      %p68 = por %p66, %p67
      %p69 = scmp.ne.s32.totalorder %s61, %s63
      %p70 = scmp.eq.s32.totalorder %s25, 7
      %p71 = por %p69, %p70
      %p72 = scmp.ne.s32.totalorder %s63, %s64
      %p73 = scmp.eq.s32.totalorder %s25, 0
      %p74 = por %p72, %p73
      %p75 = scmp.ne.s32.totalorder %s63, %s64
      %p76 = scmp.eq.s32.totalorder %s26, 7
      %p77 = por %p75, %p76
      %p79 = scmp.ne.s32.totalorder %s64, %s78
      %p80 = scmp.eq.s32.totalorder %s26, 0
      %p81 = por %p79, %p80
      %s83 = sadd.s32 %s82, 1
      %p86 = scmp.eq.s32.totalorder %s20, 7
      %p87 = scmp.ne.s32.totalorder %s82, %s84
      %p88 = scmp.eq.s32.totalorder %s20, 0
      %p89 = por %p87, %p88
      %p90 = scmp.ne.s32.totalorder %s82, %s84
      %p91 = scmp.eq.s32.totalorder %s25, 7
      %p92 = por %p90, %p91
      %p93 = scmp.ne.s32.totalorder %s84, %s85
      %p94 = scmp.eq.s32.totalorder %s25, 0
      %p95 = por %p93, %p94
      %p96 = scmp.ne.s32.totalorder %s84, %s85
      %p97 = scmp.eq.s32.totalorder %s26, 7
      %p98 = por %p96, %p97
      %p100 = scmp.ne.s32.totalorder %s85, %s99
      %p101 = scmp.eq.s32.totalorder %s26, 0
      %p102 = por %p100, %p101
      %s104 = sadd.s32 %s103, 1
      %p107 = scmp.eq.s32.totalorder %s20, 7
      %p108 = scmp.ne.s32.totalorder %s103, %s105
      %p109 = scmp.eq.s32.totalorder %s20, 0
      %p110 = por %p108, %p109
      %p111 = scmp.ne.s32.totalorder %s103, %s105
      %p112 = scmp.eq.s32.totalorder %s25, 7
      %p113 = por %p111, %p112
      %p114 = scmp.ne.s32.totalorder %s105, %s106
      %p115 = scmp.eq.s32.totalorder %s25, 0
      %p116 = por %p114, %p115
      %p117 = scmp.ne.s32.totalorder %s105, %s106
      %p118 = scmp.eq.s32.totalorder %s26, 7
      %p119 = por %p117, %p118
      %p121 = scmp.ne.s32.totalorder %s106, %s120
      %p122 = scmp.eq.s32.totalorder %s26, 0
      %p123 = por %p121, %p122
      %s124 = ssub.s32 %s27, %s39
      %s125 = ssub.s32 %s28, %s35
      %s126 = sor.u32 %s124, %s125
      %p127 = scmp.eq.s32.totalorder %s126, 0
      %s129 = sadd.s32 %s128, 1
      %s130 = scalar_select %p127, %s128, %s129
      %p133 = pneg %p127
      %p134 = scmp.eq.s32.totalorder %s20, 7
      %p135 = por %p133, %p134
      %p136 = scmp.ne.s32.totalorder %s128, %s131
      %p137 = scmp.eq.s32.totalorder %s20, 0
      %p138 = por %p136, %p137
      %p139 = scmp.ne.s32.totalorder %s128, %s131
      %p140 = scmp.eq.s32.totalorder %s25, 7
      %p141 = por %p139, %p140
      %p142 = scmp.ne.s32.totalorder %s131, %s132
      %p143 = scmp.eq.s32.totalorder %s25, 0
      %p144 = por %p142, %p143
      %p145 = scmp.ne.s32.totalorder %s131, %s132
      %p146 = scmp.eq.s32.totalorder %s26, 7
      %p147 = por %p145, %p146
      %p149 = scmp.ne.s32.totalorder %s132, %s148
      %p150 = scmp.eq.s32.totalorder %s26, 0
      %p151 = por %p149, %p150
      %s152 = ssub.s32 %s27, %s39
      %s153 = ssub.s32 %s28, %s35
      %s154 = sor.u32 %s152, %s153
      %p155 = scmp.eq.s32.totalorder %s154, 0
      %s157 = sadd.s32 %s156, 1
      %s158 = scalar_select %p155, %s156, %s157
      %p161 = pneg %p155
      %p162 = scmp.eq.s32.totalorder %s20, 7
      %p163 = por %p161, %p162
      %p164 = scmp.ne.s32.totalorder %s156, %s159
      %p165 = scmp.eq.s32.totalorder %s20, 0
      %p166 = por %p164, %p165
      %p167 = scmp.ne.s32.totalorder %s156, %s159
      %p168 = scmp.eq.s32.totalorder %s25, 7
      %p169 = por %p167, %p168
      %p170 = scmp.ne.s32.totalorder %s159, %s160
      %p171 = scmp.eq.s32.totalorder %s25, 0
      %p172 = por %p170, %p171
      %p173 = scmp.ne.s32.totalorder %s159, %s160
      %p174 = scmp.eq.s32.totalorder %s26, 7
      %p175 = por %p173, %p174
      %p177 = scmp.ne.s32.totalorder %s160, %s176
      %p178 = scmp.eq.s32.totalorder %s26, 0
      %p179 = por %p177, %p178
      %s181 = sadd.s32 %s180, 1
      %p184 = scmp.eq.s32.totalorder %s20, 7
      %p185 = scmp.ne.s32.totalorder %s180, %s182
      %p186 = scmp.eq.s32.totalorder %s20, 0
      %p187 = por %p185, %p186
      %p188 = scmp.ne.s32.totalorder %s180, %s182
      %p189 = scmp.eq.s32.totalorder %s25, 7
      %p190 = por %p188, %p189
      %p191 = scmp.ne.s32.totalorder %s182, %s183
      %p192 = scmp.eq.s32.totalorder %s25, 0
      %p193 = por %p191, %p192
      %p194 = scmp.ne.s32.totalorder %s182, %s183
      %p195 = scmp.eq.s32.totalorder %s26, 7
      %p196 = por %p194, %p195
      %p198 = scmp.ne.s32.totalorder %s183, %s197
      %p199 = scmp.eq.s32.totalorder %s26, 0
      %p200 = por %p198, %p199
      %s202 = sadd.s32 %s201, 1
      %p205 = scmp.eq.s32.totalorder %s20, 7
      %p206 = scmp.ne.s32.totalorder %s201, %s203
      %p207 = scmp.eq.s32.totalorder %s20, 0
      %p208 = por %p206, %p207
      %p209 = scmp.ne.s32.totalorder %s201, %s203
      %p210 = scmp.eq.s32.totalorder %s25, 7
      %p211 = por %p209, %p210
      %p212 = scmp.ne.s32.totalorder %s203, %s204
      %p213 = scmp.eq.s32.totalorder %s25, 0
      %p214 = por %p212, %p213
      %p215 = scmp.ne.s32.totalorder %s203, %s204
      %p216 = scmp.eq.s32.totalorder %s26, 7
      %p217 = por %p215, %p216
      %p219 = scmp.ne.s32.totalorder %s204, %s218
      %p220 = scmp.eq.s32.totalorder %s26, 0
      %p221 = por %p219, %p220
      %s222 = ssub.s32 %s27, %s39
      %s223 = ssub.s32 %s28, %s35
      %s224 = sor.u32 %s222, %s223
      %p225 = scmp.eq.s32.totalorder %s224, 0
      %s227 = sadd.s32 %s226, 1
      %s228 = scalar_select %p225, %s226, %s227
      %p231 = pneg %p225
      %p232 = scmp.eq.s32.totalorder %s20, 7
      %p233 = por %p231, %p232
      %p234 = scmp.ne.s32.totalorder %s226, %s229
      %p235 = scmp.eq.s32.totalorder %s20, 0
      %p236 = por %p234, %p235
      %p237 = scmp.ne.s32.totalorder %s226, %s229
      %p238 = scmp.eq.s32.totalorder %s25, 7
      %p239 = por %p237, %p238
      %p240 = scmp.ne.s32.totalorder %s229, %s230
      %p241 = scmp.eq.s32.totalorder %s25, 0
      %p242 = por %p240, %p241
      %p243 = scmp.ne.s32.totalorder %s229, %s230
      %p244 = scmp.eq.s32.totalorder %s26, 7
      %p245 = por %p243, %p244
      %p247 = scmp.ne.s32.totalorder %s230, %s246
      %p248 = scmp.eq.s32.totalorder %s26, 0
      %p249 = por %p247, %p248
      %p250 = scmp.le.s32.totalorder 1, %s20
      %p251 = scmp.lt.s32.totalorder %s20, 9
      %p252 = pnand %p250, %p251
      %p253 = pneg %p252
      // Predicated region
      $region9: #{upsample_mod_forward.3} parent=5 // pred_check
        _
      $region10: #{upsample_mod_forward.3} parent=5 // pred_check_branch
        %255 = sbr.rel (%p252) target = $region12
      $region11: #{upsample_mod_forward.3} parent=5 // pred_region
        %s256 = ssub.s32 %s20, 1
        // Predicated region
        $region13: #{upsample_mod_forward.3} parent=11 // pred_check
          %p257 = pneg %p53
        $region14: #{upsample_mod_forward.3} parent=11 // pred_check_branch
          %259 = sbr.rel (%p257) target = $region16
        $region15: #{upsample_mod_forward.3} parent=11 // pred_region
          %s261 = ssub.s32 64, 64
          %262 = vsyncadd [#allocation4], %s261
          %s264 = sshll.u32 %s0, 4
          %s265 = int_to_ptr.vmem [resolvable:$true] %s264
          %267 = dma.vmem_to_smem %s265, 64, [#allocation2], [#allocation4]
        $region16: #{upsample_mod_forward.3} parent=11 // pred_fallthru
          _
        // Predicated region
        $region17: #{upsample_mod_forward.3} parent=11 // pred_check
          %p268 = pneg %p74
        $region18: #{upsample_mod_forward.3} parent=11 // pred_check_branch
          %270 = sbr.rel (%p268) target = $region20
        $region19: #{upsample_mod_forward.3} parent=11 // pred_region
          %s272 = ssub.s32 16, 16
          %273 = vsyncadd [#allocation6], %s272
          %s275 = sshll.u32 %s1, 4
          %s276 = int_to_ptr.vmem [resolvable:$true] %s275
          %278 = dma.vmem_to_smem %s276, 16, [#allocation5], [#allocation6]
        $region20: #{upsample_mod_forward.3} parent=11 // pred_fallthru
          _
        // Predicated region
        $region21: #{upsample_mod_forward.3} parent=11 // pred_check
          %p279 = pneg %p95
        $region22: #{upsample_mod_forward.3} parent=11 // pred_check_branch
          %281 = sbr.rel (%p279) target = $region24
        $region23: #{upsample_mod_forward.3} parent=11 // pred_region
          %s283 = ssub.s32 16, 16
          %284 = vsyncadd [#allocation6], %s283
          %s286 = sshll.u32 %s2, 4
          %s287 = int_to_ptr.vmem [resolvable:$true] %s286
          %289 = dma.vmem_to_smem %s287, 16, [#allocation7], [#allocation6]
        $region24: #{upsample_mod_forward.3} parent=11 // pred_fallthru
          _
        // Predicated region
        $region25: #{upsample_mod_forward.3} parent=11 // pred_check
          %p290 = pneg %p116
        $region26: #{upsample_mod_forward.3} parent=11 // pred_check_branch
          %292 = sbr.rel (%p290) target = $region28
        $region27: #{upsample_mod_forward.3} parent=11 // pred_region
          %s294 = ssub.s32 16, 16
          %295 = vsyncadd [#allocation9], %s294
          %s297 = sshll.u32 %s3, 4
          %s298 = int_to_ptr.vmem [resolvable:$true] %s297
          %300 = dma.vmem_to_smem %s298, 16, [#allocation8], [#allocation9]
        $region28: #{upsample_mod_forward.3} parent=11 // pred_fallthru
          _
        // Predicated region
        $region29: #{upsample_mod_forward.3} parent=11 // pred_check
          %p301 = pneg %p193
        $region30: #{upsample_mod_forward.3} parent=11 // pred_check_branch
          %303 = sbr.rel (%p301) target = $region32
        $region31: #{upsample_mod_forward.3} parent=11 // pred_region
          _
        $region32: #{upsample_mod_forward.3} parent=11 // pred_fallthru
          _
        // Predicated region
        $region33: #{upsample_mod_forward.3} parent=11 // pred_check
          %p304 = pneg %p214
        $region34: #{upsample_mod_forward.3} parent=11 // pred_check_branch
          %306 = sbr.rel (%p304) target = $region36
        $region35: #{upsample_mod_forward.3} parent=11 // pred_region
          _
        $region36: #{upsample_mod_forward.3} parent=11 // pred_fallthru
          _
      $region12: #{upsample_mod_forward.3} parent=5 // pred_fallthru
        _
      %p307 = scmp.lt.s32.totalorder %s20, 8
      // Predicated region
      $region37: #{upsample_mod_forward.3} parent=5 // pred_check
        %p308 = pneg %p307
      $region38: #{upsample_mod_forward.3} parent=5 // pred_check_branch
        %310 = sbr.rel (%p308) target = $region40
      $region39: #{upsample_mod_forward.3} parent=5 // pred_region
        // Predicated region
        $region41: #{upsample_mod_forward.3} parent=39 // pred_check
          %p311 = pneg %p138
        $region42: #{upsample_mod_forward.3} parent=39 // pred_check_branch
          %313 = sbr.rel (%p311) target = $region44
        $region43: #{upsample_mod_forward.3} parent=39 // pred_region
          %s314 = sand.u32 %s128, 1
          %s315 = sand.u32 %s128, 1
          %s316 = smul.addr %s315, 64
          %s317 = scalar_lea.vmem [#allocation10], %s316
          %s318 = smul.addr %s28, 2
          %s319 = smul.addr %s27, 32
          %s320 = sadd.s32 %s318, %s319
          %s321 = smul.addr %s320, 8
          %s322 = scalar_lea.vmem %s4, %s321
          // Predicated region
          $region45: #{upsample_mod_forward.3} parent=43 // pred_check
            _
          $region46: #{upsample_mod_forward.3} parent=43 // pred_check_branch
            %324 = sbr.rel (0) target = $region48
          $region47: #{upsample_mod_forward.3} parent=43 // pred_region
            // Predicated region
            $region49: #{upsample_mod_forward.3} parent=47 // pred_check
              _
            $region50: #{upsample_mod_forward.3} parent=47 // pred_check_branch
              %326 = sbr.rel (0) target = $region52
            $region51: #{upsample_mod_forward.3} parent=47 // pred_region
              // Predicated region
              $region64: #{upsample_mod_forward.3} parent=51 // pred_check
                _
              $region65: #{upsample_mod_forward.3} parent=51 // pred_check_branch
                %356 = sbr.rel (0) target = $region67
              $region66: #{upsample_mod_forward.3} parent=51 // pred_region
                loop: start=0, step=1, limit=1
                $region68: #{upsample_mod_forward.3} parent=66 // loop_pre_header
                  _
                $region69: #{upsample_mod_forward.3} parent=66 // loop_header
                  %s358 = sphi 0, %s362
                  %p359 = scmp.ge.s32.totalorder %s358, 1
                  %s363 = sphi %s322, %s322
                  %s364 = sphi %s317, %s317
                $region70: #{upsample_mod_forward.3} parent=66 // loop_header_branch
                  %361 = sbr.rel (%p359) target = $region74
                $region71: #{upsample_mod_forward.3} parent=66 // loop_body
                  %v365 = vld [vmem:[%s363] sm:$0xff]
                  %366 = vst [vmem:[%s364] sm:$0xff] %v365
                  %v367 = vld [vmem:[%s363 + $0x8] sm:$0xff]
                  %368 = vst [vmem:[%s364 + $0x8] sm:$0xff] %v367
                  %v369 = vld [vmem:[%s363 + $0x40] sm:$0xff]
                  %370 = vst [vmem:[%s364 + $0x10] sm:$0xff] %v369
                  %v371 = vld [vmem:[%s363 + $0x48] sm:$0xff]
                  %372 = vst [vmem:[%s364 + $0x18] sm:$0xff] %v371
                  %v373 = vld [vmem:[%s363 + $0x80] sm:$0xff]
                  %374 = vst [vmem:[%s364 + $0x20] sm:$0xff] %v373
                  %v375 = vld [vmem:[%s363 + $0x88] sm:$0xff]
                  %376 = vst [vmem:[%s364 + $0x28] sm:$0xff] %v375
                  %v377 = vld [vmem:[%s363 + $0xc0] sm:$0xff]
                  %378 = vst [vmem:[%s364 + $0x30] sm:$0xff] %v377
                  %v379 = vld [vmem:[%s363 + $0xc8] sm:$0xff]
                  %380 = vst [vmem:[%s364 + $0x38] sm:$0xff] %v379
                $region72: #{upsample_mod_forward.3} parent=66 // loop_footer
                  %s362 = sadd.s32 1, %s358
                $region73: #{upsample_mod_forward.3} parent=66 // loop_footer_branch
                  %357 = sbr.rel target = $region69
                $region74: #{upsample_mod_forward.3} parent=66 // loop_exit
                  _
              $region67: #{upsample_mod_forward.3} parent=51 // pred_fallthru
                _
              // Predicated region
              $region75: #{upsample_mod_forward.3} parent=51 // pred_check
                _
              $region76: #{upsample_mod_forward.3} parent=51 // pred_check_branch
                %382 = sbr.rel target = $region78
              $region77: #{upsample_mod_forward.3} parent=51 // pred_region
                _
              $region78: #{upsample_mod_forward.3} parent=51 // pred_fallthru
                _
            $region52: #{upsample_mod_forward.3} parent=47 // pred_fallthru
              _
            // Predicated region
            $region53: #{upsample_mod_forward.3} parent=47 // pred_check
              _
            $region54: #{upsample_mod_forward.3} parent=47 // pred_check_branch
              %328 = sbr.rel target = $region56
            $region55: #{upsample_mod_forward.3} parent=47 // pred_region
              %s330 = ssub.s32 256, 1
              loop: start=0, step=1, limit=1
              $region57: #{upsample_mod_forward.3} parent=55 // loop_pre_header
                _
              $region58: #{upsample_mod_forward.3} parent=55 // loop_header
                %s332 = sphi 0, %s336
                %p333 = scmp.ge.s32.totalorder %s332, 1
                %s337 = sphi %s322, %s322
                %s338 = sphi %s317, %s317
              $region59: #{upsample_mod_forward.3} parent=55 // loop_header_branch
                %335 = sbr.rel (%p333) target = $region63
              $region60: #{upsample_mod_forward.3} parent=55 // loop_body
                %v339 = vld [vmem:[%s337] sm:%s330]
                %340 = vst [vmem:[%s338] sm:%s330] %v339
                %v341 = vld [vmem:[%s337 + $0x8] sm:%s330]
                %342 = vst [vmem:[%s338 + $0x8] sm:%s330] %v341
                %v343 = vld [vmem:[%s337 + $0x40] sm:%s330]
                %344 = vst [vmem:[%s338 + $0x10] sm:%s330] %v343
                %v345 = vld [vmem:[%s337 + $0x48] sm:%s330]
                %346 = vst [vmem:[%s338 + $0x18] sm:%s330] %v345
                %v347 = vld [vmem:[%s337 + $0x80] sm:%s330]
                %348 = vst [vmem:[%s338 + $0x20] sm:%s330] %v347
                %v349 = vld [vmem:[%s337 + $0x88] sm:%s330]
                %350 = vst [vmem:[%s338 + $0x28] sm:%s330] %v349
                %v351 = vld [vmem:[%s337 + $0xc0] sm:%s330]
                %352 = vst [vmem:[%s338 + $0x30] sm:%s330] %v351
                %v353 = vld [vmem:[%s337 + $0xc8] sm:%s330]
                %354 = vst [vmem:[%s338 + $0x38] sm:%s330] %v353
              $region61: #{upsample_mod_forward.3} parent=55 // loop_footer
                %s336 = sadd.s32 1, %s332
              $region62: #{upsample_mod_forward.3} parent=55 // loop_footer_branch
                %331 = sbr.rel target = $region58
              $region63: #{upsample_mod_forward.3} parent=55 // loop_exit
                _
            $region56: #{upsample_mod_forward.3} parent=47 // pred_fallthru
              _
          $region48: #{upsample_mod_forward.3} parent=43 // pred_fallthru
            _
          %383 = vnop
        $region44: #{upsample_mod_forward.3} parent=39 // pred_fallthru
          _
        // Predicated region
        $region79: #{upsample_mod_forward.3} parent=39 // pred_check
          %p384 = pneg %p166
        $region80: #{upsample_mod_forward.3} parent=39 // pred_check_branch
          %386 = sbr.rel (%p384) target = $region82
        $region81: #{upsample_mod_forward.3} parent=39 // pred_region
          %s387 = sand.u32 %s156, 1
          %s388 = sand.u32 %s156, 1
          %s389 = smul.addr %s388, 128
          %s390 = scalar_lea.vmem [#allocation11], %s389
          %s391 = smul.addr %s28, 4
          %s392 = smul.addr %s27, 64
          %s393 = sadd.s32 %s391, %s392
          %s394 = smul.addr %s393, 8
          %s395 = scalar_lea.vmem %s5, %s394
          // Predicated region
          $region83: #{upsample_mod_forward.3} parent=81 // pred_check
            _
          $region84: #{upsample_mod_forward.3} parent=81 // pred_check_branch
            %397 = sbr.rel (0) target = $region86
          $region85: #{upsample_mod_forward.3} parent=81 // pred_region
            // Predicated region
            $region87: #{upsample_mod_forward.3} parent=85 // pred_check
              _
            $region88: #{upsample_mod_forward.3} parent=85 // pred_check_branch
              %399 = sbr.rel (0) target = $region90
            $region89: #{upsample_mod_forward.3} parent=85 // pred_region
              // Predicated region
              $region102: #{upsample_mod_forward.3} parent=89 // pred_check
                _
              $region103: #{upsample_mod_forward.3} parent=89 // pred_check_branch
                %445 = sbr.rel (0) target = $region105
              $region104: #{upsample_mod_forward.3} parent=89 // pred_region
                loop: start=0, step=1, limit=1
                $region106: #{upsample_mod_forward.3} parent=104 // loop_pre_header
                  _
                $region107: #{upsample_mod_forward.3} parent=104 // loop_header
                  %s447 = sphi 0, %s451
                  %p448 = scmp.ge.s32.totalorder %s447, 1
                  %s452 = sphi %s395, %s395
                  %s453 = sphi %s390, %s390
                $region108: #{upsample_mod_forward.3} parent=104 // loop_header_branch
                  %450 = sbr.rel (%p448) target = $region112
                $region109: #{upsample_mod_forward.3} parent=104 // loop_body
                  %v454 = vld [vmem:[%s452] sm:$0xff]
                  %455 = vst [vmem:[%s453] sm:$0xff] %v454
                  %v456 = vld [vmem:[%s452 + $0x8] sm:$0xff]
                  %457 = vst [vmem:[%s453 + $0x8] sm:$0xff] %v456
                  %v458 = vld [vmem:[%s452 + $0x10] sm:$0xff]
                  %459 = vst [vmem:[%s453 + $0x10] sm:$0xff] %v458
                  %v460 = vld [vmem:[%s452 + $0x18] sm:$0xff]
                  %461 = vst [vmem:[%s453 + $0x18] sm:$0xff] %v460
                  %v462 = vld [vmem:[%s452 + $0x80] sm:$0xff]
                  %463 = vst [vmem:[%s453 + $0x20] sm:$0xff] %v462
                  %v464 = vld [vmem:[%s452 + $0x88] sm:$0xff]
                  %465 = vst [vmem:[%s453 + $0x28] sm:$0xff] %v464
                  %v466 = vld [vmem:[%s452 + $0x90] sm:$0xff]
                  %467 = vst [vmem:[%s453 + $0x30] sm:$0xff] %v466
                  %v468 = vld [vmem:[%s452 + $0x98] sm:$0xff]
                  %469 = vst [vmem:[%s453 + $0x38] sm:$0xff] %v468
                  %v470 = vld [vmem:[%s452 + $0x100] sm:$0xff]
                  %471 = vst [vmem:[%s453 + $0x40] sm:$0xff] %v470
                  %v472 = vld [vmem:[%s452 + $0x108] sm:$0xff]
                  %473 = vst [vmem:[%s453 + $0x48] sm:$0xff] %v472
                  %v474 = vld [vmem:[%s452 + $0x110] sm:$0xff]
                  %475 = vst [vmem:[%s453 + $0x50] sm:$0xff] %v474
                  %v476 = vld [vmem:[%s452 + $0x118] sm:$0xff]
                  %477 = vst [vmem:[%s453 + $0x58] sm:$0xff] %v476
                  %v478 = vld [vmem:[%s452 + $0x180] sm:$0xff]
                  %479 = vst [vmem:[%s453 + $0x60] sm:$0xff] %v478
                  %v480 = vld [vmem:[%s452 + $0x188] sm:$0xff]
                  %481 = vst [vmem:[%s453 + $0x68] sm:$0xff] %v480
                  %v482 = vld [vmem:[%s452 + $0x190] sm:$0xff]
                  %483 = vst [vmem:[%s453 + $0x70] sm:$0xff] %v482
                  %v484 = vld [vmem:[%s452 + $0x198] sm:$0xff]
                  %485 = vst [vmem:[%s453 + $0x78] sm:$0xff] %v484
                $region110: #{upsample_mod_forward.3} parent=104 // loop_footer
                  %s451 = sadd.s32 1, %s447
                $region111: #{upsample_mod_forward.3} parent=104 // loop_footer_branch
                  %446 = sbr.rel target = $region107
                $region112: #{upsample_mod_forward.3} parent=104 // loop_exit
                  _
              $region105: #{upsample_mod_forward.3} parent=89 // pred_fallthru
                _
              // Predicated region
              $region113: #{upsample_mod_forward.3} parent=89 // pred_check
                _
              $region114: #{upsample_mod_forward.3} parent=89 // pred_check_branch
                %487 = sbr.rel target = $region116
              $region115: #{upsample_mod_forward.3} parent=89 // pred_region
                _
              $region116: #{upsample_mod_forward.3} parent=89 // pred_fallthru
                _
            $region90: #{upsample_mod_forward.3} parent=85 // pred_fallthru
              _
            // Predicated region
            $region91: #{upsample_mod_forward.3} parent=85 // pred_check
              _
            $region92: #{upsample_mod_forward.3} parent=85 // pred_check_branch
              %401 = sbr.rel target = $region94
            $region93: #{upsample_mod_forward.3} parent=85 // pred_region
              %s403 = ssub.s32 256, 1
              loop: start=0, step=1, limit=1
              $region95: #{upsample_mod_forward.3} parent=93 // loop_pre_header
                _
              $region96: #{upsample_mod_forward.3} parent=93 // loop_header
                %s405 = sphi 0, %s409
                %p406 = scmp.ge.s32.totalorder %s405, 1
                %s410 = sphi %s395, %s395
                %s411 = sphi %s390, %s390
              $region97: #{upsample_mod_forward.3} parent=93 // loop_header_branch
                %408 = sbr.rel (%p406) target = $region101
              $region98: #{upsample_mod_forward.3} parent=93 // loop_body
                %v412 = vld [vmem:[%s410] sm:%s403]
                %413 = vst [vmem:[%s411] sm:%s403] %v412
                %v414 = vld [vmem:[%s410 + $0x8] sm:%s403]
                %415 = vst [vmem:[%s411 + $0x8] sm:%s403] %v414
                %v416 = vld [vmem:[%s410 + $0x10] sm:%s403]
                %417 = vst [vmem:[%s411 + $0x10] sm:%s403] %v416
                %v418 = vld [vmem:[%s410 + $0x18] sm:%s403]
                %419 = vst [vmem:[%s411 + $0x18] sm:%s403] %v418
                %v420 = vld [vmem:[%s410 + $0x80] sm:%s403]
                %421 = vst [vmem:[%s411 + $0x20] sm:%s403] %v420
                %v422 = vld [vmem:[%s410 + $0x88] sm:%s403]
                %423 = vst [vmem:[%s411 + $0x28] sm:%s403] %v422
                %v424 = vld [vmem:[%s410 + $0x90] sm:%s403]
                %425 = vst [vmem:[%s411 + $0x30] sm:%s403] %v424
                %v426 = vld [vmem:[%s410 + $0x98] sm:%s403]
                %427 = vst [vmem:[%s411 + $0x38] sm:%s403] %v426
                %v428 = vld [vmem:[%s410 + $0x100] sm:%s403]
                %429 = vst [vmem:[%s411 + $0x40] sm:%s403] %v428
                %v430 = vld [vmem:[%s410 + $0x108] sm:%s403]
                %431 = vst [vmem:[%s411 + $0x48] sm:%s403] %v430
                %v432 = vld [vmem:[%s410 + $0x110] sm:%s403]
                %433 = vst [vmem:[%s411 + $0x50] sm:%s403] %v432
                %v434 = vld [vmem:[%s410 + $0x118] sm:%s403]
                %435 = vst [vmem:[%s411 + $0x58] sm:%s403] %v434
                %v436 = vld [vmem:[%s410 + $0x180] sm:%s403]
                %437 = vst [vmem:[%s411 + $0x60] sm:%s403] %v436
                %v438 = vld [vmem:[%s410 + $0x188] sm:%s403]
                %439 = vst [vmem:[%s411 + $0x68] sm:%s403] %v438
                %v440 = vld [vmem:[%s410 + $0x190] sm:%s403]
                %441 = vst [vmem:[%s411 + $0x70] sm:%s403] %v440
                %v442 = vld [vmem:[%s410 + $0x198] sm:%s403]
                %443 = vst [vmem:[%s411 + $0x78] sm:%s403] %v442
              $region99: #{upsample_mod_forward.3} parent=93 // loop_footer
                %s409 = sadd.s32 1, %s405
              $region100: #{upsample_mod_forward.3} parent=93 // loop_footer_branch
                %404 = sbr.rel target = $region96
              $region101: #{upsample_mod_forward.3} parent=93 // loop_exit
                _
            $region94: #{upsample_mod_forward.3} parent=85 // pred_fallthru
              _
          $region86: #{upsample_mod_forward.3} parent=81 // pred_fallthru
            _
          %488 = vnop
        $region82: #{upsample_mod_forward.3} parent=39 // pred_fallthru
          _
      $region40: #{upsample_mod_forward.3} parent=5 // pred_fallthru
        _
      %p489 = scmp.le.s32.totalorder 1, %s20
      %p490 = scmp.lt.s32.totalorder %s20, 9
      %p491 = pnand %p489, %p490
      %p492 = pneg %p491
      // Predicated region
      $region117: #{upsample_mod_forward.3} parent=5 // pred_check
        _
      $region118: #{upsample_mod_forward.3} parent=5 // pred_check_branch
        %494 = sbr.rel (%p491) target = $region120
      $region119: #{upsample_mod_forward.3} parent=5 // pred_region
        %s495 = ssub.s32 %s20, 1
        // Predicated region
        $region121: #{upsample_mod_forward.3} parent=119 // pred_check
          %p496 = pneg %p53
        $region122: #{upsample_mod_forward.3} parent=119 // pred_check_branch
          %498 = sbr.rel (%p496) target = $region124
        $region123: #{upsample_mod_forward.3} parent=119 // pred_region
          %499 = dma.done [#allocation4], 64
        $region124: #{upsample_mod_forward.3} parent=119 // pred_fallthru
          _
        // Predicated region
        $region125: #{upsample_mod_forward.3} parent=119 // pred_check
          %p500 = pneg %p74
        $region126: #{upsample_mod_forward.3} parent=119 // pred_check_branch
          %502 = sbr.rel (%p500) target = $region128
        $region127: #{upsample_mod_forward.3} parent=119 // pred_region
          %503 = dma.done [#allocation6], 16
        $region128: #{upsample_mod_forward.3} parent=119 // pred_fallthru
          _
        // Predicated region
        $region129: #{upsample_mod_forward.3} parent=119 // pred_check
          %p504 = pneg %p95
        $region130: #{upsample_mod_forward.3} parent=119 // pred_check_branch
          %506 = sbr.rel (%p504) target = $region132
        $region131: #{upsample_mod_forward.3} parent=119 // pred_region
          %507 = dma.done [#allocation6], 16
        $region132: #{upsample_mod_forward.3} parent=119 // pred_fallthru
          _
        // Predicated region
        $region133: #{upsample_mod_forward.3} parent=119 // pred_check
          %p508 = pneg %p116
        $region134: #{upsample_mod_forward.3} parent=119 // pred_check_branch
          %510 = sbr.rel (%p508) target = $region136
        $region135: #{upsample_mod_forward.3} parent=119 // pred_region
          %511 = dma.done [#allocation9], 16
        $region136: #{upsample_mod_forward.3} parent=119 // pred_fallthru
          _
        %s512 = sand.u32 %s131, 1
        %s513 = sand.u32 %s131, 1
        %s514 = smul.addr %s513, 64
        %s515 = scalar_lea.vmem [#allocation10], %s514
        // Predicated region
        $region137: #{upsample_mod_forward.3} parent=119 // pred_check
          %p516 = pneg %p144
        $region138: #{upsample_mod_forward.3} parent=119 // pred_check_branch
          %518 = sbr.rel (%p516) target = $region140
        $region139: #{upsample_mod_forward.3} parent=119 // pred_region
          _
        $region140: #{upsample_mod_forward.3} parent=119 // pred_fallthru
          _
        %s519 = sand.u32 %s159, 1
        %s520 = sand.u32 %s159, 1
        %s521 = smul.addr %s520, 128
        %s522 = scalar_lea.vmem [#allocation11], %s521
        // Predicated region
        $region141: #{upsample_mod_forward.3} parent=119 // pred_check
          %p523 = pneg %p172
        $region142: #{upsample_mod_forward.3} parent=119 // pred_check_branch
          %525 = sbr.rel (%p523) target = $region144
        $region143: #{upsample_mod_forward.3} parent=119 // pred_region
          _
        $region144: #{upsample_mod_forward.3} parent=119 // pred_fallthru
          _
        %526 = sfence
        %p527 = pneg %p53
        %p528 = pneg %p50
        %p529 = pneg %p74
        %p530 = pneg %p71
        %p531 = pneg %p95
        %p532 = pneg %p92
        %p533 = pneg %p116
        %p534 = pneg %p113
        %s535 = sand.u32 %s131, 1
        %s536 = sand.u32 %s131, 1
        %s537 = smul.addr %s536, 64
        %s538 = scalar_lea.vmem [#allocation10], %s537
        %p539 = pneg %p144
        %p540 = pneg %p141
        %s541 = sand.u32 %s159, 1
        %s542 = sand.u32 %s159, 1
        %s543 = smul.addr %s542, 128
        %s544 = scalar_lea.vmem [#allocation11], %s543
        %p545 = pneg %p172
        %p546 = pneg %p169
        %p547 = pneg %p193
        %p548 = pneg %p190
        %p549 = pneg %p214
        %p550 = pneg %p211
        %p551 = pneg %p242
        %p552 = pneg %p239
        %s553 = sand.u32 %s229, 1
        %s554 = scalar_lea.sflag [#allocation3], %s553
        %s555 = sand.u32 %s229, 1
        %s556 = smul.addr %s555, 128
        %s557 = scalar_lea.vmem [#allocation12], %s556
        %v558 = vld [vmem:[%s515] sm:$0xff]
        %v559 = vld [vmem:[%s515 + $0x8] sm:$0xff]
        %s560 = scalar_lea.vmem %s515, 16 [#allocation10]
        %v561 = vld [vmem:[%s560] sm:$0xff]
        %v562 = vld [vmem:[%s560 + $0x8] sm:$0xff]
        %s563 = scalar_lea.vmem %s515, 32 [#allocation10]
        %v564 = vld [vmem:[%s563] sm:$0xff]
        %v565 = vld [vmem:[%s563 + $0x8] sm:$0xff]
        %s566 = scalar_lea.vmem %s515, 48 [#allocation10]
        %v567 = vld [vmem:[%s566] sm:$0xff]
        %v568 = vld [vmem:[%s566 + $0x8] sm:$0xff]
        %v569 = vld [vmem:[%s6] sm:$0xff]
        %v570 = vld [vmem:[%s6 + $0x8] sm:$0xff]
        %v571 = vld [vmem:[%s7] sm:$0xff]
        %v572 = vld [vmem:[%s7 + $0x8] sm:$0xff]
        %v573 = vld [vmem:[%s7 + $0x10] sm:$0xff]
        %v574 = vld [vmem:[%s7 + $0x18] sm:$0xff]
        %s575 = sld [smem:[#allocation2]]
        %v576 = vstv %s575
        %v577 = vmul.f32 %v558, %v576
        %v578 = vmul.f32 %v559, %v576
        %s579 = sld [smem:[#allocation2 + $0x1]]
        %v580 = vstv %s579
        %v581 = vmul.f32 %v561, %v580
        %v582 = vmul.f32 %v562, %v580
        %v583 = vadd.f32 %v577, %v581
        %v584 = vadd.f32 %v578, %v582
        %s585 = sld [smem:[#allocation2 + $0x2]]
        %v586 = vstv %s585
        %v587 = vmul.f32 %v564, %v586
        %v588 = vmul.f32 %v565, %v586
        %v589 = vadd.f32 %v583, %v587
        %v590 = vadd.f32 %v584, %v588
        %s591 = sld [smem:[#allocation2 + $0x3]]
        %v592 = vstv %s591
        %v593 = vmul.f32 %v567, %v592
        %v594 = vmul.f32 %v568, %v592
        %v595 = vadd.f32 %v589, %v593
        %v596 = vadd.f32 %v590, %v594
        %vm597 = vcmask 130048
        %v599 = vsel %vm597, %v595, 0
        %v602 = vsel %vm597, %v596, 0
        %604 = vmatprep.subr.mxu0 0.0
        %605 = vmatpush1.msra.mxu0 0.0
        %606 = vmatprep.subr.mxu0 0.0
        %607 = vmatpush1.msra.mxu0 0.0
        %608 = vmatprep.subr.mxu0 0.0
        %609 = vmatpush1.msra.mxu0 0.0
        %610 = vmatprep.subr.mxu0 0.0
        %611 = vmatpush1.msra.mxu0 0.0
        %612 = vmatprep.subr.mxu0 0.0
        %613 = vmatpush1.msra.mxu0 0.0
        %614 = vmatprep.subr.mxu0 0.0
        %615 = vmatpush1.msra.mxu0 0.0
        %616 = vmatprep.subr.mxu0 0.0
        %617 = vmatpush1.msra.mxu0 0.0
        %618 = vmatprep.subr.mxu0 0.0
        %619 = vmatpush1.msra.mxu0 0.0
        %620 = vmatprep.subr.mxu0 0.0
        %621 = vmatpush1.msra.mxu0 0.0
        %622 = vmatprep.subr.mxu0 0.0
        %623 = vmatpush1.msra.mxu0 0.0
        %624 = vmatprep.subr.mxu0 0.0
        %625 = vmatpush1.msra.mxu0 0.0
        %626 = vmatprep.subr.mxu0 0.0
        %627 = vmatpush1.msra.mxu0 0.0
        %628 = vmatprep.subr.mxu0 0.0
        %629 = vmatpush1.msra.mxu0 0.0
        %630 = vmatprep.subr.mxu0 0.0
        %631 = vmatpush1.msra.mxu0 0.0
        %632 = vmatprep.subr.mxu0 0.0
        %633 = vmatpush1.msra.mxu0 %v570
        %634 = vmatprep.subr.mxu0 0.0
        %635 = vmatpush1.msra.mxu0 %v569
        %636 = vmatprep.subr.mxu0 0.0
        %637 = vmatpush2.msra.mxu0 0.0
        %638 = vmatprep.subr.mxu0 0.0
        %639 = vmatpush2.msra.mxu0 0.0
        %640 = vmatprep.subr.mxu0 0.0
        %641 = vmatpush2.msra.mxu0 0.0
        %642 = vmatprep.subr.mxu0 0.0
        %643 = vmatpush2.msra.mxu0 0.0
        %644 = vmatprep.subr.mxu0 0.0
        %645 = vmatpush2.msra.mxu0 0.0
        %646 = vmatprep.subr.mxu0 0.0
        %647 = vmatpush2.msra.mxu0 0.0
        %648 = vmatprep.subr.mxu0 0.0
        %649 = vmatpush2.msra.mxu0 0.0
        %650 = vmatprep.subr.mxu0 0.0
        %651 = vmatpush2.msra.mxu0 0.0
        %652 = vmatprep.subr.mxu0 0.0
        %653 = vmatpush2.msra.mxu0 0.0
        %654 = vmatprep.subr.mxu0 0.0
        %655 = vmatpush2.msra.mxu0 0.0
        %656 = vmatprep.subr.mxu0 0.0
        %657 = vmatpush2.msra.mxu0 0.0
        %658 = vmatprep.subr.mxu0 0.0
        %659 = vmatpush2.msra.mxu0 0.0
        %660 = vmatprep.subr.mxu0 0.0
        %661 = vmatpush2.msra.mxu0 0.0
        %662 = vmatprep.subr.mxu0 0.0
        %663 = vmatpush2.msra.mxu0 0.0
        %664 = vmatprep.subr.mxu0 0.0
        %665 = vmatpush2.msra.mxu0 0.0
        %666 = vmatprep.subr.mxu0 0.0
        %667 = vmatpush2.msra.mxu0 0.0
        %668 = vmatprep.mubr.f32.mxu0 0.0
        %669 = vmatmul.mubr.f32.gmra.mxu0 %v599
        %v670 = vpop.f32.mrf.mxu0
        %v671 = vadd.f32 0.0, %v670
        %v672 = vpop.f32.mrf.mxu0
        %673 = vmatprep.mubr.f32.mxu0 0.0
        %674 = vmatmul.mubr.f32.gmra.mxu0 %v602
        %v675 = vpop.f32.mrf.mxu0
        %v676 = vadd.f32 0.0, %v675
        %v677 = vpop.f32.mrf.mxu0
        %678 = vdwg.mxu0
        %v679 = vld [vmem:[%s522] sm:$0xff]
        %v680 = vld [vmem:[%s522 + $0x8] sm:$0xff]
        %v681 = vld [vmem:[%s522 + $0x10] sm:$0xff]
        %v682 = vld [vmem:[%s522 + $0x18] sm:$0xff]
        %v684 = vsel %vm597, %v571, 0
        %v687 = vsel %vm597, %v572, 0
        %v690 = vsel %vm597, %v573, 0
        %v693 = vsel %vm597, %v574, 0
        %695 = vmatprep.subr.mxu0 0.0
        %696 = vmatpush1.msra.mxu0 0.0
        %697 = vmatprep.subr.mxu0 0.0
        %698 = vmatpush1.msra.mxu0 0.0
        %699 = vmatprep.subr.mxu0 0.0
        %700 = vmatpush1.msra.mxu0 0.0
        %701 = vmatprep.subr.mxu0 0.0
        %702 = vmatpush1.msra.mxu0 0.0
        %703 = vmatprep.subr.mxu0 0.0
        %704 = vmatpush1.msra.mxu0 0.0
        %705 = vmatprep.subr.mxu0 0.0
        %706 = vmatpush1.msra.mxu0 0.0
        %707 = vmatprep.subr.mxu0 0.0
        %708 = vmatpush1.msra.mxu0 0.0
        %709 = vmatprep.subr.mxu0 0.0
        %710 = vmatpush1.msra.mxu0 0.0
        %711 = vmatprep.subr.mxu0 0.0
        %712 = vmatpush1.msra.mxu0 0.0
        %713 = vmatprep.subr.mxu0 0.0
        %714 = vmatpush1.msra.mxu0 0.0
        %715 = vmatprep.subr.mxu0 0.0
        %716 = vmatpush1.msra.mxu0 0.0
        %717 = vmatprep.subr.mxu0 0.0
        %718 = vmatpush1.msra.mxu0 0.0
        %719 = vmatprep.subr.mxu0 0.0
        %720 = vmatpush1.msra.mxu0 0.0
        %721 = vmatprep.subr.mxu0 0.0
        %722 = vmatpush1.msra.mxu0 0.0
        %723 = vmatprep.subr.mxu0 0.0
        %724 = vmatpush1.msra.mxu0 %v676
        %725 = vmatprep.subr.mxu0 0.0
        %726 = vmatpush1.msra.mxu0 %v671
        %727 = vmatprep.subr.mxu0 0.0
        %728 = vmatpush2.msra.mxu0 0.0
        %729 = vmatprep.subr.mxu0 0.0
        %730 = vmatpush2.msra.mxu0 0.0
        %731 = vmatprep.subr.mxu0 0.0
        %732 = vmatpush2.msra.mxu0 0.0
        %733 = vmatprep.subr.mxu0 0.0
        %734 = vmatpush2.msra.mxu0 0.0
        %735 = vmatprep.subr.mxu0 0.0
        %736 = vmatpush2.msra.mxu0 0.0
        %737 = vmatprep.subr.mxu0 0.0
        %738 = vmatpush2.msra.mxu0 0.0
        %739 = vmatprep.subr.mxu0 0.0
        %740 = vmatpush2.msra.mxu0 0.0
        %741 = vmatprep.subr.mxu0 0.0
        %742 = vmatpush2.msra.mxu0 0.0
        %743 = vmatprep.subr.mxu0 0.0
        %744 = vmatpush2.msra.mxu0 0.0
        %745 = vmatprep.subr.mxu0 0.0
        %746 = vmatpush2.msra.mxu0 0.0
        %747 = vmatprep.subr.mxu0 0.0
        %748 = vmatpush2.msra.mxu0 0.0
        %749 = vmatprep.subr.mxu0 0.0
        %750 = vmatpush2.msra.mxu0 0.0
        %751 = vmatprep.subr.mxu0 0.0
        %752 = vmatpush2.msra.mxu0 0.0
        %753 = vmatprep.subr.mxu0 0.0
        %754 = vmatpush2.msra.mxu0 0.0
        %755 = vmatprep.subr.mxu0 0.0
        %756 = vmatpush2.msra.mxu0 0.0
        %757 = vmatprep.subr.mxu0 0.0
        %758 = vmatpush2.msra.mxu0 0.0
        %759 = vmatprep.mubr.f32.mxu0 0.0
        %760 = vmatmul.mubr.f32.gmra.mxu0 %v684
        %v761 = vpop.f32.mrf.mxu0
        %v762 = vadd.f32 %v679, %v761
        %v763 = vpop.f32.mrf.mxu0
        %764 = vmatprep.mubr.f32.mxu0 0.0
        %765 = vmatmul.mubr.f32.gmra.mxu0 %v687
        %v766 = vpop.f32.mrf.mxu0
        %v767 = vadd.f32 %v680, %v766
        %v768 = vpop.f32.mrf.mxu0
        %769 = vmatprep.mubr.f32.mxu0 0.0
        %770 = vmatmul.mubr.f32.gmra.mxu0 %v690
        %v771 = vpop.f32.mrf.mxu0
        %v772 = vadd.f32 %v681, %v771
        %v773 = vpop.f32.mrf.mxu0
        %774 = vmatprep.mubr.f32.mxu0 0.0
        %775 = vmatmul.mubr.f32.gmra.mxu0 %v693
        %v776 = vpop.f32.mrf.mxu0
        %v777 = vadd.f32 %v682, %v776
        %v778 = vpop.f32.mrf.mxu0
        %779 = vdwg.mxu0
        %s780 = sld [smem:[#allocation5]]
        %v781 = vstv %s780
        %v782 = vadd.f32 %v762, %v781
        %v783 = vadd.f32 %v767, %v781
        %v784 = vadd.f32 %v772, %v781
        %v785 = vadd.f32 %v777, %v781
        %s786 = sld [smem:[#allocation7]]
        %v787 = vstv %s786
        %v788 = vmul.f32 %v782, %v787
        %v789 = vmul.f32 %v783, %v787
        %v790 = vmul.f32 %v784, %v787
        %v791 = vmul.f32 %v785, %v787
        %s792 = sld [smem:[#allocation8]]
        %v793 = vstv %s792
        %v794 = vadd.f32 %v788, %v793
        %v795 = vadd.f32 %v789, %v793
        %v796 = vadd.f32 %v790, %v793
        %v797 = vadd.f32 %v791, %v793
        %vm798 = vcmp.gt.f32.partialorder %v794, 0.0
        %vm799 = vcmp.gt.f32.partialorder %v795, 0.0
        %vm800 = vcmp.gt.f32.partialorder %v796, 0.0
        %vm801 = vcmp.gt.f32.partialorder %v797, 0.0
        %v802 = vmin.f32 %v794, 0.0
        %v803 = vmin.f32 %v795, 0.0
        %v804 = vmin.f32 %v796, 0.0
        %v805 = vmin.f32 %v797, 0.0
        %v806 = vmul.f32 %v802, 1.442695
        %v807 = vpow.pop %v806
        %v808 = vmul.f32 %v803, 1.442695
        %v809 = vpow.pop %v808
        %v810 = vmul.f32 %v804, 1.442695
        %v811 = vpow.pop %v810
        %v812 = vmul.f32 %v805, 1.442695
        %v813 = vpow.pop %v812
        %v814 = vsub.f32 %v807, 1.0
        %v815 = vsub.f32 %v809, 1.0
        %v816 = vsub.f32 %v811, 1.0
        %v817 = vsub.f32 %v813, 1.0
        %v818 = vsel %vm798, %v794, %v814
        %v819 = vsel %vm799, %v795, %v815
        %v820 = vsel %vm800, %v796, %v816
        %v821 = vsel %vm801, %v797, %v817
        %vm822 = vcmask 261120
        %823 = vst.msk [vmem:[%s557] sm:$0xff] %vm822, %v818
        %824 = vst.msk [vmem:[%s557 + $0x8] sm:$0xff] %vm822, %v819
        %825 = vst.msk [vmem:[%s557 + $0x10] sm:$0xff] %vm822, %v820
        %826 = vst.msk [vmem:[%s557 + $0x18] sm:$0xff] %vm822, %v821
        %s827 = sld [smem:[#allocation2 + $0x80]]
        %v828 = vstv %s827
        %v829 = vmul.f32 %v558, %v828
        %v830 = vmul.f32 %v559, %v828
        %s831 = sld [smem:[#allocation2 + $0x81]]
        %v832 = vstv %s831
        %v833 = vmul.f32 %v561, %v832
        %v834 = vmul.f32 %v562, %v832
        %v835 = vadd.f32 %v829, %v833
        %v836 = vadd.f32 %v830, %v834
        %s837 = sld [smem:[#allocation2 + $0x82]]
        %v838 = vstv %s837
        %v839 = vmul.f32 %v564, %v838
        %v840 = vmul.f32 %v565, %v838
        %v841 = vadd.f32 %v835, %v839
        %v842 = vadd.f32 %v836, %v840
        %s843 = sld [smem:[#allocation2 + $0x83]]
        %v844 = vstv %s843
        %v845 = vmul.f32 %v567, %v844
        %v846 = vmul.f32 %v568, %v844
        %v847 = vadd.f32 %v841, %v845
        %v848 = vadd.f32 %v842, %v846
        %v850 = vsel %vm597, %v847, 0
        %v853 = vsel %vm597, %v848, 0
        %855 = vmatprep.subr.mxu0 0.0
        %856 = vmatpush1.msra.mxu0 0.0
        %857 = vmatprep.subr.mxu0 0.0
        %858 = vmatpush1.msra.mxu0 0.0
        %859 = vmatprep.subr.mxu0 0.0
        %860 = vmatpush1.msra.mxu0 0.0
        %861 = vmatprep.subr.mxu0 0.0
        %862 = vmatpush1.msra.mxu0 0.0
        %863 = vmatprep.subr.mxu0 0.0
        %864 = vmatpush1.msra.mxu0 0.0
        %865 = vmatprep.subr.mxu0 0.0
        %866 = vmatpush1.msra.mxu0 0.0
        %867 = vmatprep.subr.mxu0 0.0
        %868 = vmatpush1.msra.mxu0 0.0
        %869 = vmatprep.subr.mxu0 0.0
        %870 = vmatpush1.msra.mxu0 0.0
        %871 = vmatprep.subr.mxu0 0.0
        %872 = vmatpush1.msra.mxu0 0.0
        %873 = vmatprep.subr.mxu0 0.0
        %874 = vmatpush1.msra.mxu0 0.0
        %875 = vmatprep.subr.mxu0 0.0
        %876 = vmatpush1.msra.mxu0 0.0
        %877 = vmatprep.subr.mxu0 0.0
        %878 = vmatpush1.msra.mxu0 0.0
        %879 = vmatprep.subr.mxu0 0.0
        %880 = vmatpush1.msra.mxu0 0.0
        %881 = vmatprep.subr.mxu0 0.0
        %882 = vmatpush1.msra.mxu0 0.0
        %883 = vmatprep.subr.mxu0 0.0
        %884 = vmatpush1.msra.mxu0 %v570
        %885 = vmatprep.subr.mxu0 0.0
        %886 = vmatpush1.msra.mxu0 %v569
        %887 = vmatprep.subr.mxu0 0.0
        %888 = vmatpush2.msra.mxu0 0.0
        %889 = vmatprep.subr.mxu0 0.0
        %890 = vmatpush2.msra.mxu0 0.0
        %891 = vmatprep.subr.mxu0 0.0
        %892 = vmatpush2.msra.mxu0 0.0
        %893 = vmatprep.subr.mxu0 0.0
        %894 = vmatpush2.msra.mxu0 0.0
        %895 = vmatprep.subr.mxu0 0.0
        %896 = vmatpush2.msra.mxu0 0.0
        %897 = vmatprep.subr.mxu0 0.0
        %898 = vmatpush2.msra.mxu0 0.0
        %899 = vmatprep.subr.mxu0 0.0
        %900 = vmatpush2.msra.mxu0 0.0
        %901 = vmatprep.subr.mxu0 0.0
        %902 = vmatpush2.msra.mxu0 0.0
        %903 = vmatprep.subr.mxu0 0.0
        %904 = vmatpush2.msra.mxu0 0.0
        %905 = vmatprep.subr.mxu0 0.0
        %906 = vmatpush2.msra.mxu0 0.0
        %907 = vmatprep.subr.mxu0 0.0
        %908 = vmatpush2.msra.mxu0 0.0
        %909 = vmatprep.subr.mxu0 0.0
        %910 = vmatpush2.msra.mxu0 0.0
        %911 = vmatprep.subr.mxu0 0.0
        %912 = vmatpush2.msra.mxu0 0.0
        %913 = vmatprep.subr.mxu0 0.0
        %914 = vmatpush2.msra.mxu0 0.0
        %915 = vmatprep.subr.mxu0 0.0
        %916 = vmatpush2.msra.mxu0 0.0
        %917 = vmatprep.subr.mxu0 0.0
        %918 = vmatpush2.msra.mxu0 0.0
        %919 = vmatprep.mubr.f32.mxu0 0.0
        %920 = vmatmul.mubr.f32.gmra.mxu0 %v850
        %v921 = vpop.f32.mrf.mxu0
        %v922 = vadd.f32 0.0, %v921
        %v923 = vpop.f32.mrf.mxu0
        %924 = vmatprep.mubr.f32.mxu0 0.0
        %925 = vmatmul.mubr.f32.gmra.mxu0 %v853
        %v926 = vpop.f32.mrf.mxu0
        %v927 = vadd.f32 0.0, %v926
        %v928 = vpop.f32.mrf.mxu0
        %929 = vdwg.mxu0
        %s930 = scalar_lea.vmem %s522, 32 [#allocation11]
        %v931 = vld [vmem:[%s930] sm:$0xff]
        %v932 = vld [vmem:[%s930 + $0x8] sm:$0xff]
        %v933 = vld [vmem:[%s930 + $0x10] sm:$0xff]
        %v934 = vld [vmem:[%s930 + $0x18] sm:$0xff]
        %935 = vmatprep.subr.mxu0 0.0
        %936 = vmatpush1.msra.mxu0 0.0
        %937 = vmatprep.subr.mxu0 0.0
        %938 = vmatpush1.msra.mxu0 0.0
        %939 = vmatprep.subr.mxu0 0.0
        %940 = vmatpush1.msra.mxu0 0.0
        %941 = vmatprep.subr.mxu0 0.0
        %942 = vmatpush1.msra.mxu0 0.0
        %943 = vmatprep.subr.mxu0 0.0
        %944 = vmatpush1.msra.mxu0 0.0
        %945 = vmatprep.subr.mxu0 0.0
        %946 = vmatpush1.msra.mxu0 0.0
        %947 = vmatprep.subr.mxu0 0.0
        %948 = vmatpush1.msra.mxu0 0.0
        %949 = vmatprep.subr.mxu0 0.0
        %950 = vmatpush1.msra.mxu0 0.0
        %951 = vmatprep.subr.mxu0 0.0
        %952 = vmatpush1.msra.mxu0 0.0
        %953 = vmatprep.subr.mxu0 0.0
        %954 = vmatpush1.msra.mxu0 0.0
        %955 = vmatprep.subr.mxu0 0.0
        %956 = vmatpush1.msra.mxu0 0.0
        %957 = vmatprep.subr.mxu0 0.0
        %958 = vmatpush1.msra.mxu0 0.0
        %959 = vmatprep.subr.mxu0 0.0
        %960 = vmatpush1.msra.mxu0 0.0
        %961 = vmatprep.subr.mxu0 0.0
        %962 = vmatpush1.msra.mxu0 0.0
        %963 = vmatprep.subr.mxu0 0.0
        %964 = vmatpush1.msra.mxu0 %v927
        %965 = vmatprep.subr.mxu0 0.0
        %966 = vmatpush1.msra.mxu0 %v922
        %967 = vmatprep.subr.mxu0 0.0
        %968 = vmatpush2.msra.mxu0 0.0
        %969 = vmatprep.subr.mxu0 0.0
        %970 = vmatpush2.msra.mxu0 0.0
        %971 = vmatprep.subr.mxu0 0.0
        %972 = vmatpush2.msra.mxu0 0.0
        %973 = vmatprep.subr.mxu0 0.0
        %974 = vmatpush2.msra.mxu0 0.0
        %975 = vmatprep.subr.mxu0 0.0
        %976 = vmatpush2.msra.mxu0 0.0
        %977 = vmatprep.subr.mxu0 0.0
        %978 = vmatpush2.msra.mxu0 0.0
        %979 = vmatprep.subr.mxu0 0.0
        %980 = vmatpush2.msra.mxu0 0.0
        %981 = vmatprep.subr.mxu0 0.0
        %982 = vmatpush2.msra.mxu0 0.0
        %983 = vmatprep.subr.mxu0 0.0
        %984 = vmatpush2.msra.mxu0 0.0
        %985 = vmatprep.subr.mxu0 0.0
        %986 = vmatpush2.msra.mxu0 0.0
        %987 = vmatprep.subr.mxu0 0.0
        %988 = vmatpush2.msra.mxu0 0.0
        %989 = vmatprep.subr.mxu0 0.0
        %990 = vmatpush2.msra.mxu0 0.0
        %991 = vmatprep.subr.mxu0 0.0
        %992 = vmatpush2.msra.mxu0 0.0
        %993 = vmatprep.subr.mxu0 0.0
        %994 = vmatpush2.msra.mxu0 0.0
        %995 = vmatprep.subr.mxu0 0.0
        %996 = vmatpush2.msra.mxu0 0.0
        %997 = vmatprep.subr.mxu0 0.0
        %998 = vmatpush2.msra.mxu0 0.0
        %999 = vmatprep.mubr.f32.mxu0 0.0
        %1000 = vmatmul.mubr.f32.gmra.mxu0 %v684
        %v1001 = vpop.f32.mrf.mxu0
        %v1002 = vadd.f32 %v931, %v1001
        %v1003 = vpop.f32.mrf.mxu0
        %1004 = vmatprep.mubr.f32.mxu0 0.0
        %1005 = vmatmul.mubr.f32.gmra.mxu0 %v687
        %v1006 = vpop.f32.mrf.mxu0
        %v1007 = vadd.f32 %v932, %v1006
        %v1008 = vpop.f32.mrf.mxu0
        %1009 = vmatprep.mubr.f32.mxu0 0.0
        %1010 = vmatmul.mubr.f32.gmra.mxu0 %v690
        %v1011 = vpop.f32.mrf.mxu0
        %v1012 = vadd.f32 %v933, %v1011
        %v1013 = vpop.f32.mrf.mxu0
        %1014 = vmatprep.mubr.f32.mxu0 0.0
        %1015 = vmatmul.mubr.f32.gmra.mxu0 %v693
        %v1016 = vpop.f32.mrf.mxu0
        %v1017 = vadd.f32 %v934, %v1016
        %v1018 = vpop.f32.mrf.mxu0
        %1019 = vdwg.mxu0
        %s1020 = sld [smem:[#allocation5 + $0x1]]
        %v1021 = vstv %s1020
        %v1022 = vadd.f32 %v1002, %v1021
        %v1023 = vadd.f32 %v1007, %v1021
        %v1024 = vadd.f32 %v1012, %v1021
        %v1025 = vadd.f32 %v1017, %v1021
        %s1026 = sld [smem:[#allocation7 + $0x1]]
        %v1027 = vstv %s1026
        %v1028 = vmul.f32 %v1022, %v1027
        %v1029 = vmul.f32 %v1023, %v1027
        %v1030 = vmul.f32 %v1024, %v1027
        %v1031 = vmul.f32 %v1025, %v1027
        %s1032 = sld [smem:[#allocation8 + $0x1]]
        %v1033 = vstv %s1032
        %v1034 = vadd.f32 %v1028, %v1033
        %v1035 = vadd.f32 %v1029, %v1033
        %v1036 = vadd.f32 %v1030, %v1033
        %v1037 = vadd.f32 %v1031, %v1033
        %vm1038 = vcmp.gt.f32.partialorder %v1034, 0.0
        %vm1039 = vcmp.gt.f32.partialorder %v1035, 0.0
        %vm1040 = vcmp.gt.f32.partialorder %v1036, 0.0
        %vm1041 = vcmp.gt.f32.partialorder %v1037, 0.0
        %v1042 = vmin.f32 %v1034, 0.0
        %v1043 = vmin.f32 %v1035, 0.0
        %v1044 = vmin.f32 %v1036, 0.0
        %v1045 = vmin.f32 %v1037, 0.0
        %v1046 = vmul.f32 %v1042, 1.442695
        %v1047 = vpow.pop %v1046
        %v1048 = vmul.f32 %v1043, 1.442695
        %v1049 = vpow.pop %v1048
        %v1050 = vmul.f32 %v1044, 1.442695
        %v1051 = vpow.pop %v1050
        %v1052 = vmul.f32 %v1045, 1.442695
        %v1053 = vpow.pop %v1052
        %v1054 = vsub.f32 %v1047, 1.0
        %v1055 = vsub.f32 %v1049, 1.0
        %v1056 = vsub.f32 %v1051, 1.0
        %v1057 = vsub.f32 %v1053, 1.0
        %v1058 = vsel %vm1038, %v1034, %v1054
        %v1059 = vsel %vm1039, %v1035, %v1055
        %v1060 = vsel %vm1040, %v1036, %v1056
        %v1061 = vsel %vm1041, %v1037, %v1057
        %s1062 = scalar_lea.vmem %s557, 32 [#allocation12]
        %1063 = vst.msk [vmem:[%s1062] sm:$0xff] %vm822, %v1058
        %1064 = vst.msk [vmem:[%s1062 + $0x8] sm:$0xff] %vm822, %v1059
        %1065 = vst.msk [vmem:[%s1062 + $0x10] sm:$0xff] %vm822, %v1060
        %1066 = vst.msk [vmem:[%s1062 + $0x18] sm:$0xff] %vm822, %v1061
        %s1067 = sld [smem:[#allocation2 + $0x100]]
        %v1068 = vstv %s1067
        %v1069 = vmul.f32 %v558, %v1068
        %v1070 = vmul.f32 %v559, %v1068
        %s1071 = sld [smem:[#allocation2 + $0x101]]
        %v1072 = vstv %s1071
        %v1073 = vmul.f32 %v561, %v1072
        %v1074 = vmul.f32 %v562, %v1072
        %v1075 = vadd.f32 %v1069, %v1073
        %v1076 = vadd.f32 %v1070, %v1074
        %s1077 = sld [smem:[#allocation2 + $0x102]]
        %v1078 = vstv %s1077
        %v1079 = vmul.f32 %v564, %v1078
        %v1080 = vmul.f32 %v565, %v1078
        %v1081 = vadd.f32 %v1075, %v1079
        %v1082 = vadd.f32 %v1076, %v1080
        %s1083 = sld [smem:[#allocation2 + $0x103]]
        %v1084 = vstv %s1083
        %v1085 = vmul.f32 %v567, %v1084
        %v1086 = vmul.f32 %v568, %v1084
        %v1087 = vadd.f32 %v1081, %v1085
        %v1088 = vadd.f32 %v1082, %v1086
        %v1090 = vsel %vm597, %v1087, 0
        %v1093 = vsel %vm597, %v1088, 0
        %1095 = vmatprep.subr.mxu0 0.0
        %1096 = vmatpush1.msra.mxu0 0.0
        %1097 = vmatprep.subr.mxu0 0.0
        %1098 = vmatpush1.msra.mxu0 0.0
        %1099 = vmatprep.subr.mxu0 0.0
        %1100 = vmatpush1.msra.mxu0 0.0
        %1101 = vmatprep.subr.mxu0 0.0
        %1102 = vmatpush1.msra.mxu0 0.0
        %1103 = vmatprep.subr.mxu0 0.0
        %1104 = vmatpush1.msra.mxu0 0.0
        %1105 = vmatprep.subr.mxu0 0.0
        %1106 = vmatpush1.msra.mxu0 0.0
        %1107 = vmatprep.subr.mxu0 0.0
        %1108 = vmatpush1.msra.mxu0 0.0
        %1109 = vmatprep.subr.mxu0 0.0
        %1110 = vmatpush1.msra.mxu0 0.0
        %1111 = vmatprep.subr.mxu0 0.0
        %1112 = vmatpush1.msra.mxu0 0.0
        %1113 = vmatprep.subr.mxu0 0.0
        %1114 = vmatpush1.msra.mxu0 0.0
        %1115 = vmatprep.subr.mxu0 0.0
        %1116 = vmatpush1.msra.mxu0 0.0
        %1117 = vmatprep.subr.mxu0 0.0
        %1118 = vmatpush1.msra.mxu0 0.0
        %1119 = vmatprep.subr.mxu0 0.0
        %1120 = vmatpush1.msra.mxu0 0.0
        %1121 = vmatprep.subr.mxu0 0.0
        %1122 = vmatpush1.msra.mxu0 0.0
        %1123 = vmatprep.subr.mxu0 0.0
        %1124 = vmatpush1.msra.mxu0 %v570
        %1125 = vmatprep.subr.mxu0 0.0
        %1126 = vmatpush1.msra.mxu0 %v569
        %1127 = vmatprep.subr.mxu0 0.0
        %1128 = vmatpush2.msra.mxu0 0.0
        %1129 = vmatprep.subr.mxu0 0.0
        %1130 = vmatpush2.msra.mxu0 0.0
        %1131 = vmatprep.subr.mxu0 0.0
        %1132 = vmatpush2.msra.mxu0 0.0
        %1133 = vmatprep.subr.mxu0 0.0
        %1134 = vmatpush2.msra.mxu0 0.0
        %1135 = vmatprep.subr.mxu0 0.0
        %1136 = vmatpush2.msra.mxu0 0.0
        %1137 = vmatprep.subr.mxu0 0.0
        %1138 = vmatpush2.msra.mxu0 0.0
        %1139 = vmatprep.subr.mxu0 0.0
        %1140 = vmatpush2.msra.mxu0 0.0
        %1141 = vmatprep.subr.mxu0 0.0
        %1142 = vmatpush2.msra.mxu0 0.0
        %1143 = vmatprep.subr.mxu0 0.0
        %1144 = vmatpush2.msra.mxu0 0.0
        %1145 = vmatprep.subr.mxu0 0.0
        %1146 = vmatpush2.msra.mxu0 0.0
        %1147 = vmatprep.subr.mxu0 0.0
        %1148 = vmatpush2.msra.mxu0 0.0
        %1149 = vmatprep.subr.mxu0 0.0
        %1150 = vmatpush2.msra.mxu0 0.0
        %1151 = vmatprep.subr.mxu0 0.0
        %1152 = vmatpush2.msra.mxu0 0.0
        %1153 = vmatprep.subr.mxu0 0.0
        %1154 = vmatpush2.msra.mxu0 0.0
        %1155 = vmatprep.subr.mxu0 0.0
        %1156 = vmatpush2.msra.mxu0 0.0
        %1157 = vmatprep.subr.mxu0 0.0
        %1158 = vmatpush2.msra.mxu0 0.0
        %1159 = vmatprep.mubr.f32.mxu0 0.0
        %1160 = vmatmul.mubr.f32.gmra.mxu0 %v1090
        %v1161 = vpop.f32.mrf.mxu0
        %v1162 = vadd.f32 0.0, %v1161
        %v1163 = vpop.f32.mrf.mxu0
        %1164 = vmatprep.mubr.f32.mxu0 0.0
        %1165 = vmatmul.mubr.f32.gmra.mxu0 %v1093
        %v1166 = vpop.f32.mrf.mxu0
        %v1167 = vadd.f32 0.0, %v1166
        %v1168 = vpop.f32.mrf.mxu0
        %1169 = vdwg.mxu0
        %s1170 = scalar_lea.vmem %s522, 64 [#allocation11]
        %v1171 = vld [vmem:[%s1170] sm:$0xff]
        %v1172 = vld [vmem:[%s1170 + $0x8] sm:$0xff]
        %v1173 = vld [vmem:[%s1170 + $0x10] sm:$0xff]
        %v1174 = vld [vmem:[%s1170 + $0x18] sm:$0xff]
        %1175 = vmatprep.subr.mxu0 0.0
        %1176 = vmatpush1.msra.mxu0 0.0
        %1177 = vmatprep.subr.mxu0 0.0
        %1178 = vmatpush1.msra.mxu0 0.0
        %1179 = vmatprep.subr.mxu0 0.0
        %1180 = vmatpush1.msra.mxu0 0.0
        %1181 = vmatprep.subr.mxu0 0.0
        %1182 = vmatpush1.msra.mxu0 0.0
        %1183 = vmatprep.subr.mxu0 0.0
        %1184 = vmatpush1.msra.mxu0 0.0
        %1185 = vmatprep.subr.mxu0 0.0
        %1186 = vmatpush1.msra.mxu0 0.0
        %1187 = vmatprep.subr.mxu0 0.0
        %1188 = vmatpush1.msra.mxu0 0.0
        %1189 = vmatprep.subr.mxu0 0.0
        %1190 = vmatpush1.msra.mxu0 0.0
        %1191 = vmatprep.subr.mxu0 0.0
        %1192 = vmatpush1.msra.mxu0 0.0
        %1193 = vmatprep.subr.mxu0 0.0
        %1194 = vmatpush1.msra.mxu0 0.0
        %1195 = vmatprep.subr.mxu0 0.0
        %1196 = vmatpush1.msra.mxu0 0.0
        %1197 = vmatprep.subr.mxu0 0.0
        %1198 = vmatpush1.msra.mxu0 0.0
        %1199 = vmatprep.subr.mxu0 0.0
        %1200 = vmatpush1.msra.mxu0 0.0
        %1201 = vmatprep.subr.mxu0 0.0
        %1202 = vmatpush1.msra.mxu0 0.0
        %1203 = vmatprep.subr.mxu0 0.0
        %1204 = vmatpush1.msra.mxu0 %v1167
        %1205 = vmatprep.subr.mxu0 0.0
        %1206 = vmatpush1.msra.mxu0 %v1162
        %1207 = vmatprep.subr.mxu0 0.0
        %1208 = vmatpush2.msra.mxu0 0.0
        %1209 = vmatprep.subr.mxu0 0.0
        %1210 = vmatpush2.msra.mxu0 0.0
        %1211 = vmatprep.subr.mxu0 0.0
        %1212 = vmatpush2.msra.mxu0 0.0
        %1213 = vmatprep.subr.mxu0 0.0
        %1214 = vmatpush2.msra.mxu0 0.0
        %1215 = vmatprep.subr.mxu0 0.0
        %1216 = vmatpush2.msra.mxu0 0.0
        %1217 = vmatprep.subr.mxu0 0.0
        %1218 = vmatpush2.msra.mxu0 0.0
        %1219 = vmatprep.subr.mxu0 0.0
        %1220 = vmatpush2.msra.mxu0 0.0
        %1221 = vmatprep.subr.mxu0 0.0
        %1222 = vmatpush2.msra.mxu0 0.0
        %1223 = vmatprep.subr.mxu0 0.0
        %1224 = vmatpush2.msra.mxu0 0.0
        %1225 = vmatprep.subr.mxu0 0.0
        %1226 = vmatpush2.msra.mxu0 0.0
        %1227 = vmatprep.subr.mxu0 0.0
        %1228 = vmatpush2.msra.mxu0 0.0
        %1229 = vmatprep.subr.mxu0 0.0
        %1230 = vmatpush2.msra.mxu0 0.0
        %1231 = vmatprep.subr.mxu0 0.0
        %1232 = vmatpush2.msra.mxu0 0.0
        %1233 = vmatprep.subr.mxu0 0.0
        %1234 = vmatpush2.msra.mxu0 0.0
        %1235 = vmatprep.subr.mxu0 0.0
        %1236 = vmatpush2.msra.mxu0 0.0
        %1237 = vmatprep.subr.mxu0 0.0
        %1238 = vmatpush2.msra.mxu0 0.0
        %1239 = vmatprep.mubr.f32.mxu0 0.0
        %1240 = vmatmul.mubr.f32.gmra.mxu0 %v684
        %v1241 = vpop.f32.mrf.mxu0
        %v1242 = vadd.f32 %v1171, %v1241
        %v1243 = vpop.f32.mrf.mxu0
        %1244 = vmatprep.mubr.f32.mxu0 0.0
        %1245 = vmatmul.mubr.f32.gmra.mxu0 %v687
        %v1246 = vpop.f32.mrf.mxu0
        %v1247 = vadd.f32 %v1172, %v1246
        %v1248 = vpop.f32.mrf.mxu0
        %1249 = vmatprep.mubr.f32.mxu0 0.0
        %1250 = vmatmul.mubr.f32.gmra.mxu0 %v690
        %v1251 = vpop.f32.mrf.mxu0
        %v1252 = vadd.f32 %v1173, %v1251
        %v1253 = vpop.f32.mrf.mxu0
        %1254 = vmatprep.mubr.f32.mxu0 0.0
        %1255 = vmatmul.mubr.f32.gmra.mxu0 %v693
        %v1256 = vpop.f32.mrf.mxu0
        %v1257 = vadd.f32 %v1174, %v1256
        %v1258 = vpop.f32.mrf.mxu0
        %1259 = vdwg.mxu0
        %s1260 = sld [smem:[#allocation5 + $0x2]]
        %v1261 = vstv %s1260
        %v1262 = vadd.f32 %v1242, %v1261
        %v1263 = vadd.f32 %v1247, %v1261
        %v1264 = vadd.f32 %v1252, %v1261
        %v1265 = vadd.f32 %v1257, %v1261
        %s1266 = sld [smem:[#allocation7 + $0x2]]
        %v1267 = vstv %s1266
        %v1268 = vmul.f32 %v1262, %v1267
        %v1269 = vmul.f32 %v1263, %v1267
        %v1270 = vmul.f32 %v1264, %v1267
        %v1271 = vmul.f32 %v1265, %v1267
        %s1272 = sld [smem:[#allocation8 + $0x2]]
        %v1273 = vstv %s1272
        %v1274 = vadd.f32 %v1268, %v1273
        %v1275 = vadd.f32 %v1269, %v1273
        %v1276 = vadd.f32 %v1270, %v1273
        %v1277 = vadd.f32 %v1271, %v1273
        %vm1278 = vcmp.gt.f32.partialorder %v1274, 0.0
        %vm1279 = vcmp.gt.f32.partialorder %v1275, 0.0
        %vm1280 = vcmp.gt.f32.partialorder %v1276, 0.0
        %vm1281 = vcmp.gt.f32.partialorder %v1277, 0.0
        %v1282 = vmin.f32 %v1274, 0.0
        %v1283 = vmin.f32 %v1275, 0.0
        %v1284 = vmin.f32 %v1276, 0.0
        %v1285 = vmin.f32 %v1277, 0.0
        %v1286 = vmul.f32 %v1282, 1.442695
        %v1287 = vpow.pop %v1286
        %v1288 = vmul.f32 %v1283, 1.442695
        %v1289 = vpow.pop %v1288
        %v1290 = vmul.f32 %v1284, 1.442695
        %v1291 = vpow.pop %v1290
        %v1292 = vmul.f32 %v1285, 1.442695
        %v1293 = vpow.pop %v1292
        %v1294 = vsub.f32 %v1287, 1.0
        %v1295 = vsub.f32 %v1289, 1.0
        %v1296 = vsub.f32 %v1291, 1.0
        %v1297 = vsub.f32 %v1293, 1.0
        %v1298 = vsel %vm1278, %v1274, %v1294
        %v1299 = vsel %vm1279, %v1275, %v1295
        %v1300 = vsel %vm1280, %v1276, %v1296
        %v1301 = vsel %vm1281, %v1277, %v1297
        %s1302 = scalar_lea.vmem %s557, 64 [#allocation12]
        %1303 = vst.msk [vmem:[%s1302] sm:$0xff] %vm822, %v1298
        %1304 = vst.msk [vmem:[%s1302 + $0x8] sm:$0xff] %vm822, %v1299
        %1305 = vst.msk [vmem:[%s1302 + $0x10] sm:$0xff] %vm822, %v1300
        %1306 = vst.msk [vmem:[%s1302 + $0x18] sm:$0xff] %vm822, %v1301
        %s1307 = sld [smem:[#allocation2 + $0x180]]
        %v1308 = vstv %s1307
        %v1309 = vmul.f32 %v558, %v1308
        %v1310 = vmul.f32 %v559, %v1308
        %s1311 = sld [smem:[#allocation2 + $0x181]]
        %v1312 = vstv %s1311
        %v1313 = vmul.f32 %v561, %v1312
        %v1314 = vmul.f32 %v562, %v1312
        %v1315 = vadd.f32 %v1309, %v1313
        %v1316 = vadd.f32 %v1310, %v1314
        %s1317 = sld [smem:[#allocation2 + $0x182]]
        %v1318 = vstv %s1317
        %v1319 = vmul.f32 %v564, %v1318
        %v1320 = vmul.f32 %v565, %v1318
        %v1321 = vadd.f32 %v1315, %v1319
        %v1322 = vadd.f32 %v1316, %v1320
        %s1323 = sld [smem:[#allocation2 + $0x183]]
        %v1324 = vstv %s1323
        %v1325 = vmul.f32 %v567, %v1324
        %v1326 = vmul.f32 %v568, %v1324
        %v1327 = vadd.f32 %v1321, %v1325
        %v1328 = vadd.f32 %v1322, %v1326
        %v1330 = vsel %vm597, %v1327, 0
        %v1333 = vsel %vm597, %v1328, 0
        %1335 = vmatprep.subr.mxu0 0.0
        %1336 = vmatpush1.msra.mxu0 0.0
        %1337 = vmatprep.subr.mxu0 0.0
        %1338 = vmatpush1.msra.mxu0 0.0
        %1339 = vmatprep.subr.mxu0 0.0
        %1340 = vmatpush1.msra.mxu0 0.0
        %1341 = vmatprep.subr.mxu0 0.0
        %1342 = vmatpush1.msra.mxu0 0.0
        %1343 = vmatprep.subr.mxu0 0.0
        %1344 = vmatpush1.msra.mxu0 0.0
        %1345 = vmatprep.subr.mxu0 0.0
        %1346 = vmatpush1.msra.mxu0 0.0
        %1347 = vmatprep.subr.mxu0 0.0
        %1348 = vmatpush1.msra.mxu0 0.0
        %1349 = vmatprep.subr.mxu0 0.0
        %1350 = vmatpush1.msra.mxu0 0.0
        %1351 = vmatprep.subr.mxu0 0.0
        %1352 = vmatpush1.msra.mxu0 0.0
        %1353 = vmatprep.subr.mxu0 0.0
        %1354 = vmatpush1.msra.mxu0 0.0
        %1355 = vmatprep.subr.mxu0 0.0
        %1356 = vmatpush1.msra.mxu0 0.0
        %1357 = vmatprep.subr.mxu0 0.0
        %1358 = vmatpush1.msra.mxu0 0.0
        %1359 = vmatprep.subr.mxu0 0.0
        %1360 = vmatpush1.msra.mxu0 0.0
        %1361 = vmatprep.subr.mxu0 0.0
        %1362 = vmatpush1.msra.mxu0 0.0
        %1363 = vmatprep.subr.mxu0 0.0
        %1364 = vmatpush1.msra.mxu0 %v570
        %1365 = vmatprep.subr.mxu0 0.0
        %1366 = vmatpush1.msra.mxu0 %v569
        %1367 = vmatprep.subr.mxu0 0.0
        %1368 = vmatpush2.msra.mxu0 0.0
        %1369 = vmatprep.subr.mxu0 0.0
        %1370 = vmatpush2.msra.mxu0 0.0
        %1371 = vmatprep.subr.mxu0 0.0
        %1372 = vmatpush2.msra.mxu0 0.0
        %1373 = vmatprep.subr.mxu0 0.0
        %1374 = vmatpush2.msra.mxu0 0.0
        %1375 = vmatprep.subr.mxu0 0.0
        %1376 = vmatpush2.msra.mxu0 0.0
        %1377 = vmatprep.subr.mxu0 0.0
        %1378 = vmatpush2.msra.mxu0 0.0
        %1379 = vmatprep.subr.mxu0 0.0
        %1380 = vmatpush2.msra.mxu0 0.0
        %1381 = vmatprep.subr.mxu0 0.0
        %1382 = vmatpush2.msra.mxu0 0.0
        %1383 = vmatprep.subr.mxu0 0.0
        %1384 = vmatpush2.msra.mxu0 0.0
        %1385 = vmatprep.subr.mxu0 0.0
        %1386 = vmatpush2.msra.mxu0 0.0
        %1387 = vmatprep.subr.mxu0 0.0
        %1388 = vmatpush2.msra.mxu0 0.0
        %1389 = vmatprep.subr.mxu0 0.0
        %1390 = vmatpush2.msra.mxu0 0.0
        %1391 = vmatprep.subr.mxu0 0.0
        %1392 = vmatpush2.msra.mxu0 0.0
        %1393 = vmatprep.subr.mxu0 0.0
        %1394 = vmatpush2.msra.mxu0 0.0
        %1395 = vmatprep.subr.mxu0 0.0
        %1396 = vmatpush2.msra.mxu0 0.0
        %1397 = vmatprep.subr.mxu0 0.0
        %1398 = vmatpush2.msra.mxu0 0.0
        %1399 = vmatprep.mubr.f32.mxu0 0.0
        %1400 = vmatmul.mubr.f32.gmra.mxu0 %v1330
        %v1401 = vpop.f32.mrf.mxu0
        %v1402 = vadd.f32 0.0, %v1401
        %v1403 = vpop.f32.mrf.mxu0
        %1404 = vmatprep.mubr.f32.mxu0 0.0
        %1405 = vmatmul.mubr.f32.gmra.mxu0 %v1333
        %v1406 = vpop.f32.mrf.mxu0
        %v1407 = vadd.f32 0.0, %v1406
        %v1408 = vpop.f32.mrf.mxu0
        %1409 = vdwg.mxu0
        %s1410 = scalar_lea.vmem %s522, 96 [#allocation11]
        %v1411 = vld [vmem:[%s1410] sm:$0xff]
        %v1412 = vld [vmem:[%s1410 + $0x8] sm:$0xff]
        %v1413 = vld [vmem:[%s1410 + $0x10] sm:$0xff]
        %v1414 = vld [vmem:[%s1410 + $0x18] sm:$0xff]
        %1415 = vmatprep.subr.mxu0 0.0
        %1416 = vmatpush1.msra.mxu0 0.0
        %1417 = vmatprep.subr.mxu0 0.0
        %1418 = vmatpush1.msra.mxu0 0.0
        %1419 = vmatprep.subr.mxu0 0.0
        %1420 = vmatpush1.msra.mxu0 0.0
        %1421 = vmatprep.subr.mxu0 0.0
        %1422 = vmatpush1.msra.mxu0 0.0
        %1423 = vmatprep.subr.mxu0 0.0
        %1424 = vmatpush1.msra.mxu0 0.0
        %1425 = vmatprep.subr.mxu0 0.0
        %1426 = vmatpush1.msra.mxu0 0.0
        %1427 = vmatprep.subr.mxu0 0.0
        %1428 = vmatpush1.msra.mxu0 0.0
        %1429 = vmatprep.subr.mxu0 0.0
        %1430 = vmatpush1.msra.mxu0 0.0
        %1431 = vmatprep.subr.mxu0 0.0
        %1432 = vmatpush1.msra.mxu0 0.0
        %1433 = vmatprep.subr.mxu0 0.0
        %1434 = vmatpush1.msra.mxu0 0.0
        %1435 = vmatprep.subr.mxu0 0.0
        %1436 = vmatpush1.msra.mxu0 0.0
        %1437 = vmatprep.subr.mxu0 0.0
        %1438 = vmatpush1.msra.mxu0 0.0
        %1439 = vmatprep.subr.mxu0 0.0
        %1440 = vmatpush1.msra.mxu0 0.0
        %1441 = vmatprep.subr.mxu0 0.0
        %1442 = vmatpush1.msra.mxu0 0.0
        %1443 = vmatprep.subr.mxu0 0.0
        %1444 = vmatpush1.msra.mxu0 %v1407
        %1445 = vmatprep.subr.mxu0 0.0
        %1446 = vmatpush1.msra.mxu0 %v1402
        %1447 = vmatprep.subr.mxu0 0.0
        %1448 = vmatpush2.msra.mxu0 0.0
        %1449 = vmatprep.subr.mxu0 0.0
        %1450 = vmatpush2.msra.mxu0 0.0
        %1451 = vmatprep.subr.mxu0 0.0
        %1452 = vmatpush2.msra.mxu0 0.0
        %1453 = vmatprep.subr.mxu0 0.0
        %1454 = vmatpush2.msra.mxu0 0.0
        %1455 = vmatprep.subr.mxu0 0.0
        %1456 = vmatpush2.msra.mxu0 0.0
        %1457 = vmatprep.subr.mxu0 0.0
        %1458 = vmatpush2.msra.mxu0 0.0
        %1459 = vmatprep.subr.mxu0 0.0
        %1460 = vmatpush2.msra.mxu0 0.0
        %1461 = vmatprep.subr.mxu0 0.0
        %1462 = vmatpush2.msra.mxu0 0.0
        %1463 = vmatprep.subr.mxu0 0.0
        %1464 = vmatpush2.msra.mxu0 0.0
        %1465 = vmatprep.subr.mxu0 0.0
        %1466 = vmatpush2.msra.mxu0 0.0
        %1467 = vmatprep.subr.mxu0 0.0
        %1468 = vmatpush2.msra.mxu0 0.0
        %1469 = vmatprep.subr.mxu0 0.0
        %1470 = vmatpush2.msra.mxu0 0.0
        %1471 = vmatprep.subr.mxu0 0.0
        %1472 = vmatpush2.msra.mxu0 0.0
        %1473 = vmatprep.subr.mxu0 0.0
        %1474 = vmatpush2.msra.mxu0 0.0
        %1475 = vmatprep.subr.mxu0 0.0
        %1476 = vmatpush2.msra.mxu0 0.0
        %1477 = vmatprep.subr.mxu0 0.0
        %1478 = vmatpush2.msra.mxu0 0.0
        %1479 = vmatprep.mubr.f32.mxu0 0.0
        %1480 = vmatmul.mubr.f32.gmra.mxu0 %v684
        %v1481 = vpop.f32.mrf.mxu0
        %v1482 = vadd.f32 %v1411, %v1481
        %v1483 = vpop.f32.mrf.mxu0
        %1484 = vmatprep.mubr.f32.mxu0 0.0
        %1485 = vmatmul.mubr.f32.gmra.mxu0 %v687
        %v1486 = vpop.f32.mrf.mxu0
        %v1487 = vadd.f32 %v1412, %v1486
        %v1488 = vpop.f32.mrf.mxu0
        %1489 = vmatprep.mubr.f32.mxu0 0.0
        %1490 = vmatmul.mubr.f32.gmra.mxu0 %v690
        %v1491 = vpop.f32.mrf.mxu0
        %v1492 = vadd.f32 %v1413, %v1491
        %v1493 = vpop.f32.mrf.mxu0
        %1494 = vmatprep.mubr.f32.mxu0 0.0
        %1495 = vmatmul.mubr.f32.gmra.mxu0 %v693
        %v1496 = vpop.f32.mrf.mxu0
        %v1497 = vadd.f32 %v1414, %v1496
        %v1498 = vpop.f32.mrf.mxu0
        %1499 = vdwg.mxu0
        %s1500 = sld [smem:[#allocation5 + $0x3]]
        %v1501 = vstv %s1500
        %v1502 = vadd.f32 %v1482, %v1501
        %v1503 = vadd.f32 %v1487, %v1501
        %v1504 = vadd.f32 %v1492, %v1501
        %v1505 = vadd.f32 %v1497, %v1501
        %s1506 = sld [smem:[#allocation7 + $0x3]]
        %v1507 = vstv %s1506
        %v1508 = vmul.f32 %v1502, %v1507
        %v1509 = vmul.f32 %v1503, %v1507
        %v1510 = vmul.f32 %v1504, %v1507
        %v1511 = vmul.f32 %v1505, %v1507
        %s1512 = sld [smem:[#allocation8 + $0x3]]
        %v1513 = vstv %s1512
        %v1514 = vadd.f32 %v1508, %v1513
        %v1515 = vadd.f32 %v1509, %v1513
        %v1516 = vadd.f32 %v1510, %v1513
        %v1517 = vadd.f32 %v1511, %v1513
        %vm1518 = vcmp.gt.f32.partialorder %v1514, 0.0
        %vm1519 = vcmp.gt.f32.partialorder %v1515, 0.0
        %vm1520 = vcmp.gt.f32.partialorder %v1516, 0.0
        %vm1521 = vcmp.gt.f32.partialorder %v1517, 0.0
        %v1522 = vmin.f32 %v1514, 0.0
        %v1523 = vmin.f32 %v1515, 0.0
        %v1524 = vmin.f32 %v1516, 0.0
        %v1525 = vmin.f32 %v1517, 0.0
        %v1526 = vmul.f32 %v1522, 1.442695
        %v1527 = vpow.pop %v1526
        %v1528 = vmul.f32 %v1523, 1.442695
        %v1529 = vpow.pop %v1528
        %v1530 = vmul.f32 %v1524, 1.442695
        %v1531 = vpow.pop %v1530
        %v1532 = vmul.f32 %v1525, 1.442695
        %v1533 = vpow.pop %v1532
        %v1534 = vsub.f32 %v1527, 1.0
        %v1535 = vsub.f32 %v1529, 1.0
        %v1536 = vsub.f32 %v1531, 1.0
        %v1537 = vsub.f32 %v1533, 1.0
        %v1538 = vsel %vm1518, %v1514, %v1534
        %v1539 = vsel %vm1519, %v1515, %v1535
        %v1540 = vsel %vm1520, %v1516, %v1536
        %v1541 = vsel %vm1521, %v1517, %v1537
        %s1542 = scalar_lea.vmem %s557, 96 [#allocation12]
        %1543 = vst.msk [vmem:[%s1542] sm:$0xff] %vm822, %v1538
        %1544 = vst.msk [vmem:[%s1542 + $0x8] sm:$0xff] %vm822, %v1539
        %1545 = vst.msk [vmem:[%s1542 + $0x10] sm:$0xff] %vm822, %v1540
        %1546 = vst.msk [vmem:[%s1542 + $0x18] sm:$0xff] %vm822, %v1541
        %s1547 = sand.u32 %s229, 1
        %s1548 = scalar_lea.sflag [#allocation3], %s1547
        %s1549 = sand.u32 %s229, 1
        %s1550 = smul.addr %s1549, 128
        %s1551 = scalar_lea.vmem [#allocation12], %s1550
        // Predicated region
        $region145: #{upsample_mod_forward.3} parent=119 // pred_check
          %p1552 = pneg %p239
        $region146: #{upsample_mod_forward.3} parent=119 // pred_check_branch
          %1554 = sbr.rel (%p1552) target = $region148
        $region147: #{upsample_mod_forward.3} parent=119 // pred_region
          #allocation14 [shape = 'u32[6]{0}', space=smem, size = 0x18, scoped, tag = 'DMA stride descriptor']
          %s1556 = ssub.s32 2048, 2048
          %1557 = vsyncadd %s1548, %s1556
          %s1558 = smul.addr %s30, 4
          %s1559 = smul.addr %s29, 64
          %s1560 = sadd.s32 %s1558, %s1559
          %s1561 = smul.addr %s1560, 128
          %s1562 = scalar_lea.hbm %s8, %s1561
          %s1564 = sshll.u32 1, 14
          %s1565 = sxor.u32 4294967295, %s1564
          %s1568 = sshll.u32 7, 18
          %s1569 = sxor.u32 4294967295, %s1568
          %s1570 = sand.u32 0, %s1569
          %s1572 = sor.u32 %s1570, 0
          %s1573 = sshll.u32 %s1551, 4
          %s1574 = int_to_ptr.vmem [resolvable:$true] %s1573
          %1580 = sst [smem:[#allocation14]] 512
          %s1581 = scalar_lea.smem [#allocation14], 1
          %1582 = sst [smem:[%s1581]] 2048
          %s1583 = scalar_lea.smem [#allocation14], 2
          %1584 = sst [smem:[%s1583]] 4
          %s1585 = scalar_lea.smem [#allocation14], 3
          %1586 = sst [smem:[%s1585]] 128
          %s1587 = scalar_lea.smem [#allocation14], 4
          %1588 = sst [smem:[%s1587]] 128
          %s1589 = scalar_lea.smem [#allocation14], 5
          %1590 = sst [smem:[%s1589]] 8
          %1592 = dma.general %s1574, 2048, %s1562, %s1548, 131072, [#allocation14], %s1572, 0
        $region148: #{upsample_mod_forward.3} parent=119 // pred_fallthru
          _
      $region120: #{upsample_mod_forward.3} parent=5 // pred_fallthru
        _
      %p1593 = scmp.le.s32.totalorder 2, %s20
      // Predicated region
      $region149: #{upsample_mod_forward.3} parent=5 // pred_check
        %p1594 = pneg %p1593
      $region150: #{upsample_mod_forward.3} parent=5 // pred_check_branch
        %1596 = sbr.rel (%p1594) target = $region152
      $region151: #{upsample_mod_forward.3} parent=5 // pred_region
        %s1597 = ssub.s32 %s20, 2
        // Predicated region
        $region153: #{upsample_mod_forward.3} parent=151 // pred_check
          %p1598 = pneg %p245
        $region154: #{upsample_mod_forward.3} parent=151 // pred_check_branch
          %1600 = sbr.rel (%p1598) target = $region156
        $region155: #{upsample_mod_forward.3} parent=151 // pred_region
          %s1601 = sand.u32 %s230, 1
          %s1602 = scalar_lea.sflag [#allocation3], %s1601
          %s1603 = sand.u32 %s230, 1
          %s1604 = smul.addr %s1603, 128
          %s1605 = scalar_lea.vmem [#allocation12], %s1604
          %1606 = dma.done %s1602, 2048
        $region156: #{upsample_mod_forward.3} parent=151 // pred_fallthru
          _
      $region152: #{upsample_mod_forward.3} parent=5 // pred_fallthru
        _
    $region6: #{upsample_mod_forward.3} parent=1 // loop_footer
      %s24 = sadd.s32 1, %s20
    $region7: #{upsample_mod_forward.3} parent=1 // loop_footer_branch
      %19 = sbr.rel target = $region3
    $region8: #{upsample_mod_forward.3} parent=1 // loop_exit
      _
    %1607 = vsyncpa [#allocation3], 1
    %s1608 = scalar_lea.sflag [#allocation3], 1
    %1609 = vsyncpa %s1608, 1
    %1610 = vsyncpa [#allocation4], 1
    %s1611 = scalar_lea.sflag [#allocation4], 1
    %1612 = vsyncpa %s1611, 1
    %1613 = vsyncpa [#allocation6], 1
    %1614 = vsyncpa [#allocation9], 1

</llo_original>
